<compile_context>
chip_gen: v7x
topology: tpu7x:2x2x1
jax: 0.10.0
libtpu: 0.0.40
codegen_flags: <defaults>
</compile_context>

<pallas_src>
import math

import jax
import jax.numpy as jnp
from jax.experimental import pallas as pl
from jax.experimental.pallas import tpu as pltpu

HEADS = 4
CHANNELS = 32
GROWTH = 2
DEPTH = 2
VSIZE = 16
MLEN = 16
LN_EPS = 1e-5                  # PyTorch nn.LayerNorm default
LOGITS_PAD = 128               # lane-dense padded logits width
MATMUL_DTYPE = jnp.bfloat16    # MXU operand dtype; accumulation stays f32


def _layernorm(z, gamma, beta):
    mu = jnp.mean(z, axis=-1, keepdims=True)
    var = jnp.mean((z - mu) ** 2, axis=-1, keepdims=True)   # biased var (torch)
    return (z - mu) * jax.lax.rsqrt(var + LN_EPS) * gamma + beta


def fwd_kernel(tok_ref, wemb_ref, pemb_ref, wqkv_ref, wp_ref, vecs_ref,
               wf1_ref, wf2_ref, wlog_ref, blog_ref, o_ref):
    """Fused forward for ONE batch element: embed + DEPTH blocks + logits."""
    t = tok_ref.shape[1]
    c = CHANNELS
    h = HEADS
    s = c // h
    mm = MATMUL_DTYPE

    # ---- Embedding: gather expressed as one-hot matmul (exact in f32).
    tok = tok_ref[0]                                               # (t, 1) i32
    onehot = (tok == jax.lax.broadcasted_iota(jnp.int32, (t, VSIZE), 1)
              ).astype(jnp.float32)                                # (t, v)
    x = jnp.dot(onehot, wemb_ref[...],
                preferred_element_type=jnp.float32)                # (t, c) f32
    x = x + pemb_ref[0:t, :]

    # ---- Additive causal mask, built once (large finite negative, NaN-safe).
    row = jax.lax.broadcasted_iota(jnp.int32, (t, t), 0)
    col = jax.lax.broadcasted_iota(jnp.int32, (t, t), 1)
    mask_add = jnp.where(col <= row, 0.0, -1e30).astype(jnp.float32)[None]

    for d in range(DEPTH):                      # static depth loop (DEPTH=2)
        vecs = vecs_ref[d]                      # (7, g*c) packed f32 vectors
        bp = vecs[0:1, :c]
        g1 = vecs[1:2, :c]
        b1 = vecs[2:3, :c]
        g2 = vecs[3:4, :c]
        b2 = vecs[4:5, :c]
        bf2 = vecs[5:6, :c]
        bf1 = vecs[6:7, :]

        # Fused QKV projection: one (t,c)x(c,3c) MXU matmul (Q pre-scaled).
        qkv = jnp.dot(x.astype(mm), wqkv_ref[d],
                      preferred_element_type=jnp.float32)          # (t, 3c)
        # Single relayout to head-leading, then cheap leading-dim slices
        # (no per-head lane slicing).
        qkv = jnp.transpose(qkv.reshape(t, 3 * h, s), (1, 0, 2))   # (3h, t, s)
        k = qkv[0:h]
        q = qkv[h:2 * h]
        v = qkv[2 * h:3 * h]

        # Batched-head attention: canonical leading-batch dot_generals.
        w = jnp.einsum('hqs,hks->hqk', q.astype(mm), k.astype(mm),
                       preferred_element_type=jnp.float32)         # (h, t, t)
        w = w + mask_add
        w = w - jnp.max(w, axis=-1, keepdims=True)
        p = jnp.exp(w)
        p = p * pl.reciprocal(jnp.sum(p, axis=-1, keepdims=True), approx=True)
        att = jnp.einsum('hqk,hks->hqs', p.astype(mm), v.astype(mm),
                         preferred_element_type=jnp.float32)       # (h, t, s)
        # Output projection against Wp reshaped to (h, s, c); concat over heads
        # is equivalent to the per-head matmul + sum over h.
        contrib = jnp.einsum('hqs,hsc->hqc', att.astype(mm), wp_ref[d],
                             preferred_element_type=jnp.float32)   # (h, t, c)
        proj = jnp.sum(contrib, axis=0) + bp                       # (t, c)

        # Residual #1 with post-sublayer LayerNorm (matches reference).
        x = x + _layernorm(proj, g1, b1)

        # Feedforward: Linear(c->g*c) -> ReLU -> Linear(g*c->c); 2-D matmuls.
        hid = jnp.dot(x.astype(mm), wf1_ref[d],
                      preferred_element_type=jnp.float32) + bf1
        hid = jnp.maximum(hid, 0.0)
        ff = jnp.dot(hid.astype(mm), wf2_ref[d],
                     preferred_element_type=jnp.float32) + bf2

        # Dropout is identity in eval mode.
        x = x + _layernorm(ff, g2, b2)

    # Logits projection, padded to 128 lanes for a lane-dense store.
    o_ref[0] = jnp.dot(x.astype(mm), wlog_ref[...],
                       preferred_element_type=jnp.float32) + blog_ref[...]


def init_params(key):
    def normal(k, shape):
        return jax.random.normal(k, shape, jnp.float32) * 0.02

    keys = jax.random.split(key, 4 + DEPTH)
    params = {
        'wordemb': normal(keys[0], (VSIZE, CHANNELS)),
        'posemb': normal(keys[1], (MLEN, CHANNELS)),
        'wlogits': normal(keys[2], (CHANNELS, VSIZE)),
        'blogits': jnp.zeros((1, VSIZE), jnp.float32),
        'blocks': [],
    }
    for d in range(DEPTH):
        bk = jax.random.split(keys[4 + d], 6)
        params['blocks'].append({
            'wk': normal(bk[0], (CHANNELS, CHANNELS)),
            'wq': normal(bk[1], (CHANNELS, CHANNELS)),
            'wv': normal(bk[2], (CHANNELS, CHANNELS)),
            'wp': normal(bk[3], (CHANNELS, CHANNELS)),
            'bp': jnp.zeros((1, CHANNELS), jnp.float32),
            'g1': jnp.ones((1, CHANNELS), jnp.float32),
            'b1': jnp.zeros((1, CHANNELS), jnp.float32),
            'g2': jnp.ones((1, CHANNELS), jnp.float32),
            'b2': jnp.zeros((1, CHANNELS), jnp.float32),
            'wf1': normal(bk[4], (CHANNELS, GROWTH * CHANNELS)),
            'bf1': jnp.zeros((1, GROWTH * CHANNELS), jnp.float32),
            'wf2': normal(bk[5], (GROWTH * CHANNELS, CHANNELS)),
            'bf2': jnp.zeros((1, CHANNELS), jnp.float32),
        })
    return params


def pack_params(params):
    """One-time host-side packing of weights for the fused kernel."""
    c, gc, h = CHANNELS, GROWTH * CHANNELS, HEADS
    s = c // h
    scale = 1.0 / math.sqrt(c)        # reference scales scores by 1/sqrt(channels)
    mm = MATMUL_DTYPE
    wqkv, wp, vecs, wf1, wf2 = [], [], [], [], []
    for blk in params['blocks']:
        wqkv.append(jnp.concatenate(
            [blk['wk'], blk['wq'] * scale, blk['wv']], axis=1).astype(mm))
        wp.append(blk['wp'].reshape(h, s, c).astype(mm))      # (h, s, c)
        vv = jnp.zeros((7, gc), jnp.float32)
        vv = vv.at[0, :c].set(blk['bp'][0])
        vv = vv.at[1, :c].set(blk['g1'][0])
        vv = vv.at[2, :c].set(blk['b1'][0])
        vv = vv.at[3, :c].set(blk['g2'][0])
        vv = vv.at[4, :c].set(blk['b2'][0])
        vv = vv.at[5, :c].set(blk['bf2'][0])
        vv = vv.at[6, :].set(blk['bf1'][0])
        vecs.append(vv)
        wf1.append(blk['wf1'].astype(mm))
        wf2.append(blk['wf2'].astype(mm))
    wlog = jnp.zeros((c, LOGITS_PAD), jnp.float32).at[:, :VSIZE].set(
        params['wlogits']).astype(mm)
    blog = jnp.zeros((1, LOGITS_PAD), jnp.float32).at[:, :VSIZE].set(
        params['blogits'])
    return {
        'wordemb': params['wordemb'],     # (v, c)   f32
        'posemb': params['posemb'],       # (m, c)   f32
        'wqkv': jnp.stack(wqkv),          # (D, c, 3c)   bf16  [K | Q*scale | V]
        'wp': jnp.stack(wp),              # (D, h, s, c) bf16
        'vecs': jnp.stack(vecs),          # (D, 7, g*c)  f32
        'wf1': jnp.stack(wf1),            # (D, c, g*c)  bf16
        'wf2': jnp.stack(wf2),            # (D, g*c, c)  bf16
        'wlog': wlog,                     # (c, 128)     bf16 zero-padded
        'blog': blog,                     # (1, 128)     f32  zero-padded
    }


@jax.jit
def transformer_forward(tokens, packed):
    b, t = tokens.shape
    c, gc, h, s = CHANNELS, GROWTH * CHANNELS, HEADS, CHANNELS // HEADS
    tok3 = tokens.astype(jnp.int32)[:, :, None]          # (b, t, 1)
    out = pl.pallas_call(
        fwd_kernel,
        out_shape=jax.ShapeDtypeStruct((b, t, LOGITS_PAD), jnp.float32),
        grid=(b,),
        in_specs=[
            pl.BlockSpec((1, t, 1), lambda i: (i, 0, 0)),            # tokens
            pl.BlockSpec((VSIZE, c), lambda i: (0, 0)),              # wordemb
            pl.BlockSpec((MLEN, c), lambda i: (0, 0)),               # posemb
            pl.BlockSpec((DEPTH, c, 3 * c), lambda i: (0, 0, 0)),    # wqkv
            pl.BlockSpec((DEPTH, h, s, c), lambda i: (0, 0, 0, 0)),  # wp
            pl.BlockSpec((DEPTH, 7, gc), lambda i: (0, 0, 0)),       # vecs
            pl.BlockSpec((DEPTH, c, gc), lambda i: (0, 0, 0)),       # wf1
            pl.BlockSpec((DEPTH, gc, c), lambda i: (0, 0, 0)),       # wf2
            pl.BlockSpec((c, LOGITS_PAD), lambda i: (0, 0)),         # wlog
            pl.BlockSpec((1, LOGITS_PAD), lambda i: (0, 0)),         # blog
        ],
        out_specs=pl.BlockSpec((1, t, LOGITS_PAD), lambda i: (i, 0, 0)),
        compiler_params=pltpu.CompilerParams(
            dimension_semantics=("parallel",),       # v7x: use both TCs
            vmem_limit_bytes=32 * 1024 * 1024,       # fits v7x 64 MiB budget
        ),
    )(tok3, packed['wordemb'], packed['posemb'], packed['wqkv'],
      packed['wp'], packed['vecs'], packed['wf1'], packed['wf2'],
      packed['wlog'], packed['blog'])
    return out[:, :, :VSIZE]
    # TODO(synk): cross-entropy loss path (y is not None) and `generate`
    # (multinomial sampling loop) are not kernelized; only forward logits.


if __name__ == "__main__":
    key = jax.random.PRNGKey(0)
    pkey, tkey = jax.random.split(key)
    params = init_params(pkey)
    packed = pack_params(params)
    tokens = jax.random.randint(tkey, (2, 8), 0, VSIZE, dtype=jnp.int32)
    logits = transformer_forward(tokens, packed)
    jax.block_until_ready(logits)
    assert logits.shape == (2, 8, VSIZE) and logits.dtype == jnp.float32
    print("KERNEL_OK")
</pallas_src>

<mosaic_0001>
module attributes {stable_mosaic.version = 11 : i64} {
  func.func @fwd_kernel(%arg0: i32, %arg1: memref<1x8x1xi32, #tpu.memory_space<vmem>>, %arg2: memref<16x32xf32, #tpu.memory_space<vmem>>, %arg3: memref<16x32xf32, #tpu.memory_space<vmem>>, %arg4: memref<2x32x96xbf16, #tpu.memory_space<vmem>>, %arg5: memref<2x4x8x32xbf16, #tpu.memory_space<vmem>>, %arg6: memref<2x7x64xf32, #tpu.memory_space<vmem>>, %arg7: memref<2x32x64xbf16, #tpu.memory_space<vmem>>, %arg8: memref<2x64x32xbf16, #tpu.memory_space<vmem>>, %arg9: memref<32x128xbf16, #tpu.memory_space<vmem>>, %arg10: memref<1x128xf32, #tpu.memory_space<vmem>>, %arg11: memref<1x8x128xf32, #tpu.memory_space<vmem>>) attributes {dimension_semantics = [#tpu.dimension_semantics<parallel>], iteration_bounds = array<i64: 2>, scalar_prefetch = 0 : i64, scratch_operands = 0 : i64, tpu.core_type = #tpu.core_type<tc>, window_params = [{transform_indices = @transform_0, window_bounds = array<i64: 1, 8, 1>}, {pipeline_mode = #tpu.pipeline_mode<synchronous>, transform_indices = @transform_1, window_bounds = array<i64: 16, 32>}, {pipeline_mode = #tpu.pipeline_mode<synchronous>, transform_indices = @transform_2, window_bounds = array<i64: 16, 32>}, {pipeline_mode = #tpu.pipeline_mode<synchronous>, transform_indices = @transform_3, window_bounds = array<i64: 2, 32, 96>}, {pipeline_mode = #tpu.pipeline_mode<synchronous>, transform_indices = @transform_4, window_bounds = array<i64: 2, 4, 8, 32>}, {pipeline_mode = #tpu.pipeline_mode<synchronous>, transform_indices = @transform_5, window_bounds = array<i64: 2, 7, 64>}, {pipeline_mode = #tpu.pipeline_mode<synchronous>, transform_indices = @transform_6, window_bounds = array<i64: 2, 32, 64>}, {pipeline_mode = #tpu.pipeline_mode<synchronous>, transform_indices = @transform_7, window_bounds = array<i64: 2, 64, 32>}, {pipeline_mode = #tpu.pipeline_mode<synchronous>, transform_indices = @transform_8, window_bounds = array<i64: 32, 128>}, {pipeline_mode = #tpu.pipeline_mode<synchronous>, transform_indices = @transform_9, window_bounds = array<i64: 1, 128>}, {transform_indices = @transform_10, window_bounds = array<i64: 1, 8, 128>}]} {
    %c0 = arith.constant 0 : index
    %c0_0 = arith.constant 0 : index
    %c0_1 = arith.constant 0 : index
    %0 = vector.load %arg1[%c0, %c0_0, %c0_1] : memref<1x8x1xi32, #tpu.memory_space<vmem>>, vector<1x8x1xi32>
    %1 = vector.shape_cast %0 : vector<1x8x1xi32> to vector<8x1xi32>
    %2 = tpu.iota {dimensions = array<i32: 1>} : vector<8x16xi32>
    %3 = vector.broadcast %1 : vector<8x1xi32> to vector<8x16xi32>
    %4 = arith.cmpi eq, %3, %2 : vector<8x16xi32>
    %5 = arith.extui %4 : vector<8x16xi1> to vector<8x16xi32>
    %6 = arith.sitofp %5 : vector<8x16xi32> to vector<8x16xf32>
    %c0_2 = arith.constant 0 : index
    %c0_3 = arith.constant 0 : index
    %7 = vector.load %arg2[%c0_2, %c0_3] : memref<16x32xf32, #tpu.memory_space<vmem>>, vector<16x32xf32>
    %cst = arith.constant dense<0.000000e+00> : vector<8x32xf32>
    %8 = tpu.matmul %6, %7, %cst {dimension_numbers = #tpu.dot_dimension_numbers<[1], [0], [0], [1], [0, 0, 1, 1], [], []>} : vector<8x16xf32>, vector<16x32xf32>, vector<8x32xf32> -> vector<8x32xf32>
    %c0_4 = arith.constant 0 : index
    %c0_5 = arith.constant 0 : index
    %9 = vector.load %arg3[%c0_4, %c0_5] : memref<16x32xf32, #tpu.memory_space<vmem>>, vector<8x32xf32>
    %10 = arith.addf %8, %9 : vector<8x32xf32>
    %11 = tpu.iota {dimensions = array<i32: 0>} : vector<8x8xi32>
    %12 = tpu.iota {dimensions = array<i32: 1>} : vector<8x8xi32>
    %13 = arith.cmpi sle, %12, %11 : vector<8x8xi32>
    %cst_6 = arith.constant 0.000000e+00 : f32
    %cst_7 = arith.constant -1.000000e+30 : f32
    %14 = vector.broadcast %cst_6 : f32 to vector<8x8xf32>
    %15 = vector.broadcast %cst_7 : f32 to vector<8x8xf32>
    %16 = arith.select %13, %14, %15 : vector<8x8xi1>, vector<8x8xf32>
    %17 = vector.shape_cast %16 : vector<8x8xf32> to vector<1x8x8xf32>
    %c0_8 = arith.constant 0 : index
    %c0_9 = arith.constant 0 : index
    %c0_10 = arith.constant 0 : index
    %18 = vector.load %arg6[%c0_8, %c0_9, %c0_10] : memref<2x7x64xf32, #tpu.memory_space<vmem>>, vector<1x7x64xf32>
    %19 = vector.shape_cast %18 : vector<1x7x64xf32> to vector<7x64xf32>
    %20 = vector.extract_strided_slice %19 {offsets = [0, 0], sizes = [1, 32], strides = [1, 1]} : vector<7x64xf32> to vector<1x32xf32>
    %21 = vector.extract_strided_slice %19 {offsets = [1, 0], sizes = [1, 32], strides = [1, 1]} : vector<7x64xf32> to vector<1x32xf32>
    %22 = vector.extract_strided_slice %19 {offsets = [2, 0], sizes = [1, 32], strides = [1, 1]} : vector<7x64xf32> to vector<1x32xf32>
    %23 = vector.extract_strided_slice %19 {offsets = [3, 0], sizes = [1, 32], strides = [1, 1]} : vector<7x64xf32> to vector<1x32xf32>
    %24 = vector.extract_strided_slice %19 {offsets = [4, 0], sizes = [1, 32], strides = [1, 1]} : vector<7x64xf32> to vector<1x32xf32>
    %25 = vector.extract_strided_slice %19 {offsets = [5, 0], sizes = [1, 32], strides = [1, 1]} : vector<7x64xf32> to vector<1x32xf32>
    %26 = vector.extract_strided_slice %19 {offsets = [6, 0], sizes = [1, 64], strides = [1, 1]} : vector<7x64xf32> to vector<1x64xf32>
    %27 = arith.truncf %10 : vector<8x32xf32> to vector<8x32xbf16>
    %c0_11 = arith.constant 0 : index
    %c0_12 = arith.constant 0 : index
    %c0_13 = arith.constant 0 : index
    %28 = vector.load %arg4[%c0_11, %c0_12, %c0_13] : memref<2x32x96xbf16, #tpu.memory_space<vmem>>, vector<1x32x96xbf16>
    %29 = vector.shape_cast %28 : vector<1x32x96xbf16> to vector<32x96xbf16>
    %cst_14 = arith.constant dense<0.000000e+00> : vector<8x96xf32>
    %30 = tpu.matmul %27, %29, %cst_14 {dimension_numbers = #tpu.dot_dimension_numbers<[1], [0], [0], [1], [0, 0, 1, 1], [], []>} : vector<8x32xbf16>, vector<32x96xbf16>, vector<8x96xf32> -> vector<8x96xf32>
    %31 = vector.shape_cast %30 : vector<8x96xf32> to vector<8x12x8xf32>
    %32 = tpu.transpose %31, [1, 0, 2] : vector<8x12x8xf32> -> vector<12x8x8xf32>
    %33 = vector.extract_strided_slice %32 {offsets = [0, 0, 0], sizes = [4, 8, 8], strides = [1, 1, 1]} : vector<12x8x8xf32> to vector<4x8x8xf32>
    %34 = vector.extract_strided_slice %32 {offsets = [4, 0, 0], sizes = [4, 8, 8], strides = [1, 1, 1]} : vector<12x8x8xf32> to vector<4x8x8xf32>
    %35 = vector.extract_strided_slice %32 {offsets = [8, 0, 0], sizes = [4, 8, 8], strides = [1, 1, 1]} : vector<12x8x8xf32> to vector<4x8x8xf32>
    %36 = arith.truncf %34 : vector<4x8x8xf32> to vector<4x8x8xbf16>
    %37 = arith.truncf %33 : vector<4x8x8xf32> to vector<4x8x8xbf16>
    "tpu.trace_start"() <{level = 10 : i32, message = "hqs,hks->hqk"}> : () -> ()
    %cst_15 = arith.constant dense<0.000000e+00> : vector<4x8x8xf32>
    %38 = tpu.matmul %36, %37, %cst_15 {dimension_numbers = #tpu.dot_dimension_numbers<[2], [2], [1], [1], [0, 0, 0, 1, 1, 1], [0], [0]>} : vector<4x8x8xbf16>, vector<4x8x8xbf16>, vector<4x8x8xf32> -> vector<4x8x8xf32>
    "tpu.trace_stop"() : () -> ()
    %39 = vector.broadcast %17 : vector<1x8x8xf32> to vector<4x8x8xf32>
    %40 = arith.addf %38, %39 : vector<4x8x8xf32>
    %cst_16 = arith.constant dense<0xFF800000> : vector<4x8xf32>
    %41 = vector.multi_reduction <maximumf>, %40, %cst_16 [2] : vector<4x8x8xf32> to vector<4x8xf32>
    %42 = vector.shape_cast %41 : vector<4x8xf32> to vector<4x8x1xf32>
    %43 = vector.broadcast %42 : vector<4x8x1xf32> to vector<4x8x8xf32>
    %44 = arith.subf %40, %43 : vector<4x8x8xf32>
    %45 = math.exp %44 : vector<4x8x8xf32>
    %cst_17 = arith.constant dense<0.000000e+00> : vector<4x8xf32>
    %46 = vector.multi_reduction <add>, %45, %cst_17 [2] : vector<4x8x8xf32> to vector<4x8xf32>
    %47 = vector.shape_cast %46 : vector<4x8xf32> to vector<4x8x1xf32>
    %48 = tpu.reciprocal %47 {approx = true} : vector<4x8x1xf32> -> vector<4x8x1xf32>
    %49 = vector.broadcast %48 : vector<4x8x1xf32> to vector<4x8x8xf32>
    %50 = arith.mulf %45, %49 : vector<4x8x8xf32>
    %51 = arith.truncf %50 : vector<4x8x8xf32> to vector<4x8x8xbf16>
    %52 = arith.truncf %35 : vector<4x8x8xf32> to vector<4x8x8xbf16>
    "tpu.trace_start"() <{level = 10 : i32, message = "hqk,hks->hqs"}> : () -> ()
    %cst_18 = arith.constant dense<0.000000e+00> : vector<4x8x8xf32>
    %53 = tpu.matmul %51, %52, %cst_18 {dimension_numbers = #tpu.dot_dimension_numbers<[2], [1], [1], [2], [0, 0, 0, 1, 1, 2], [0], [0]>} : vector<4x8x8xbf16>, vector<4x8x8xbf16>, vector<4x8x8xf32> -> vector<4x8x8xf32>
    "tpu.trace_stop"() : () -> ()
    %54 = arith.truncf %53 : vector<4x8x8xf32> to vector<4x8x8xbf16>
    %c0_19 = arith.constant 0 : index
    %c0_20 = arith.constant 0 : index
    %c0_21 = arith.constant 0 : index
    %c0_22 = arith.constant 0 : index
    %55 = vector.load %arg5[%c0_19, %c0_20, %c0_21, %c0_22] : memref<2x4x8x32xbf16, #tpu.memory_space<vmem>>, vector<1x4x8x32xbf16>
    %56 = vector.shape_cast %55 : vector<1x4x8x32xbf16> to vector<4x8x32xbf16>
    "tpu.trace_start"() <{level = 10 : i32, message = "hqs,hsc->hqc"}> : () -> ()
    %cst_23 = arith.constant dense<0.000000e+00> : vector<4x8x32xf32>
    %57 = tpu.matmul %54, %56, %cst_23 {dimension_numbers = #tpu.dot_dimension_numbers<[2], [1], [1], [2], [0, 0, 0, 1, 1, 2], [0], [0]>} : vector<4x8x8xbf16>, vector<4x8x32xbf16>, vector<4x8x32xf32> -> vector<4x8x32xf32>
    "tpu.trace_stop"() : () -> ()
    %cst_24 = arith.constant dense<0.000000e+00> : vector<8x32xf32>
    %58 = vector.multi_reduction <add>, %57, %cst_24 [0] : vector<4x8x32xf32> to vector<8x32xf32>
    %59 = vector.broadcast %20 : vector<1x32xf32> to vector<8x32xf32>
    %60 = arith.addf %58, %59 : vector<8x32xf32>
    %cst_25 = arith.constant dense<0.000000e+00> : vector<8xf32>
    %61 = vector.multi_reduction <add>, %60, %cst_25 [1] : vector<8x32xf32> to vector<8xf32>
    %62 = vector.shape_cast %61 : vector<8xf32> to vector<8x1xf32>
    %cst_26 = arith.constant 3.200000e+01 : f32
    %63 = vector.broadcast %cst_26 : f32 to vector<8x1xf32>
    %64 = arith.divf %62, %63 : vector<8x1xf32>
    %65 = vector.broadcast %64 : vector<8x1xf32> to vector<8x32xf32>
    %66 = arith.subf %60, %65 : vector<8x32xf32>
    %67 = arith.mulf %66, %66 : vector<8x32xf32>
    %cst_27 = arith.constant dense<0.000000e+00> : vector<8xf32>
    %68 = vector.multi_reduction <add>, %67, %cst_27 [1] : vector<8x32xf32> to vector<8xf32>
    %69 = vector.shape_cast %68 : vector<8xf32> to vector<8x1xf32>
    %cst_28 = arith.constant 3.200000e+01 : f32
    %70 = vector.broadcast %cst_28 : f32 to vector<8x1xf32>
    %71 = arith.divf %69, %70 : vector<8x1xf32>
    %72 = vector.broadcast %64 : vector<8x1xf32> to vector<8x32xf32>
    %73 = arith.subf %60, %72 : vector<8x32xf32>
    %cst_29 = arith.constant 9.99999974E-6 : f32
    %74 = vector.broadcast %cst_29 : f32 to vector<8x1xf32>
    %75 = arith.addf %71, %74 : vector<8x1xf32>
    %76 = math.rsqrt %75 : vector<8x1xf32>
    %77 = vector.broadcast %76 : vector<8x1xf32> to vector<8x32xf32>
    %78 = arith.mulf %73, %77 : vector<8x32xf32>
    %79 = vector.broadcast %21 : vector<1x32xf32> to vector<8x32xf32>
    %80 = arith.mulf %78, %79 : vector<8x32xf32>
    %81 = vector.broadcast %22 : vector<1x32xf32> to vector<8x32xf32>
    %82 = arith.addf %80, %81 : vector<8x32xf32>
    %83 = arith.addf %10, %82 : vector<8x32xf32>
    %84 = arith.truncf %83 : vector<8x32xf32> to vector<8x32xbf16>
    %c0_30 = arith.constant 0 : index
    %c0_31 = arith.constant 0 : index
    %c0_32 = arith.constant 0 : index
    %85 = vector.load %arg7[%c0_30, %c0_31, %c0_32] : memref<2x32x64xbf16, #tpu.memory_space<vmem>>, vector<1x32x64xbf16>
    %86 = vector.shape_cast %85 : vector<1x32x64xbf16> to vector<32x64xbf16>
    %cst_33 = arith.constant dense<0.000000e+00> : vector<8x64xf32>
    %87 = tpu.matmul %84, %86, %cst_33 {dimension_numbers = #tpu.dot_dimension_numbers<[1], [0], [0], [1], [0, 0, 1, 1], [], []>} : vector<8x32xbf16>, vector<32x64xbf16>, vector<8x64xf32> -> vector<8x64xf32>
    %88 = vector.broadcast %26 : vector<1x64xf32> to vector<8x64xf32>
    %89 = arith.addf %87, %88 : vector<8x64xf32>
    %cst_34 = arith.constant 0.000000e+00 : f32
    %90 = vector.broadcast %cst_34 : f32 to vector<8x64xf32>
    %91 = arith.maximumf %89, %90 : vector<8x64xf32>
    %92 = arith.truncf %91 : vector<8x64xf32> to vector<8x64xbf16>
    %c0_35 = arith.constant 0 : index
    %c0_36 = arith.constant 0 : index
    %c0_37 = arith.constant 0 : index
    %93 = vector.load %arg8[%c0_35, %c0_36, %c0_37] : memref<2x64x32xbf16, #tpu.memory_space<vmem>>, vector<1x64x32xbf16>
    %94 = vector.shape_cast %93 : vector<1x64x32xbf16> to vector<64x32xbf16>
    %cst_38 = arith.constant dense<0.000000e+00> : vector<8x32xf32>
    %95 = tpu.matmul %92, %94, %cst_38 {dimension_numbers = #tpu.dot_dimension_numbers<[1], [0], [0], [1], [0, 0, 1, 1], [], []>} : vector<8x64xbf16>, vector<64x32xbf16>, vector<8x32xf32> -> vector<8x32xf32>
    %96 = vector.broadcast %25 : vector<1x32xf32> to vector<8x32xf32>
    %97 = arith.addf %95, %96 : vector<8x32xf32>
    %cst_39 = arith.constant dense<0.000000e+00> : vector<8xf32>
    %98 = vector.multi_reduction <add>, %97, %cst_39 [1] : vector<8x32xf32> to vector<8xf32>
    %99 = vector.shape_cast %98 : vector<8xf32> to vector<8x1xf32>
    %cst_40 = arith.constant 3.200000e+01 : f32
    %100 = vector.broadcast %cst_40 : f32 to vector<8x1xf32>
    %101 = arith.divf %99, %100 : vector<8x1xf32>
    %102 = vector.broadcast %101 : vector<8x1xf32> to vector<8x32xf32>
    %103 = arith.subf %97, %102 : vector<8x32xf32>
    %104 = arith.mulf %103, %103 : vector<8x32xf32>
    %cst_41 = arith.constant dense<0.000000e+00> : vector<8xf32>
    %105 = vector.multi_reduction <add>, %104, %cst_41 [1] : vector<8x32xf32> to vector<8xf32>
    %106 = vector.shape_cast %105 : vector<8xf32> to vector<8x1xf32>
    %cst_42 = arith.constant 3.200000e+01 : f32
    %107 = vector.broadcast %cst_42 : f32 to vector<8x1xf32>
    %108 = arith.divf %106, %107 : vector<8x1xf32>
    %109 = vector.broadcast %101 : vector<8x1xf32> to vector<8x32xf32>
    %110 = arith.subf %97, %109 : vector<8x32xf32>
    %cst_43 = arith.constant 9.99999974E-6 : f32
    %111 = vector.broadcast %cst_43 : f32 to vector<8x1xf32>
    %112 = arith.addf %108, %111 : vector<8x1xf32>
    %113 = math.rsqrt %112 : vector<8x1xf32>
    %114 = vector.broadcast %113 : vector<8x1xf32> to vector<8x32xf32>
    %115 = arith.mulf %110, %114 : vector<8x32xf32>
    %116 = vector.broadcast %23 : vector<1x32xf32> to vector<8x32xf32>
    %117 = arith.mulf %115, %116 : vector<8x32xf32>
    %118 = vector.broadcast %24 : vector<1x32xf32> to vector<8x32xf32>
    %119 = arith.addf %117, %118 : vector<8x32xf32>
    %120 = arith.addf %83, %119 : vector<8x32xf32>
    %c1 = arith.constant 1 : index
    %c0_44 = arith.constant 0 : index
    %c0_45 = arith.constant 0 : index
    %121 = vector.load %arg6[%c1, %c0_44, %c0_45] : memref<2x7x64xf32, #tpu.memory_space<vmem>>, vector<1x7x64xf32>
    %122 = vector.shape_cast %121 : vector<1x7x64xf32> to vector<7x64xf32>
    %123 = vector.extract_strided_slice %122 {offsets = [0, 0], sizes = [1, 32], strides = [1, 1]} : vector<7x64xf32> to vector<1x32xf32>
    %124 = vector.extract_strided_slice %122 {offsets = [1, 0], sizes = [1, 32], strides = [1, 1]} : vector<7x64xf32> to vector<1x32xf32>
    %125 = vector.extract_strided_slice %122 {offsets = [2, 0], sizes = [1, 32], strides = [1, 1]} : vector<7x64xf32> to vector<1x32xf32>
    %126 = vector.extract_strided_slice %122 {offsets = [3, 0], sizes = [1, 32], strides = [1, 1]} : vector<7x64xf32> to vector<1x32xf32>
    %127 = vector.extract_strided_slice %122 {offsets = [4, 0], sizes = [1, 32], strides = [1, 1]} : vector<7x64xf32> to vector<1x32xf32>
    %128 = vector.extract_strided_slice %122 {offsets = [5, 0], sizes = [1, 32], strides = [1, 1]} : vector<7x64xf32> to vector<1x32xf32>
    %129 = vector.extract_strided_slice %122 {offsets = [6, 0], sizes = [1, 64], strides = [1, 1]} : vector<7x64xf32> to vector<1x64xf32>
    %130 = arith.truncf %120 : vector<8x32xf32> to vector<8x32xbf16>
    %c1_46 = arith.constant 1 : index
    %c0_47 = arith.constant 0 : index
    %c0_48 = arith.constant 0 : index
    %131 = vector.load %arg4[%c1_46, %c0_47, %c0_48] : memref<2x32x96xbf16, #tpu.memory_space<vmem>>, vector<1x32x96xbf16>
    %132 = vector.shape_cast %131 : vector<1x32x96xbf16> to vector<32x96xbf16>
    %cst_49 = arith.constant dense<0.000000e+00> : vector<8x96xf32>
    %133 = tpu.matmul %130, %132, %cst_49 {dimension_numbers = #tpu.dot_dimension_numbers<[1], [0], [0], [1], [0, 0, 1, 1], [], []>} : vector<8x32xbf16>, vector<32x96xbf16>, vector<8x96xf32> -> vector<8x96xf32>
    %134 = vector.shape_cast %133 : vector<8x96xf32> to vector<8x12x8xf32>
    %135 = tpu.transpose %134, [1, 0, 2] : vector<8x12x8xf32> -> vector<12x8x8xf32>
    %136 = vector.extract_strided_slice %135 {offsets = [0, 0, 0], sizes = [4, 8, 8], strides = [1, 1, 1]} : vector<12x8x8xf32> to vector<4x8x8xf32>
    %137 = vector.extract_strided_slice %135 {offsets = [4, 0, 0], sizes = [4, 8, 8], strides = [1, 1, 1]} : vector<12x8x8xf32> to vector<4x8x8xf32>
    %138 = vector.extract_strided_slice %135 {offsets = [8, 0, 0], sizes = [4, 8, 8], strides = [1, 1, 1]} : vector<12x8x8xf32> to vector<4x8x8xf32>
    %139 = arith.truncf %137 : vector<4x8x8xf32> to vector<4x8x8xbf16>
    %140 = arith.truncf %136 : vector<4x8x8xf32> to vector<4x8x8xbf16>
    "tpu.trace_start"() <{level = 10 : i32, message = "hqs,hks->hqk"}> : () -> ()
    %cst_50 = arith.constant dense<0.000000e+00> : vector<4x8x8xf32>
    %141 = tpu.matmul %139, %140, %cst_50 {dimension_numbers = #tpu.dot_dimension_numbers<[2], [2], [1], [1], [0, 0, 0, 1, 1, 1], [0], [0]>} : vector<4x8x8xbf16>, vector<4x8x8xbf16>, vector<4x8x8xf32> -> vector<4x8x8xf32>
    "tpu.trace_stop"() : () -> ()
    %142 = vector.broadcast %17 : vector<1x8x8xf32> to vector<4x8x8xf32>
    %143 = arith.addf %141, %142 : vector<4x8x8xf32>
    %cst_51 = arith.constant dense<0xFF800000> : vector<4x8xf32>
    %144 = vector.multi_reduction <maximumf>, %143, %cst_51 [2] : vector<4x8x8xf32> to vector<4x8xf32>
    %145 = vector.shape_cast %144 : vector<4x8xf32> to vector<4x8x1xf32>
    %146 = vector.broadcast %145 : vector<4x8x1xf32> to vector<4x8x8xf32>
    %147 = arith.subf %143, %146 : vector<4x8x8xf32>
    %148 = math.exp %147 : vector<4x8x8xf32>
    %cst_52 = arith.constant dense<0.000000e+00> : vector<4x8xf32>
    %149 = vector.multi_reduction <add>, %148, %cst_52 [2] : vector<4x8x8xf32> to vector<4x8xf32>
    %150 = vector.shape_cast %149 : vector<4x8xf32> to vector<4x8x1xf32>
    %151 = tpu.reciprocal %150 {approx = true} : vector<4x8x1xf32> -> vector<4x8x1xf32>
    %152 = vector.broadcast %151 : vector<4x8x1xf32> to vector<4x8x8xf32>
    %153 = arith.mulf %148, %152 : vector<4x8x8xf32>
    %154 = arith.truncf %153 : vector<4x8x8xf32> to vector<4x8x8xbf16>
    %155 = arith.truncf %138 : vector<4x8x8xf32> to vector<4x8x8xbf16>
    "tpu.trace_start"() <{level = 10 : i32, message = "hqk,hks->hqs"}> : () -> ()
    %cst_53 = arith.constant dense<0.000000e+00> : vector<4x8x8xf32>
    %156 = tpu.matmul %154, %155, %cst_53 {dimension_numbers = #tpu.dot_dimension_numbers<[2], [1], [1], [2], [0, 0, 0, 1, 1, 2], [0], [0]>} : vector<4x8x8xbf16>, vector<4x8x8xbf16>, vector<4x8x8xf32> -> vector<4x8x8xf32>
    "tpu.trace_stop"() : () -> ()
    %157 = arith.truncf %156 : vector<4x8x8xf32> to vector<4x8x8xbf16>
    %c1_54 = arith.constant 1 : index
    %c0_55 = arith.constant 0 : index
    %c0_56 = arith.constant 0 : index
    %c0_57 = arith.constant 0 : index
    %158 = vector.load %arg5[%c1_54, %c0_55, %c0_56, %c0_57] : memref<2x4x8x32xbf16, #tpu.memory_space<vmem>>, vector<1x4x8x32xbf16>
    %159 = vector.shape_cast %158 : vector<1x4x8x32xbf16> to vector<4x8x32xbf16>
    "tpu.trace_start"() <{level = 10 : i32, message = "hqs,hsc->hqc"}> : () -> ()
    %cst_58 = arith.constant dense<0.000000e+00> : vector<4x8x32xf32>
    %160 = tpu.matmul %157, %159, %cst_58 {dimension_numbers = #tpu.dot_dimension_numbers<[2], [1], [1], [2], [0, 0, 0, 1, 1, 2], [0], [0]>} : vector<4x8x8xbf16>, vector<4x8x32xbf16>, vector<4x8x32xf32> -> vector<4x8x32xf32>
    "tpu.trace_stop"() : () -> ()
    %cst_59 = arith.constant dense<0.000000e+00> : vector<8x32xf32>
    %161 = vector.multi_reduction <add>, %160, %cst_59 [0] : vector<4x8x32xf32> to vector<8x32xf32>
    %162 = vector.broadcast %123 : vector<1x32xf32> to vector<8x32xf32>
    %163 = arith.addf %161, %162 : vector<8x32xf32>
    %cst_60 = arith.constant dense<0.000000e+00> : vector<8xf32>
    %164 = vector.multi_reduction <add>, %163, %cst_60 [1] : vector<8x32xf32> to vector<8xf32>
    %165 = vector.shape_cast %164 : vector<8xf32> to vector<8x1xf32>
    %cst_61 = arith.constant 3.200000e+01 : f32
    %166 = vector.broadcast %cst_61 : f32 to vector<8x1xf32>
    %167 = arith.divf %165, %166 : vector<8x1xf32>
    %168 = vector.broadcast %167 : vector<8x1xf32> to vector<8x32xf32>
    %169 = arith.subf %163, %168 : vector<8x32xf32>
    %170 = arith.mulf %169, %169 : vector<8x32xf32>
    %cst_62 = arith.constant dense<0.000000e+00> : vector<8xf32>
    %171 = vector.multi_reduction <add>, %170, %cst_62 [1] : vector<8x32xf32> to vector<8xf32>
    %172 = vector.shape_cast %171 : vector<8xf32> to vector<8x1xf32>
    %cst_63 = arith.constant 3.200000e+01 : f32
    %173 = vector.broadcast %cst_63 : f32 to vector<8x1xf32>
    %174 = arith.divf %172, %173 : vector<8x1xf32>
    %175 = vector.broadcast %167 : vector<8x1xf32> to vector<8x32xf32>
    %176 = arith.subf %163, %175 : vector<8x32xf32>
    %cst_64 = arith.constant 9.99999974E-6 : f32
    %177 = vector.broadcast %cst_64 : f32 to vector<8x1xf32>
    %178 = arith.addf %174, %177 : vector<8x1xf32>
    %179 = math.rsqrt %178 : vector<8x1xf32>
    %180 = vector.broadcast %179 : vector<8x1xf32> to vector<8x32xf32>
    %181 = arith.mulf %176, %180 : vector<8x32xf32>
    %182 = vector.broadcast %124 : vector<1x32xf32> to vector<8x32xf32>
    %183 = arith.mulf %181, %182 : vector<8x32xf32>
    %184 = vector.broadcast %125 : vector<1x32xf32> to vector<8x32xf32>
    %185 = arith.addf %183, %184 : vector<8x32xf32>
    %186 = arith.addf %120, %185 : vector<8x32xf32>
    %187 = arith.truncf %186 : vector<8x32xf32> to vector<8x32xbf16>
    %c1_65 = arith.constant 1 : index
    %c0_66 = arith.constant 0 : index
    %c0_67 = arith.constant 0 : index
    %188 = vector.load %arg7[%c1_65, %c0_66, %c0_67] : memref<2x32x64xbf16, #tpu.memory_space<vmem>>, vector<1x32x64xbf16>
    %189 = vector.shape_cast %188 : vector<1x32x64xbf16> to vector<32x64xbf16>
    %cst_68 = arith.constant dense<0.000000e+00> : vector<8x64xf32>
    %190 = tpu.matmul %187, %189, %cst_68 {dimension_numbers = #tpu.dot_dimension_numbers<[1], [0], [0], [1], [0, 0, 1, 1], [], []>} : vector<8x32xbf16>, vector<32x64xbf16>, vector<8x64xf32> -> vector<8x64xf32>
    %191 = vector.broadcast %129 : vector<1x64xf32> to vector<8x64xf32>
    %192 = arith.addf %190, %191 : vector<8x64xf32>
    %cst_69 = arith.constant 0.000000e+00 : f32
    %193 = vector.broadcast %cst_69 : f32 to vector<8x64xf32>
    %194 = arith.maximumf %192, %193 : vector<8x64xf32>
    %195 = arith.truncf %194 : vector<8x64xf32> to vector<8x64xbf16>
    %c1_70 = arith.constant 1 : index
    %c0_71 = arith.constant 0 : index
    %c0_72 = arith.constant 0 : index
    %196 = vector.load %arg8[%c1_70, %c0_71, %c0_72] : memref<2x64x32xbf16, #tpu.memory_space<vmem>>, vector<1x64x32xbf16>
    %197 = vector.shape_cast %196 : vector<1x64x32xbf16> to vector<64x32xbf16>
    %cst_73 = arith.constant dense<0.000000e+00> : vector<8x32xf32>
    %198 = tpu.matmul %195, %197, %cst_73 {dimension_numbers = #tpu.dot_dimension_numbers<[1], [0], [0], [1], [0, 0, 1, 1], [], []>} : vector<8x64xbf16>, vector<64x32xbf16>, vector<8x32xf32> -> vector<8x32xf32>
    %199 = vector.broadcast %128 : vector<1x32xf32> to vector<8x32xf32>
    %200 = arith.addf %198, %199 : vector<8x32xf32>
    %cst_74 = arith.constant dense<0.000000e+00> : vector<8xf32>
    %201 = vector.multi_reduction <add>, %200, %cst_74 [1] : vector<8x32xf32> to vector<8xf32>
    %202 = vector.shape_cast %201 : vector<8xf32> to vector<8x1xf32>
    %cst_75 = arith.constant 3.200000e+01 : f32
    %203 = vector.broadcast %cst_75 : f32 to vector<8x1xf32>
    %204 = arith.divf %202, %203 : vector<8x1xf32>
    %205 = vector.broadcast %204 : vector<8x1xf32> to vector<8x32xf32>
    %206 = arith.subf %200, %205 : vector<8x32xf32>
    %207 = arith.mulf %206, %206 : vector<8x32xf32>
    %cst_76 = arith.constant dense<0.000000e+00> : vector<8xf32>
    %208 = vector.multi_reduction <add>, %207, %cst_76 [1] : vector<8x32xf32> to vector<8xf32>
    %209 = vector.shape_cast %208 : vector<8xf32> to vector<8x1xf32>
    %cst_77 = arith.constant 3.200000e+01 : f32
    %210 = vector.broadcast %cst_77 : f32 to vector<8x1xf32>
    %211 = arith.divf %209, %210 : vector<8x1xf32>
    %212 = vector.broadcast %204 : vector<8x1xf32> to vector<8x32xf32>
    %213 = arith.subf %200, %212 : vector<8x32xf32>
    %cst_78 = arith.constant 9.99999974E-6 : f32
    %214 = vector.broadcast %cst_78 : f32 to vector<8x1xf32>
    %215 = arith.addf %211, %214 : vector<8x1xf32>
    %216 = math.rsqrt %215 : vector<8x1xf32>
    %217 = vector.broadcast %216 : vector<8x1xf32> to vector<8x32xf32>
    %218 = arith.mulf %213, %217 : vector<8x32xf32>
    %219 = vector.broadcast %126 : vector<1x32xf32> to vector<8x32xf32>
    %220 = arith.mulf %218, %219 : vector<8x32xf32>
    %221 = vector.broadcast %127 : vector<1x32xf32> to vector<8x32xf32>
    %222 = arith.addf %220, %221 : vector<8x32xf32>
    %223 = arith.addf %186, %222 : vector<8x32xf32>
    %224 = arith.truncf %223 : vector<8x32xf32> to vector<8x32xbf16>
    %c0_79 = arith.constant 0 : index
    %c0_80 = arith.constant 0 : index
    %225 = vector.load %arg9[%c0_79, %c0_80] : memref<32x128xbf16, #tpu.memory_space<vmem>>, vector<32x128xbf16>
    %cst_81 = arith.constant dense<0.000000e+00> : vector<8x128xf32>
    %226 = tpu.matmul %224, %225, %cst_81 {dimension_numbers = #tpu.dot_dimension_numbers<[1], [0], [0], [1], [0, 0, 1, 1], [], []>} : vector<8x32xbf16>, vector<32x128xbf16>, vector<8x128xf32> -> vector<8x128xf32>
    %c0_82 = arith.constant 0 : index
    %c0_83 = arith.constant 0 : index
    %227 = vector.load %arg10[%c0_82, %c0_83] : memref<1x128xf32, #tpu.memory_space<vmem>>, vector<1x128xf32>
    %228 = vector.broadcast %227 : vector<1x128xf32> to vector<8x128xf32>
    %229 = arith.addf %226, %228 : vector<8x128xf32>
    %c0_84 = arith.constant 0 : index
    %c0_85 = arith.constant 0 : index
    %c0_86 = arith.constant 0 : index
    %230 = vector.load %arg11[%c0_84, %c0_85, %c0_86] : memref<1x8x128xf32, #tpu.memory_space<vmem>>, vector<1x8x128xf32>
    %231 = vector.shape_cast %230 : vector<1x8x128xf32> to vector<8x128xf32>
    %232 = vector.shape_cast %229 : vector<8x128xf32> to vector<1x8x128xf32>
    tpu.vector_store %arg11[%c0_84, %c0_85, %c0_86], %232 {strides = array<i32>} : memref<1x8x128xf32, #tpu.memory_space<vmem>>, vector<1x8x128xf32>,
    return
  }
  func.func @transform_0(%arg0: i32) -> (i32, i32, i32) {
    %c0_i32 = arith.constant 0 : i32
    %c0_i32_0 = arith.constant 0 : i32
    %c0_i32_1 = arith.constant 0 : i32
    return %arg0, %c0_i32, %c0_i32_0 : i32, i32, i32
  }
  func.func @transform_1(%arg0: i32) -> (i32, i32) {
    %c0_i32 = arith.constant 0 : i32
    %c0_i32_0 = arith.constant 0 : i32
    %c0_i32_1 = arith.constant 0 : i32
    return %c0_i32, %c0_i32_0 : i32, i32
  }
  func.func @transform_2(%arg0: i32) -> (i32, i32) {
    %c0_i32 = arith.constant 0 : i32
    %c0_i32_0 = arith.constant 0 : i32
    %c0_i32_1 = arith.constant 0 : i32
    return %c0_i32, %c0_i32_0 : i32, i32
  }
  func.func @transform_3(%arg0: i32) -> (i32, i32, i32) {
    %c0_i32 = arith.constant 0 : i32
    %c0_i32_0 = arith.constant 0 : i32
    %c0_i32_1 = arith.constant 0 : i32
    %c0_i32_2 = arith.constant 0 : i32
    return %c0_i32, %c0_i32_0, %c0_i32_1 : i32, i32, i32
  }
  func.func @transform_4(%arg0: i32) -> (i32, i32, i32, i32) {
    %c0_i32 = arith.constant 0 : i32
    %c0_i32_0 = arith.constant 0 : i32
    %c0_i32_1 = arith.constant 0 : i32
    %c0_i32_2 = arith.constant 0 : i32
    %c0_i32_3 = arith.constant 0 : i32
    return %c0_i32, %c0_i32_0, %c0_i32_1, %c0_i32_2 : i32, i32, i32, i32
  }
  func.func @transform_5(%arg0: i32) -> (i32, i32, i32) {
    %c0_i32 = arith.constant 0 : i32
    %c0_i32_0 = arith.constant 0 : i32
    %c0_i32_1 = arith.constant 0 : i32
    %c0_i32_2 = arith.constant 0 : i32
    return %c0_i32, %c0_i32_0, %c0_i32_1 : i32, i32, i32
  }
  func.func @transform_6(%arg0: i32) -> (i32, i32, i32) {
    %c0_i32 = arith.constant 0 : i32
    %c0_i32_0 = arith.constant 0 : i32
    %c0_i32_1 = arith.constant 0 : i32
    %c0_i32_2 = arith.constant 0 : i32
    return %c0_i32, %c0_i32_0, %c0_i32_1 : i32, i32, i32
  }
  func.func @transform_7(%arg0: i32) -> (i32, i32, i32) {
    %c0_i32 = arith.constant 0 : i32
    %c0_i32_0 = arith.constant 0 : i32
    %c0_i32_1 = arith.constant 0 : i32
    %c0_i32_2 = arith.constant 0 : i32
    return %c0_i32, %c0_i32_0, %c0_i32_1 : i32, i32, i32
  }
  func.func @transform_8(%arg0: i32) -> (i32, i32) {
    %c0_i32 = arith.constant 0 : i32
    %c0_i32_0 = arith.constant 0 : i32
    %c0_i32_1 = arith.constant 0 : i32
    return %c0_i32, %c0_i32_0 : i32, i32
  }
  func.func @transform_9(%arg0: i32) -> (i32, i32) {
    %c0_i32 = arith.constant 0 : i32
    %c0_i32_0 = arith.constant 0 : i32
    %c0_i32_1 = arith.constant 0 : i32
    return %c0_i32, %c0_i32_0 : i32, i32
  }
  func.func @transform_10(%arg0: i32) -> (i32, i32, i32) {
    %c0_i32 = arith.constant 0 : i32
    %c0_i32_0 = arith.constant 0 : i32
    %c0_i32_1 = arith.constant 0 : i32
    return %arg0, %c0_i32, %c0_i32_0 : i32, i32, i32
  }
}

</mosaic_0001>

<llo_original>
// kernel: transformer_forward.1
$region0: #{transformer_forward.1}
  #allocation0 [shape = 'u32[]', space=smem, size = 0x4, offset = 0x4, fixed_abs, tag = 'smem constant byte address 0x4 - core index']
  #allocation1 [shape = 'u32[144,128]{1,0:T(1,128)}', space=vmem, size = 0x12000, scoped, tag = 'internal scratch']
  %s0 = inlined_call_operand.vmem [shape: s32[2,8,1], index: 0, kind: input, shape index: {}]
  %s1 = inlined_call_operand.vmem [shape: f32[16,32], index: 1, kind: input, shape index: {}]
  %s2 = inlined_call_operand.hbm [shape: f32[16,32], index: 2, kind: input, shape index: {}]
  %s3 = inlined_call_operand.vmem [shape: bf16[2,32,96], index: 3, kind: input, shape index: {}]
  %s4 = inlined_call_operand.vmem [shape: bf16[2,4,8,32], index: 4, kind: input, shape index: {}]
  %s5 = inlined_call_operand.vmem [shape: f32[2,7,64], index: 5, kind: input, shape index: {}]
  %s6 = inlined_call_operand.vmem [shape: bf16[2,32,64], index: 6, kind: input, shape index: {}]
  %s7 = inlined_call_operand.vmem [shape: bf16[2,64,32], index: 7, kind: input, shape index: {}]
  %s8 = inlined_call_operand.vmem [shape: bf16[32,128], index: 8, kind: input, shape index: {}]
  %s9 = inlined_call_operand.vmem [shape: f32[1,128], index: 9, kind: input, shape index: {}]
  %s10 = inlined_call_operand.hbm [shape: f32[2,8,128], index: 10, kind: output, shape index: {}]
  %s11 = sld [smem:[#allocation0]]
  $region77: #{transformer_forward.1} parent=0
    _
  %s13 = ssub.s32 1, %s11
  %s14 = scalar_select 0, %s13, %s11
  $region1: #{transformer_forward.1} parent=0
    #allocation2 [shape = 'u8[8192]{0}', space=vmem, size = 0x2000, scoped, tag = 'input window, operand 2, single buffered']
    #allocation3 [shape = 's32[2]{0}', space=sflag, size = 0x8, scoped, tag = 'scoped memory for transformer_forward.1']
    #allocation4 [shape = 's32[2]{0}', space=sflag, size = 0x8, scoped, tag = 'scoped memory for transformer_forward.1']
    #allocation5 [shape = 'u8[8192]{0}', space=vmem, size = 0x2000, scoped, tag = 'output window, operand 0']
    %15 = vsyncpa [#allocation3], 0
    %16 = vsyncpa [#allocation4], 0
    %s17 = scalar_lea.sflag [#allocation4], 1
    %18 = vsyncpa %s17, 0
    loop: start=0, step=1, limit=4
    $region2: #{transformer_forward.1} parent=1 // loop_pre_header
      _
    $region3: #{transformer_forward.1} parent=1 // loop_header
      %s20 = sphi 0, %s24
      %p21 = scmp.ge.s32.totalorder %s20, 4
      %s30 = sphi 0, %s32
      %s33 = sphi 0, %s30
      %s34 = sphi 0, %s33
      %s50 = sphi 0, %s34
      %s54 = sphi 0, %s54
      %s56 = sphi 0, %s54
      %s57 = sphi 0, %s56
      %s71 = sphi 0, %s57
      %s75 = sphi 0, %s75
      %s77 = sphi 0, %s75
      %s78 = sphi 0, %s77
      %s92 = sphi 0, %s78
      %s96 = sphi 0, %s96
      %s98 = sphi 0, %s96
      %s99 = sphi 0, %s98
      %s113 = sphi 0, %s99
      %s117 = sphi 0, %s117
      %s119 = sphi 0, %s117
      %s120 = sphi 0, %s119
      %s134 = sphi 0, %s120
      %s138 = sphi 0, %s138
      %s140 = sphi 0, %s138
      %s141 = sphi 0, %s140
      %s155 = sphi 0, %s141
      %s159 = sphi 0, %s159
      %s161 = sphi 0, %s159
      %s162 = sphi 0, %s161
      %s176 = sphi 0, %s162
      %s180 = sphi 0, %s180
      %s182 = sphi 0, %s180
      %s183 = sphi 0, %s182
      %s197 = sphi 0, %s183
      %s201 = sphi 0, %s201
      %s203 = sphi 0, %s201
      %s204 = sphi 0, %s203
      %s218 = sphi 0, %s204
      %s222 = sphi 0, %s222
      %s224 = sphi 0, %s222
      %s225 = sphi 0, %s224
      %s239 = sphi 0, %s225
      %s245 = sphi 0, %s247
      %s248 = sphi 0, %s245
      %s249 = sphi 0, %s248
      %s265 = sphi 0, %s249
    $region4: #{transformer_forward.1} parent=1 // loop_header_branch
      %23 = sbr.rel (%p21) target = $region8
    $region5: #{transformer_forward.1} parent=1 // loop_body
      %s25 = ssub.s32 %s20, 1
      %s26 = ssub.s32 %s20, 2
      %s27 = sadd.s32 %s20, 1
      %s28 = ssub.s32 %s20, %s27
      %p29 = scmp.eq.s32.totalorder %s28, 0
      %s31 = sadd.s32 %s30, 1
      %s32 = scalar_select %p29, %s30, %s31
      %p35 = pneg %p29
      %p36 = scmp.eq.s32.totalorder %s20, 1
      %p37 = por %p35, %p36
      %p38 = scmp.ne.s32.totalorder %s30, %s33
      %p39 = scmp.eq.s32.totalorder %s20, 0
      %p40 = por %p38, %p39
      %p41 = scmp.ne.s32.totalorder %s30, %s33
      %p42 = scmp.eq.s32.totalorder %s25, 1
      %p43 = por %p41, %p42
      %p44 = scmp.ne.s32.totalorder %s33, %s34
      %p45 = scmp.eq.s32.totalorder %s25, 0
      %p46 = por %p44, %p45
      %p47 = scmp.ne.s32.totalorder %s33, %s34
      %p48 = scmp.eq.s32.totalorder %s26, 1
      %p49 = por %p47, %p48
      %p51 = scmp.ne.s32.totalorder %s34, %s50
      %p52 = scmp.eq.s32.totalorder %s26, 0
      %p53 = por %p51, %p52
      %s55 = sadd.s32 %s54, 1
      %p58 = scmp.eq.s32.totalorder %s20, 1
      %p59 = scmp.ne.s32.totalorder %s54, %s56
      %p60 = scmp.eq.s32.totalorder %s20, 0
      %p61 = por %p59, %p60
      %p62 = scmp.ne.s32.totalorder %s54, %s56
      %p63 = scmp.eq.s32.totalorder %s25, 1
      %p64 = por %p62, %p63
      %p65 = scmp.ne.s32.totalorder %s56, %s57
      %p66 = scmp.eq.s32.totalorder %s25, 0
      %p67 = por %p65, %p66
      %p68 = scmp.ne.s32.totalorder %s56, %s57
      %p69 = scmp.eq.s32.totalorder %s26, 1
      %p70 = por %p68, %p69
      %p72 = scmp.ne.s32.totalorder %s57, %s71
      %p73 = scmp.eq.s32.totalorder %s26, 0
      %p74 = por %p72, %p73
      %s76 = sadd.s32 %s75, 1
      %p79 = scmp.eq.s32.totalorder %s20, 1
      %p80 = scmp.ne.s32.totalorder %s75, %s77
      %p81 = scmp.eq.s32.totalorder %s20, 0
      %p82 = por %p80, %p81
      %p83 = scmp.ne.s32.totalorder %s75, %s77
      %p84 = scmp.eq.s32.totalorder %s25, 1
      %p85 = por %p83, %p84
      %p86 = scmp.ne.s32.totalorder %s77, %s78
      %p87 = scmp.eq.s32.totalorder %s25, 0
      %p88 = por %p86, %p87
      %p89 = scmp.ne.s32.totalorder %s77, %s78
      %p90 = scmp.eq.s32.totalorder %s26, 1
      %p91 = por %p89, %p90
      %p93 = scmp.ne.s32.totalorder %s78, %s92
      %p94 = scmp.eq.s32.totalorder %s26, 0
      %p95 = por %p93, %p94
      %s97 = sadd.s32 %s96, 1
      %p100 = scmp.eq.s32.totalorder %s20, 1
      %p101 = scmp.ne.s32.totalorder %s96, %s98
      %p102 = scmp.eq.s32.totalorder %s20, 0
      %p103 = por %p101, %p102
      %p104 = scmp.ne.s32.totalorder %s96, %s98
      %p105 = scmp.eq.s32.totalorder %s25, 1
      %p106 = por %p104, %p105
      %p107 = scmp.ne.s32.totalorder %s98, %s99
      %p108 = scmp.eq.s32.totalorder %s25, 0
      %p109 = por %p107, %p108
      %p110 = scmp.ne.s32.totalorder %s98, %s99
      %p111 = scmp.eq.s32.totalorder %s26, 1
      %p112 = por %p110, %p111
      %p114 = scmp.ne.s32.totalorder %s99, %s113
      %p115 = scmp.eq.s32.totalorder %s26, 0
      %p116 = por %p114, %p115
      %s118 = sadd.s32 %s117, 1
      %p121 = scmp.eq.s32.totalorder %s20, 1
      %p122 = scmp.ne.s32.totalorder %s117, %s119
      %p123 = scmp.eq.s32.totalorder %s20, 0
      %p124 = por %p122, %p123
      %p125 = scmp.ne.s32.totalorder %s117, %s119
      %p126 = scmp.eq.s32.totalorder %s25, 1
      %p127 = por %p125, %p126
      %p128 = scmp.ne.s32.totalorder %s119, %s120
      %p129 = scmp.eq.s32.totalorder %s25, 0
      %p130 = por %p128, %p129
      %p131 = scmp.ne.s32.totalorder %s119, %s120
      %p132 = scmp.eq.s32.totalorder %s26, 1
      %p133 = por %p131, %p132
      %p135 = scmp.ne.s32.totalorder %s120, %s134
      %p136 = scmp.eq.s32.totalorder %s26, 0
      %p137 = por %p135, %p136
      %s139 = sadd.s32 %s138, 1
      %p142 = scmp.eq.s32.totalorder %s20, 1
      %p143 = scmp.ne.s32.totalorder %s138, %s140
      %p144 = scmp.eq.s32.totalorder %s20, 0
      %p145 = por %p143, %p144
      %p146 = scmp.ne.s32.totalorder %s138, %s140
      %p147 = scmp.eq.s32.totalorder %s25, 1
      %p148 = por %p146, %p147
      %p149 = scmp.ne.s32.totalorder %s140, %s141
      %p150 = scmp.eq.s32.totalorder %s25, 0
      %p151 = por %p149, %p150
      %p152 = scmp.ne.s32.totalorder %s140, %s141
      %p153 = scmp.eq.s32.totalorder %s26, 1
      %p154 = por %p152, %p153
      %p156 = scmp.ne.s32.totalorder %s141, %s155
      %p157 = scmp.eq.s32.totalorder %s26, 0
      %p158 = por %p156, %p157
      %s160 = sadd.s32 %s159, 1
      %p163 = scmp.eq.s32.totalorder %s20, 1
      %p164 = scmp.ne.s32.totalorder %s159, %s161
      %p165 = scmp.eq.s32.totalorder %s20, 0
      %p166 = por %p164, %p165
      %p167 = scmp.ne.s32.totalorder %s159, %s161
      %p168 = scmp.eq.s32.totalorder %s25, 1
      %p169 = por %p167, %p168
      %p170 = scmp.ne.s32.totalorder %s161, %s162
      %p171 = scmp.eq.s32.totalorder %s25, 0
      %p172 = por %p170, %p171
      %p173 = scmp.ne.s32.totalorder %s161, %s162
      %p174 = scmp.eq.s32.totalorder %s26, 1
      %p175 = por %p173, %p174
      %p177 = scmp.ne.s32.totalorder %s162, %s176
      %p178 = scmp.eq.s32.totalorder %s26, 0
      %p179 = por %p177, %p178
      %s181 = sadd.s32 %s180, 1
      %p184 = scmp.eq.s32.totalorder %s20, 1
      %p185 = scmp.ne.s32.totalorder %s180, %s182
      %p186 = scmp.eq.s32.totalorder %s20, 0
      %p187 = por %p185, %p186
      %p188 = scmp.ne.s32.totalorder %s180, %s182
      %p189 = scmp.eq.s32.totalorder %s25, 1
      %p190 = por %p188, %p189
      %p191 = scmp.ne.s32.totalorder %s182, %s183
      %p192 = scmp.eq.s32.totalorder %s25, 0
      %p193 = por %p191, %p192
      %p194 = scmp.ne.s32.totalorder %s182, %s183
      %p195 = scmp.eq.s32.totalorder %s26, 1
      %p196 = por %p194, %p195
      %p198 = scmp.ne.s32.totalorder %s183, %s197
      %p199 = scmp.eq.s32.totalorder %s26, 0
      %p200 = por %p198, %p199
      %s202 = sadd.s32 %s201, 1
      %p205 = scmp.eq.s32.totalorder %s20, 1
      %p206 = scmp.ne.s32.totalorder %s201, %s203
      %p207 = scmp.eq.s32.totalorder %s20, 0
      %p208 = por %p206, %p207
      %p209 = scmp.ne.s32.totalorder %s201, %s203
      %p210 = scmp.eq.s32.totalorder %s25, 1
      %p211 = por %p209, %p210
      %p212 = scmp.ne.s32.totalorder %s203, %s204
      %p213 = scmp.eq.s32.totalorder %s25, 0
      %p214 = por %p212, %p213
      %p215 = scmp.ne.s32.totalorder %s203, %s204
      %p216 = scmp.eq.s32.totalorder %s26, 1
      %p217 = por %p215, %p216
      %p219 = scmp.ne.s32.totalorder %s204, %s218
      %p220 = scmp.eq.s32.totalorder %s26, 0
      %p221 = por %p219, %p220
      %s223 = sadd.s32 %s222, 1
      %p226 = scmp.eq.s32.totalorder %s20, 1
      %p227 = scmp.ne.s32.totalorder %s222, %s224
      %p228 = scmp.eq.s32.totalorder %s20, 0
      %p229 = por %p227, %p228
      %p230 = scmp.ne.s32.totalorder %s222, %s224
      %p231 = scmp.eq.s32.totalorder %s25, 1
      %p232 = por %p230, %p231
      %p233 = scmp.ne.s32.totalorder %s224, %s225
      %p234 = scmp.eq.s32.totalorder %s25, 0
      %p235 = por %p233, %p234
      %p236 = scmp.ne.s32.totalorder %s224, %s225
      %p237 = scmp.eq.s32.totalorder %s26, 1
      %p238 = por %p236, %p237
      %p240 = scmp.ne.s32.totalorder %s225, %s239
      %p241 = scmp.eq.s32.totalorder %s26, 0
      %p242 = por %p240, %p241
      %s243 = ssub.s32 %s20, %s27
      %p244 = scmp.eq.s32.totalorder %s243, 0
      %s246 = sadd.s32 %s245, 1
      %s247 = scalar_select %p244, %s245, %s246
      %p250 = pneg %p244
      %p251 = scmp.eq.s32.totalorder %s20, 1
      %p252 = por %p250, %p251
      %p253 = scmp.ne.s32.totalorder %s245, %s248
      %p254 = scmp.eq.s32.totalorder %s20, 0
      %p255 = por %p253, %p254
      %p256 = scmp.ne.s32.totalorder %s245, %s248
      %p257 = scmp.eq.s32.totalorder %s25, 1
      %p258 = por %p256, %p257
      %p259 = scmp.ne.s32.totalorder %s248, %s249
      %p260 = scmp.eq.s32.totalorder %s25, 0
      %p261 = por %p259, %p260
      %p262 = scmp.ne.s32.totalorder %s248, %s249
      %p263 = scmp.eq.s32.totalorder %s26, 1
      %p264 = por %p262, %p263
      %p266 = scmp.ne.s32.totalorder %s249, %s265
      %p267 = scmp.eq.s32.totalorder %s26, 0
      %p268 = por %p266, %p267
      %p269 = scmp.le.s32.totalorder 1, %s20
      %p270 = scmp.lt.s32.totalorder %s20, 3
      %p271 = pnand %p269, %p270
      %p272 = pneg %p271
      // Predicated region
      $region9: #{transformer_forward.1} parent=5 // pred_check
        _
      $region10: #{transformer_forward.1} parent=5 // pred_check_branch
        %274 = sbr.rel (%p271) target = $region12
      $region11: #{transformer_forward.1} parent=5 // pred_region
        %s275 = ssub.s32 %s20, 1
        // Predicated region
        $region13: #{transformer_forward.1} parent=11 // pred_check
          %p276 = pneg %p67
        $region14: #{transformer_forward.1} parent=11 // pred_check_branch
          %278 = sbr.rel (%p276) target = $region16
        $region15: #{transformer_forward.1} parent=11 // pred_region
          _
        $region16: #{transformer_forward.1} parent=11 // pred_fallthru
          _
        // Predicated region
        $region17: #{transformer_forward.1} parent=11 // pred_check
          %p279 = pneg %p88
        $region18: #{transformer_forward.1} parent=11 // pred_check_branch
          %281 = sbr.rel (%p279) target = $region20
        $region19: #{transformer_forward.1} parent=11 // pred_region
          %s283 = ssub.s32 256, 256
          %284 = vsyncadd [#allocation3], %s283
          %s285 = sshll.u32 [#allocation2], 4
          %s286 = int_to_ptr.vmem [resolvable:$true] %s285
          %291 = dma.hbm_to_vmem [thread:$0]  %s2, 256, %s286, [#allocation3], 128, 128, 8
        $region20: #{transformer_forward.1} parent=11 // pred_fallthru
          _
        // Predicated region
        $region21: #{transformer_forward.1} parent=11 // pred_check
          %p292 = pneg %p109
        $region22: #{transformer_forward.1} parent=11 // pred_check_branch
          %294 = sbr.rel (%p292) target = $region24
        $region23: #{transformer_forward.1} parent=11 // pred_region
          _
        $region24: #{transformer_forward.1} parent=11 // pred_fallthru
          _
        // Predicated region
        $region25: #{transformer_forward.1} parent=11 // pred_check
          %p295 = pneg %p130
        $region26: #{transformer_forward.1} parent=11 // pred_check_branch
          %297 = sbr.rel (%p295) target = $region28
        $region27: #{transformer_forward.1} parent=11 // pred_region
          _
        $region28: #{transformer_forward.1} parent=11 // pred_fallthru
          _
        // Predicated region
        $region29: #{transformer_forward.1} parent=11 // pred_check
          %p298 = pneg %p151
        $region30: #{transformer_forward.1} parent=11 // pred_check_branch
          %300 = sbr.rel (%p298) target = $region32
        $region31: #{transformer_forward.1} parent=11 // pred_region
          _
        $region32: #{transformer_forward.1} parent=11 // pred_fallthru
          _
        // Predicated region
        $region33: #{transformer_forward.1} parent=11 // pred_check
          %p301 = pneg %p172
        $region34: #{transformer_forward.1} parent=11 // pred_check_branch
          %303 = sbr.rel (%p301) target = $region36
        $region35: #{transformer_forward.1} parent=11 // pred_region
          _
        $region36: #{transformer_forward.1} parent=11 // pred_fallthru
          _
        // Predicated region
        $region37: #{transformer_forward.1} parent=11 // pred_check
          %p304 = pneg %p193
        $region38: #{transformer_forward.1} parent=11 // pred_check_branch
          %306 = sbr.rel (%p304) target = $region40
        $region39: #{transformer_forward.1} parent=11 // pred_region
          _
        $region40: #{transformer_forward.1} parent=11 // pred_fallthru
          _
        // Predicated region
        $region41: #{transformer_forward.1} parent=11 // pred_check
          %p307 = pneg %p214
        $region42: #{transformer_forward.1} parent=11 // pred_check_branch
          %309 = sbr.rel (%p307) target = $region44
        $region43: #{transformer_forward.1} parent=11 // pred_region
          _
        $region44: #{transformer_forward.1} parent=11 // pred_fallthru
          _
        // Predicated region
        $region45: #{transformer_forward.1} parent=11 // pred_check
          %p310 = pneg %p235
        $region46: #{transformer_forward.1} parent=11 // pred_check_branch
          %312 = sbr.rel (%p310) target = $region48
        $region47: #{transformer_forward.1} parent=11 // pred_region
          _
        $region48: #{transformer_forward.1} parent=11 // pred_fallthru
          _
      $region12: #{transformer_forward.1} parent=5 // pred_fallthru
        _
      %p313 = scmp.lt.s32.totalorder %s20, 2
      // Predicated region
      $region49: #{transformer_forward.1} parent=5 // pred_check
        %p314 = pneg %p313
      $region50: #{transformer_forward.1} parent=5 // pred_check_branch
        %316 = sbr.rel (%p314) target = $region52
      $region51: #{transformer_forward.1} parent=5 // pred_region
        // Predicated region
        $region53: #{transformer_forward.1} parent=51 // pred_check
          %p317 = pneg %p40
        $region54: #{transformer_forward.1} parent=51 // pred_check_branch
          %319 = sbr.rel (%p317) target = $region56
        $region55: #{transformer_forward.1} parent=51 // pred_region
          %p320 = scmp.lt.s32.totalorder %s20, 1
          %s321 = scalar_select %p320, %s20, 1
          %s322 = smul.addr %s321, 8
          %s323 = scalar_lea.vmem %s0, %s322
        $region56: #{transformer_forward.1} parent=51 // pred_fallthru
          _
      $region52: #{transformer_forward.1} parent=5 // pred_fallthru
        _
      %p324 = scmp.le.s32.totalorder 1, %s20
      %p325 = scmp.lt.s32.totalorder %s20, 3
      %p326 = pnand %p324, %p325
      %p327 = pneg %p326
      // Predicated region
      $region57: #{transformer_forward.1} parent=5 // pred_check
        _
      $region58: #{transformer_forward.1} parent=5 // pred_check_branch
        %329 = sbr.rel (%p326) target = $region60
      $region59: #{transformer_forward.1} parent=5 // pred_region
        %s330 = ssub.s32 %s20, 1
        // Predicated region
        $region61: #{transformer_forward.1} parent=59 // pred_check
          %p331 = pneg %p88
        $region62: #{transformer_forward.1} parent=59 // pred_check_branch
          %333 = sbr.rel (%p331) target = $region64
        $region63: #{transformer_forward.1} parent=59 // pred_region
          %334 = dma.done [#allocation3], 256
        $region64: #{transformer_forward.1} parent=59 // pred_fallthru
          _
        %p335 = scmp.lt.s32.totalorder %s25, 1
        %s336 = scalar_select %p335, %s25, 1
        %s337 = smul.addr %s336, 8
        %s338 = scalar_lea.vmem %s0, %s337
        %p339 = pneg %p46
        %p340 = pneg %p43
        %p341 = pneg %p67
        %p342 = pneg %p64
        %p343 = pneg %p88
        %p344 = pneg %p85
        %p345 = pneg %p109
        %p346 = pneg %p106
        %p347 = pneg %p130
        %p348 = pneg %p127
        %p349 = pneg %p151
        %p350 = pneg %p148
        %p351 = pneg %p172
        %p352 = pneg %p169
        %p353 = pneg %p193
        %p354 = pneg %p190
        %p355 = pneg %p214
        %p356 = pneg %p211
        %p357 = pneg %p235
        %p358 = pneg %p232
        %p359 = pneg %p261
        %p360 = pneg %p258
        %s361 = sand.u32 %s248, 1
        %s362 = scalar_lea.sflag [#allocation4], %s361
        %s363 = sand.u32 %s248, 1
        %s364 = smul.addr %s363, 8
        %s365 = scalar_lea.vmem [#allocation5], %s364
        %p366 = scmp.lt.s32.totalorder %s25, 1
        %s367 = scalar_select %p366, %s25, 1
        %s368 = smul.addr %s367, 8
        %s369 = scalar_lea.vmem %s0, %s368
        %v371 = vld [vmem:[%s369] sm:$0xff]
        %v372 = vlaneseq
        %v373 = vand.u32 %v372, 127
        %374 = vset.pattern.permute.xlu0 0
        %375 = vperm.xlu0 %374, %v371
        %v376 = vpop.permute.xlu0 %375
        %vm377 = vcmp.eq.s32.totalorder %v376, %v373
        %v378 = vsel %vm377, 1, 0
        %v379 = vcvt.s32.f32 %v378
        %v380 = vld [vmem:[%s1] sm:$0xff]
        %v381 = vld [vmem:[%s1 + $0x8] sm:$0xff]
        %v382 = vld [vmem:[#allocation2] sm:$0xff]
        %vm383 = vcmask 130048
        %v385 = vsel %vm383, %v379, 0
        %387 = vmatprep.subr.mxu0 0.0
        %388 = vmatpush1.msra.mxu0 %v380
        %389 = vmatprep.subr.mxu0 0.0
        %390 = vmatpush1.msra.mxu0 %v381
        %391 = vmatprep.subr.mxu0 0.0
        %392 = vmatpush1.msra.mxu0 0.0
        %393 = vmatprep.subr.mxu0 0.0
        %394 = vmatpush1.msra.mxu0 0.0
        %395 = vmatprep.subr.mxu0 0.0
        %396 = vmatpush1.msra.mxu0 0.0
        %397 = vmatprep.subr.mxu0 0.0
        %398 = vmatpush1.msra.mxu0 0.0
        %399 = vmatprep.subr.mxu0 0.0
        %400 = vmatpush1.msra.mxu0 0.0
        %401 = vmatprep.subr.mxu0 0.0
        %402 = vmatpush1.msra.mxu0 0.0
        %403 = vmatprep.subr.mxu0 0.0
        %404 = vmatpush1.msra.mxu0 0.0
        %405 = vmatprep.subr.mxu0 0.0
        %406 = vmatpush1.msra.mxu0 0.0
        %407 = vmatprep.subr.mxu0 0.0
        %408 = vmatpush1.msra.mxu0 0.0
        %409 = vmatprep.subr.mxu0 0.0
        %410 = vmatpush1.msra.mxu0 0.0
        %411 = vmatprep.subr.mxu0 0.0
        %412 = vmatpush1.msra.mxu0 0.0
        %413 = vmatprep.subr.mxu0 0.0
        %414 = vmatpush1.msra.mxu0 0.0
        %415 = vmatprep.subr.mxu0 0.0
        %416 = vmatpush1.msra.mxu0 0.0
        %417 = vmatprep.subr.mxu0 0.0
        %418 = vmatpush1.msra.mxu0 0.0
        %419 = vmatprep.subr.mxu0 0.0
        %420 = vmatpush1.msra.mxu0 0.0
        %421 = vmatprep.subr.mxu0 0.0
        %422 = vmatpush1.msra.mxu0 0.0
        %423 = vmatprep.subr.mxu0 0.0
        %424 = vmatpush1.msra.mxu0 0.0
        %425 = vmatprep.subr.mxu0 0.0
        %426 = vmatpush1.msra.mxu0 0.0
        %427 = vmatprep.subr.mxu0 0.0
        %428 = vmatpush1.msra.mxu0 0.0
        %429 = vmatprep.subr.mxu0 0.0
        %430 = vmatpush1.msra.mxu0 0.0
        %431 = vmatprep.subr.mxu0 0.0
        %432 = vmatpush1.msra.mxu0 0.0
        %433 = vmatprep.subr.mxu0 0.0
        %434 = vmatpush1.msra.mxu0 0.0
        %435 = vmatprep.subr.mxu0 0.0
        %436 = vmatpush1.msra.mxu0 0.0
        %437 = vmatprep.subr.mxu0 0.0
        %438 = vmatpush1.msra.mxu0 0.0
        %439 = vmatprep.subr.mxu0 0.0
        %440 = vmatpush1.msra.mxu0 0.0
        %441 = vmatprep.subr.mxu0 0.0
        %442 = vmatpush1.msra.mxu0 0.0
        %443 = vmatprep.subr.mxu0 0.0
        %444 = vmatpush1.msra.mxu0 0.0
        %445 = vmatprep.subr.mxu0 0.0
        %446 = vmatpush1.msra.mxu0 0.0
        %447 = vmatprep.subr.mxu0 0.0
        %448 = vmatpush1.msra.mxu0 0.0
        %449 = vmatprep.subr.mxu0 0.0
        %450 = vmatpush1.msra.mxu0 0.0
        %451 = vmatprep.mubr.f32.mxu0 0.0
        %452 = vmatmul.mubr.f32.gmra.mrb[0].mxu0 %v385
        %v453 = vpop.f32.mrb[0].mxu0
        %v454 = vadd.f32 %v382, %v453
        %v455 = vpop.f32.mrb[0].mxu0
        %456 = vdwg.mxu0
        %v457 = vlaneseq
        %v458 = vshrl.u32 %v457, 7
        %vm459 = vcmp.le.s32.totalorder %v373, %v458
        %v460 = vsel %vm459, 0.0, -1e+30
        %v461 = vld [vmem:[%s5] sm:$0x7f]
        %v462 = vpack.c.bf16 %v454, %v454
        %v463 = vld [vmem:[%s3] sm:$0xf]
        %v464 = vld [vmem:[%s3 + $0x4] sm:$0xf]
        %v465 = vld [vmem:[%s3 + $0x8] sm:$0xf]
        %v466 = vld [vmem:[%s3 + $0xc] sm:$0xf]
        %v471 = vunpack.c.l.b16 %v463
        %v472 = vunpack.c.l.b16 %v464
        %v473 = vunpack.c.l.b16 %v465
        %v474 = vunpack.c.l.b16 %v466
        %v475 = vpack.c.b16 %v472, %v471
        %v476 = vpack.c.b16 %v474, %v473
        %vm479 = vcmask 261120
        %v481 = vsel %vm479, %v462, 0
        %483 = vmatprep.subr.bf16.mxu0 0
        %484 = vmatpush1.bf16.msra.mxu0 %v475
        %485 = vmatprep.subr.bf16.mxu0 0
        %486 = vmatpush1.bf16.msra.mxu0 %v476
        %487 = vmatprep.subr.bf16.mxu0 0
        %488 = vmatpush1.bf16.msra.mxu0 0
        %489 = vmatprep.subr.bf16.mxu0 0
        %490 = vmatpush1.bf16.msra.mxu0 0
        %491 = vmatprep.subr.bf16.mxu0 0
        %492 = vmatpush1.bf16.msra.mxu0 0
        %493 = vmatprep.subr.bf16.mxu0 0
        %494 = vmatpush1.bf16.msra.mxu0 0
        %495 = vmatprep.subr.bf16.mxu0 0
        %496 = vmatpush1.bf16.msra.mxu0 0
        %497 = vmatprep.subr.bf16.mxu0 0
        %498 = vmatpush1.bf16.msra.mxu0 0
        %499 = vmatprep.subr.bf16.mxu0 0
        %500 = vmatpush1.bf16.msra.mxu0 0
        %501 = vmatprep.subr.bf16.mxu0 0
        %502 = vmatpush1.bf16.msra.mxu0 0
        %503 = vmatprep.subr.bf16.mxu0 0
        %504 = vmatpush1.bf16.msra.mxu0 0
        %505 = vmatprep.subr.bf16.mxu0 0
        %506 = vmatpush1.bf16.msra.mxu0 0
        %507 = vmatprep.subr.bf16.mxu0 0
        %508 = vmatpush1.bf16.msra.mxu0 0
        %509 = vmatprep.subr.bf16.mxu0 0
        %510 = vmatpush1.bf16.msra.mxu0 0
        %511 = vmatprep.subr.bf16.mxu0 0
        %512 = vmatpush1.bf16.msra.mxu0 0
        %513 = vmatprep.subr.bf16.mxu0 0
        %514 = vmatpush1.bf16.msra.mxu0 0
        %515 = vmatprep.mubr.bf16.mxu0 0
        %516 = vmatmul.mubr.bf16.gmra.mrb[0].mxu0 %v481
        %v517 = vpop.f32.mrb[0].mxu0
        %v518 = vadd.f32 0.0, %v517
        %v519 = vpop.f32.mrb[0].mxu0
        %v520 = vpop.f32.mrb[0].mxu0
        %v521 = vpop.f32.mrb[0].mxu0
        %522 = vdwg.mxu0
        %524 = vrot.lane.b32.xlu0 %v518, 120
        %v525 = vpop.permute.xlu0 %524
        %527 = vrot.lane.b32.xlu0 %v518, 112
        %v528 = vpop.permute.xlu0 %527
        %530 = vrot.lane.b32.xlu0 %v518, 104
        %v531 = vpop.permute.xlu0 %530
        %533 = vrot.lane.b32.xlu0 %v518, 96
        %v534 = vpop.permute.xlu0 %533
        %536 = vrot.lane.b32.xlu0 %v518, 88
        %v537 = vpop.permute.xlu0 %536
        %539 = vrot.lane.b32.xlu0 %v518, 80
        %v540 = vpop.permute.xlu0 %539
        %542 = vrot.lane.b32.xlu0 %v518, 72
        %v543 = vpop.permute.xlu0 %542
        %545 = vrot.lane.b32.xlu0 %v518, 64
        %v546 = vpop.permute.xlu0 %545
        %548 = vrot.lane.b32.xlu0 %v518, 56
        %v549 = vpop.permute.xlu0 %548
        %551 = vrot.lane.b32.xlu0 %v518, 48
        %v552 = vpop.permute.xlu0 %551
        %554 = vrot.lane.b32.xlu0 %v518, 40
        %v555 = vpop.permute.xlu0 %554
        %v557 = vcombine.low %v518, %v528
        %v558 = vcombine.high %v518, %v528
        %v560 = vunpack.c.l.s4 1983009808
        %v561 = vunpack.c.0.s8 %v560
        %v562 = vlaneseq
        %v563 = vshrl.u32 %v562, 7
        %v564 = vsub.s32 %v561, %v563
        %v565 = vrot.slane %v557, %v564
        %v567 = vunpack.c.l.s4 1983009808
        %v568 = vunpack.c.0.s8 %v567
        %v569 = vlaneseq
        %v570 = vshrl.u32 %v569, 7
        %v571 = vsub.s32 %v568, %v570
        %v572 = vrot.slane %v558, %v571
        %v573 = vcombine.low %v525, %v531
        %v574 = vcombine.high %v525, %v531
        %v576 = vunpack.c.l.s4 1983009808
        %v577 = vunpack.c.0.s8 %v576
        %v578 = vlaneseq
        %v579 = vshrl.u32 %v578, 7
        %v580 = vsub.s32 %v577, %v579
        %v581 = vrot.slane %v573, %v580
        %v583 = vunpack.c.l.s4 1983009808
        %v584 = vunpack.c.0.s8 %v583
        %v585 = vlaneseq
        %v586 = vshrl.u32 %v585, 7
        %v587 = vsub.s32 %v584, %v586
        %v588 = vrot.slane %v574, %v587
        %v589 = vcombine.low %v534, %v540
        %v590 = vcombine.high %v534, %v540
        %v592 = vunpack.c.l.s4 1983009808
        %v593 = vunpack.c.0.s8 %v592
        %v594 = vlaneseq
        %v595 = vshrl.u32 %v594, 7
        %v596 = vsub.s32 %v593, %v595
        %v597 = vrot.slane %v589, %v596
        %v599 = vunpack.c.l.s4 1983009808
        %v600 = vunpack.c.0.s8 %v599
        %v601 = vlaneseq
        %v602 = vshrl.u32 %v601, 7
        %v603 = vsub.s32 %v600, %v602
        %v604 = vrot.slane %v590, %v603
        %v605 = vcombine.low %v537, %v543
        %v606 = vcombine.high %v537, %v543
        %v608 = vunpack.c.l.s4 1983009808
        %v609 = vunpack.c.0.s8 %v608
        %v610 = vlaneseq
        %v611 = vshrl.u32 %v610, 7
        %v612 = vsub.s32 %v609, %v611
        %v613 = vrot.slane %v605, %v612
        %v615 = vunpack.c.l.s4 1983009808
        %v616 = vunpack.c.0.s8 %v615
        %v617 = vlaneseq
        %v618 = vshrl.u32 %v617, 7
        %v619 = vsub.s32 %v616, %v618
        %v620 = vrot.slane %v606, %v619
        %v621 = vcombine.low %v565, %v581
        %v622 = vcombine.high %v565, %v581
        %v624 = vunpack.c.l.s4 1934713408
        %v625 = vunpack.c.0.s8 %v624
        %v626 = vlaneseq
        %v627 = vshrl.u32 %v626, 7
        %v628 = vsub.s32 %v625, %v627
        %v629 = vrot.slane %v621, %v628
        %v631 = vunpack.c.l.s4 1934713408
        %v632 = vunpack.c.0.s8 %v631
        %v633 = vlaneseq
        %v634 = vshrl.u32 %v633, 7
        %v635 = vsub.s32 %v632, %v634
        %v636 = vrot.slane %v622, %v635
        %v637 = vcombine.low %v572, %v588
        %v638 = vcombine.high %v572, %v588
        %v640 = vunpack.c.l.s4 1934713408
        %v641 = vunpack.c.0.s8 %v640
        %v642 = vlaneseq
        %v643 = vshrl.u32 %v642, 7
        %v644 = vsub.s32 %v641, %v643
        %v645 = vrot.slane %v637, %v644
        %v647 = vunpack.c.l.s4 1934713408
        %v648 = vunpack.c.0.s8 %v647
        %v649 = vlaneseq
        %v650 = vshrl.u32 %v649, 7
        %v651 = vsub.s32 %v648, %v650
        %v652 = vrot.slane %v638, %v651
        %v653 = vcombine.low %v597, %v613
        %v654 = vcombine.high %v597, %v613
        %v656 = vunpack.c.l.s4 1934713408
        %v657 = vunpack.c.0.s8 %v656
        %v658 = vlaneseq
        %v659 = vshrl.u32 %v658, 7
        %v660 = vsub.s32 %v657, %v659
        %v661 = vrot.slane %v653, %v660
        %v663 = vunpack.c.l.s4 1934713408
        %v664 = vunpack.c.0.s8 %v663
        %v665 = vlaneseq
        %v666 = vshrl.u32 %v665, 7
        %v667 = vsub.s32 %v664, %v666
        %v668 = vrot.slane %v654, %v667
        %v669 = vcombine.low %v604, %v620
        %v670 = vcombine.high %v604, %v620
        %v672 = vunpack.c.l.s4 1934713408
        %v673 = vunpack.c.0.s8 %v672
        %v674 = vlaneseq
        %v675 = vshrl.u32 %v674, 7
        %v676 = vsub.s32 %v673, %v675
        %v677 = vrot.slane %v669, %v676
        %v679 = vunpack.c.l.s4 1934713408
        %v680 = vunpack.c.0.s8 %v679
        %v681 = vlaneseq
        %v682 = vshrl.u32 %v681, 7
        %v683 = vsub.s32 %v680, %v682
        %v684 = vrot.slane %v670, %v683
        %v685 = vcombine.low %v629, %v661
        %v686 = vcombine.high %v629, %v661
        %v687 = vcombine.low %v636, %v668
        %v688 = vcombine.high %v636, %v668
        %v689 = vcombine.low %v645, %v677
        %v690 = vcombine.high %v645, %v677
        %v691 = vcombine.low %v652, %v684
        %v692 = vcombine.high %v652, %v684
        %v693 = vcombine.low %v546, %v552
        %v694 = vcombine.high %v546, %v552
        %v696 = vunpack.c.l.s4 1983009808
        %v697 = vunpack.c.0.s8 %v696
        %v698 = vlaneseq
        %v699 = vshrl.u32 %v698, 7
        %v700 = vsub.s32 %v697, %v699
        %v701 = vrot.slane %v693, %v700
        %v703 = vunpack.c.l.s4 1983009808
        %v704 = vunpack.c.0.s8 %v703
        %v705 = vlaneseq
        %v706 = vshrl.u32 %v705, 7
        %v707 = vsub.s32 %v704, %v706
        %v708 = vrot.slane %v694, %v707
        %v709 = vcombine.low %v549, %v555
        %v710 = vcombine.high %v549, %v555
        %v712 = vunpack.c.l.s4 1983009808
        %v713 = vunpack.c.0.s8 %v712
        %v714 = vlaneseq
        %v715 = vshrl.u32 %v714, 7
        %v716 = vsub.s32 %v713, %v715
        %v717 = vrot.slane %v709, %v716
        %v719 = vunpack.c.l.s4 1983009808
        %v720 = vunpack.c.0.s8 %v719
        %v721 = vlaneseq
        %v722 = vshrl.u32 %v721, 7
        %v723 = vsub.s32 %v720, %v722
        %v724 = vrot.slane %v710, %v723
        %v725 = vcombine.low %v701, %v717
        %v726 = vcombine.high %v701, %v717
        %v728 = vunpack.c.l.s4 1934713408
        %v729 = vunpack.c.0.s8 %v728
        %v730 = vlaneseq
        %v731 = vshrl.u32 %v730, 7
        %v732 = vsub.s32 %v729, %v731
        %v733 = vrot.slane %v725, %v732
        %v735 = vunpack.c.l.s4 1934713408
        %v736 = vunpack.c.0.s8 %v735
        %v737 = vlaneseq
        %v738 = vshrl.u32 %v737, 7
        %v739 = vsub.s32 %v736, %v738
        %v740 = vrot.slane %v726, %v739
        %v741 = vcombine.low %v708, %v724
        %v742 = vcombine.high %v708, %v724
        %v744 = vunpack.c.l.s4 1934713408
        %v745 = vunpack.c.0.s8 %v744
        %v746 = vlaneseq
        %v747 = vshrl.u32 %v746, 7
        %v748 = vsub.s32 %v745, %v747
        %v749 = vrot.slane %v741, %v748
        %v751 = vunpack.c.l.s4 1934713408
        %v752 = vunpack.c.0.s8 %v751
        %v753 = vlaneseq
        %v754 = vshrl.u32 %v753, 7
        %v755 = vsub.s32 %v752, %v754
        %v756 = vrot.slane %v742, %v755
        %v757 = vcombine.high %v733, 0.0
        %v758 = vcombine.high %v740, 0.0
        %v759 = vcombine.high %v749, 0.0
        %v760 = vcombine.high %v756, 0.0
        %v761 = vcombine.low %v685, %v687
        %v762 = vcombine.high %v685, %v687
        %v764 = vunpack.c.l.s4 1983009808
        %v765 = vunpack.c.0.s8 %v764
        %v766 = vlaneseq
        %v767 = vshrl.u32 %v766, 7
        %v768 = vsub.s32 %v765, %v767
        %v769 = vrot.slane %v761, %v768
        %v771 = vunpack.c.l.s4 1983009808
        %v772 = vunpack.c.0.s8 %v771
        %v773 = vlaneseq
        %v774 = vshrl.u32 %v773, 7
        %v775 = vsub.s32 %v772, %v774
        %v776 = vrot.slane %v762, %v775
        %v777 = vcombine.low %v686, %v688
        %v778 = vcombine.high %v686, %v688
        %v780 = vunpack.c.l.s4 1983009808
        %v781 = vunpack.c.0.s8 %v780
        %v782 = vlaneseq
        %v783 = vshrl.u32 %v782, 7
        %v784 = vsub.s32 %v781, %v783
        %v785 = vrot.slane %v777, %v784
        %v787 = vunpack.c.l.s4 1983009808
        %v788 = vunpack.c.0.s8 %v787
        %v789 = vlaneseq
        %v790 = vshrl.u32 %v789, 7
        %v791 = vsub.s32 %v788, %v790
        %v792 = vrot.slane %v778, %v791
        %v793 = vcombine.low %v689, %v691
        %v794 = vcombine.high %v689, %v691
        %v796 = vunpack.c.l.s4 1983009808
        %v797 = vunpack.c.0.s8 %v796
        %v798 = vlaneseq
        %v799 = vshrl.u32 %v798, 7
        %v800 = vsub.s32 %v797, %v799
        %v801 = vrot.slane %v793, %v800
        %v803 = vunpack.c.l.s4 1983009808
        %v804 = vunpack.c.0.s8 %v803
        %v805 = vlaneseq
        %v806 = vshrl.u32 %v805, 7
        %v807 = vsub.s32 %v804, %v806
        %v808 = vrot.slane %v794, %v807
        %v809 = vcombine.low %v690, %v692
        %v810 = vcombine.high %v690, %v692
        %v812 = vunpack.c.l.s4 1983009808
        %v813 = vunpack.c.0.s8 %v812
        %v814 = vlaneseq
        %v815 = vshrl.u32 %v814, 7
        %v816 = vsub.s32 %v813, %v815
        %v817 = vrot.slane %v809, %v816
        %v819 = vunpack.c.l.s4 1983009808
        %v820 = vunpack.c.0.s8 %v819
        %v821 = vlaneseq
        %v822 = vshrl.u32 %v821, 7
        %v823 = vsub.s32 %v820, %v822
        %v824 = vrot.slane %v810, %v823
        %v825 = vcombine.low %v769, %v785
        %v826 = vcombine.high %v769, %v785
        %v828 = vunpack.c.l.s4 1934713408
        %v829 = vunpack.c.0.s8 %v828
        %v830 = vlaneseq
        %v831 = vshrl.u32 %v830, 7
        %v832 = vsub.s32 %v829, %v831
        %v833 = vrot.slane %v825, %v832
        %v835 = vunpack.c.l.s4 1934713408
        %v836 = vunpack.c.0.s8 %v835
        %v837 = vlaneseq
        %v838 = vshrl.u32 %v837, 7
        %v839 = vsub.s32 %v836, %v838
        %v840 = vrot.slane %v826, %v839
        %v841 = vcombine.low %v776, %v792
        %v842 = vcombine.high %v776, %v792
        %v844 = vunpack.c.l.s4 1934713408
        %v845 = vunpack.c.0.s8 %v844
        %v846 = vlaneseq
        %v847 = vshrl.u32 %v846, 7
        %v848 = vsub.s32 %v845, %v847
        %v849 = vrot.slane %v841, %v848
        %v851 = vunpack.c.l.s4 1934713408
        %v852 = vunpack.c.0.s8 %v851
        %v853 = vlaneseq
        %v854 = vshrl.u32 %v853, 7
        %v855 = vsub.s32 %v852, %v854
        %v856 = vrot.slane %v842, %v855
        %v857 = vcombine.low %v801, %v817
        %v858 = vcombine.high %v801, %v817
        %v860 = vunpack.c.l.s4 1934713408
        %v861 = vunpack.c.0.s8 %v860
        %v862 = vlaneseq
        %v863 = vshrl.u32 %v862, 7
        %v864 = vsub.s32 %v861, %v863
        %v865 = vrot.slane %v857, %v864
        %v867 = vunpack.c.l.s4 1934713408
        %v868 = vunpack.c.0.s8 %v867
        %v869 = vlaneseq
        %v870 = vshrl.u32 %v869, 7
        %v871 = vsub.s32 %v868, %v870
        %v872 = vrot.slane %v858, %v871
        %v873 = vcombine.low %v808, %v824
        %v874 = vcombine.high %v808, %v824
        %v876 = vunpack.c.l.s4 1934713408
        %v877 = vunpack.c.0.s8 %v876
        %v878 = vlaneseq
        %v879 = vshrl.u32 %v878, 7
        %v880 = vsub.s32 %v877, %v879
        %v881 = vrot.slane %v873, %v880
        %v883 = vunpack.c.l.s4 1934713408
        %v884 = vunpack.c.0.s8 %v883
        %v885 = vlaneseq
        %v886 = vshrl.u32 %v885, 7
        %v887 = vsub.s32 %v884, %v886
        %v888 = vrot.slane %v874, %v887
        %v889 = vcombine.low %v833, %v865
        %v890 = vcombine.high %v833, %v865
        %v891 = vcombine.low %v840, %v872
        %v892 = vcombine.high %v840, %v872
        %v893 = vcombine.low %v849, %v881
        %v894 = vcombine.high %v849, %v881
        %v895 = vcombine.low %v856, %v888
        %v896 = vcombine.high %v856, %v888
        %v897 = vcombine.low %v733, %v740
        %v899 = vunpack.c.l.s4 1983009808
        %v900 = vunpack.c.0.s8 %v899
        %v901 = vlaneseq
        %v902 = vshrl.u32 %v901, 7
        %v903 = vsub.s32 %v900, %v902
        %v904 = vrot.slane %v897, %v903
        %v905 = vcombine.low %v757, %v758
        %v907 = vunpack.c.l.s4 1983009808
        %v908 = vunpack.c.0.s8 %v907
        %v909 = vlaneseq
        %v910 = vshrl.u32 %v909, 7
        %v911 = vsub.s32 %v908, %v910
        %v912 = vrot.slane %v905, %v911
        %v913 = vcombine.low %v749, %v756
        %v915 = vunpack.c.l.s4 1983009808
        %v916 = vunpack.c.0.s8 %v915
        %v917 = vlaneseq
        %v918 = vshrl.u32 %v917, 7
        %v919 = vsub.s32 %v916, %v918
        %v920 = vrot.slane %v913, %v919
        %v921 = vcombine.low %v759, %v760
        %v923 = vunpack.c.l.s4 1983009808
        %v924 = vunpack.c.0.s8 %v923
        %v925 = vlaneseq
        %v926 = vshrl.u32 %v925, 7
        %v927 = vsub.s32 %v924, %v926
        %v928 = vrot.slane %v921, %v927
        %v929 = vcombine.low %v904, %v912
        %v930 = vcombine.high %v904, %v912
        %v932 = vunpack.c.l.s4 1934713408
        %v933 = vunpack.c.0.s8 %v932
        %v934 = vlaneseq
        %v935 = vshrl.u32 %v934, 7
        %v936 = vsub.s32 %v933, %v935
        %v937 = vrot.slane %v929, %v936
        %v939 = vunpack.c.l.s4 1934713408
        %v940 = vunpack.c.0.s8 %v939
        %v941 = vlaneseq
        %v942 = vshrl.u32 %v941, 7
        %v943 = vsub.s32 %v940, %v942
        %v944 = vrot.slane %v930, %v943
        %v945 = vcombine.low %v920, %v928
        %v946 = vcombine.high %v920, %v928
        %v948 = vunpack.c.l.s4 1934713408
        %v949 = vunpack.c.0.s8 %v948
        %v950 = vlaneseq
        %v951 = vshrl.u32 %v950, 7
        %v952 = vsub.s32 %v949, %v951
        %v953 = vrot.slane %v945, %v952
        %v955 = vunpack.c.l.s4 1934713408
        %v956 = vunpack.c.0.s8 %v955
        %v957 = vlaneseq
        %v958 = vshrl.u32 %v957, 7
        %v959 = vsub.s32 %v956, %v958
        %v960 = vrot.slane %v946, %v959
        %v961 = vcombine.low %v937, %v953
        %v962 = vcombine.high %v937, %v953
        %v963 = vcombine.low %v944, %v960
        %v964 = vcombine.high %v944, %v960
        %v965 = vpack.c.bf16 %v893, %v893
        %v966 = vpack.c.bf16 %v894, %v894
        %v967 = vpack.c.bf16 %v895, %v895
        %v968 = vpack.c.bf16 %v896, %v896
        %v969 = vpack.c.bf16 %v889, %v889
        %v970 = vpack.c.bf16 %v890, %v890
        %v971 = vpack.c.bf16 %v891, %v891
        %v972 = vpack.c.bf16 %v892, %v892
        %vm973 = vcmask 64512
        %v975 = vsel %vm973, %v965, 0
        %v978 = vsel %vm973, %v969, 0
        %980 = vmatprep.subr.bf16.mxu0 0
        %981 = vmatpush1.bf16.xpose.msra.mxu0 %v978
        %982 = vmatprep.subr.bf16.mxu0 0
        %983 = vmatpush1.bf16.xpose.msra.mxu0 0
        %984 = vmatprep.subr.bf16.mxu0 0
        %985 = vmatpush1.bf16.xpose.msra.mxu0 0
        %986 = vmatprep.subr.bf16.mxu0 0
        %987 = vmatpush1.bf16.xpose.msra.mxu0 0
        %988 = vmatprep.subr.bf16.mxu0 0
        %989 = vmatpush1.bf16.xpose.msra.mxu0 0
        %990 = vmatprep.subr.bf16.mxu0 0
        %991 = vmatpush1.bf16.xpose.msra.mxu0 0
        %992 = vmatprep.subr.bf16.mxu0 0
        %993 = vmatpush1.bf16.xpose.msra.mxu0 0
        %994 = vmatprep.subr.bf16.mxu0 0
        %995 = vmatpush1.bf16.xpose.msra.mxu0 0
        %996 = vmatprep.subr.bf16.mxu0 0
        %997 = vmatpush1.bf16.xpose.msra.mxu0 0
        %998 = vmatprep.subr.bf16.mxu0 0
        %999 = vmatpush1.bf16.xpose.msra.mxu0 0
        %1000 = vmatprep.subr.bf16.mxu0 0
        %1001 = vmatpush1.bf16.xpose.msra.mxu0 0
        %1002 = vmatprep.subr.bf16.mxu0 0
        %1003 = vmatpush1.bf16.xpose.msra.mxu0 0
        %1004 = vmatprep.subr.bf16.mxu0 0
        %1005 = vmatpush1.bf16.xpose.msra.mxu0 0
        %1006 = vmatprep.subr.bf16.mxu0 0
        %1007 = vmatpush1.bf16.xpose.msra.mxu0 0
        %1008 = vmatprep.subr.bf16.mxu0 0
        %1009 = vmatpush1.bf16.xpose.msra.mxu0 0
        %1010 = vmatprep.subr.bf16.mxu0 0
        %1011 = vmatpush1.bf16.xpose.msra.mxu0 0
        %1012 = vmatprep.mubr.bf16.mxu0 0
        %1013 = vmatmul.mubr.bf16.gmra.mrb[0].mxu0 %v975
        %v1014 = vpop.f32.mrb[0].mxu0
        %v1015 = vadd.f32 %v460, %v1014
        %v1016 = vpop.f32.mrb[0].mxu0
        %v1017 = vpop.f32.mrb[0].mxu0
        %v1018 = vpop.f32.mrb[0].mxu0
        %1019 = vdwg.mxu0
        %v1021 = vsel %vm973, %v966, 0
        %v1024 = vsel %vm973, %v970, 0
        %1026 = vmatprep.subr.bf16.mxu0 0
        %1027 = vmatpush1.bf16.xpose.msra.mxu0 %v1024
        %1028 = vmatprep.subr.bf16.mxu0 0
        %1029 = vmatpush1.bf16.xpose.msra.mxu0 0
        %1030 = vmatprep.subr.bf16.mxu0 0
        %1031 = vmatpush1.bf16.xpose.msra.mxu0 0
        %1032 = vmatprep.subr.bf16.mxu0 0
        %1033 = vmatpush1.bf16.xpose.msra.mxu0 0
        %1034 = vmatprep.subr.bf16.mxu0 0
        %1035 = vmatpush1.bf16.xpose.msra.mxu0 0
        %1036 = vmatprep.subr.bf16.mxu0 0
        %1037 = vmatpush1.bf16.xpose.msra.mxu0 0
        %1038 = vmatprep.subr.bf16.mxu0 0
        %1039 = vmatpush1.bf16.xpose.msra.mxu0 0
        %1040 = vmatprep.subr.bf16.mxu0 0
        %1041 = vmatpush1.bf16.xpose.msra.mxu0 0
        %1042 = vmatprep.subr.bf16.mxu0 0
        %1043 = vmatpush1.bf16.xpose.msra.mxu0 0
        %1044 = vmatprep.subr.bf16.mxu0 0
        %1045 = vmatpush1.bf16.xpose.msra.mxu0 0
        %1046 = vmatprep.subr.bf16.mxu0 0
        %1047 = vmatpush1.bf16.xpose.msra.mxu0 0
        %1048 = vmatprep.subr.bf16.mxu0 0
        %1049 = vmatpush1.bf16.xpose.msra.mxu0 0
        %1050 = vmatprep.subr.bf16.mxu0 0
        %1051 = vmatpush1.bf16.xpose.msra.mxu0 0
        %1052 = vmatprep.subr.bf16.mxu0 0
        %1053 = vmatpush1.bf16.xpose.msra.mxu0 0
        %1054 = vmatprep.subr.bf16.mxu0 0
        %1055 = vmatpush1.bf16.xpose.msra.mxu0 0
        %1056 = vmatprep.subr.bf16.mxu0 0
        %1057 = vmatpush1.bf16.xpose.msra.mxu0 0
        %1058 = vmatprep.mubr.bf16.mxu0 0
        %1059 = vmatmul.mubr.bf16.gmra.mrb[0].mxu0 %v1021
        %v1060 = vpop.f32.mrb[0].mxu0
        %v1061 = vadd.f32 %v460, %v1060
        %v1062 = vpop.f32.mrb[0].mxu0
        %v1063 = vpop.f32.mrb[0].mxu0
        %v1064 = vpop.f32.mrb[0].mxu0
        %1065 = vdwg.mxu0
        %v1067 = vsel %vm973, %v967, 0
        %v1070 = vsel %vm973, %v971, 0
        %1072 = vmatprep.subr.bf16.mxu0 0
        %1073 = vmatpush1.bf16.xpose.msra.mxu0 %v1070
        %1074 = vmatprep.subr.bf16.mxu0 0
        %1075 = vmatpush1.bf16.xpose.msra.mxu0 0
        %1076 = vmatprep.subr.bf16.mxu0 0
        %1077 = vmatpush1.bf16.xpose.msra.mxu0 0
        %1078 = vmatprep.subr.bf16.mxu0 0
        %1079 = vmatpush1.bf16.xpose.msra.mxu0 0
        %1080 = vmatprep.subr.bf16.mxu0 0
        %1081 = vmatpush1.bf16.xpose.msra.mxu0 0
        %1082 = vmatprep.subr.bf16.mxu0 0
        %1083 = vmatpush1.bf16.xpose.msra.mxu0 0
        %1084 = vmatprep.subr.bf16.mxu0 0
        %1085 = vmatpush1.bf16.xpose.msra.mxu0 0
        %1086 = vmatprep.subr.bf16.mxu0 0
        %1087 = vmatpush1.bf16.xpose.msra.mxu0 0
        %1088 = vmatprep.subr.bf16.mxu0 0
        %1089 = vmatpush1.bf16.xpose.msra.mxu0 0
        %1090 = vmatprep.subr.bf16.mxu0 0
        %1091 = vmatpush1.bf16.xpose.msra.mxu0 0
        %1092 = vmatprep.subr.bf16.mxu0 0
        %1093 = vmatpush1.bf16.xpose.msra.mxu0 0
        %1094 = vmatprep.subr.bf16.mxu0 0
        %1095 = vmatpush1.bf16.xpose.msra.mxu0 0
        %1096 = vmatprep.subr.bf16.mxu0 0
        %1097 = vmatpush1.bf16.xpose.msra.mxu0 0
        %1098 = vmatprep.subr.bf16.mxu0 0
        %1099 = vmatpush1.bf16.xpose.msra.mxu0 0
        %1100 = vmatprep.subr.bf16.mxu0 0
        %1101 = vmatpush1.bf16.xpose.msra.mxu0 0
        %1102 = vmatprep.subr.bf16.mxu0 0
        %1103 = vmatpush1.bf16.xpose.msra.mxu0 0
        %1104 = vmatprep.mubr.bf16.mxu0 0
        %1105 = vmatmul.mubr.bf16.gmra.mrb[0].mxu0 %v1067
        %v1106 = vpop.f32.mrb[0].mxu0
        %v1107 = vadd.f32 %v460, %v1106
        %v1108 = vpop.f32.mrb[0].mxu0
        %v1109 = vpop.f32.mrb[0].mxu0
        %v1110 = vpop.f32.mrb[0].mxu0
        %1111 = vdwg.mxu0
        %v1113 = vsel %vm973, %v968, 0
        %v1116 = vsel %vm973, %v972, 0
        %1118 = vmatprep.subr.bf16.mxu0 0
        %1119 = vmatpush1.bf16.xpose.msra.mxu0 %v1116
        %1120 = vmatprep.subr.bf16.mxu0 0
        %1121 = vmatpush1.bf16.xpose.msra.mxu0 0
        %1122 = vmatprep.subr.bf16.mxu0 0
        %1123 = vmatpush1.bf16.xpose.msra.mxu0 0
        %1124 = vmatprep.subr.bf16.mxu0 0
        %1125 = vmatpush1.bf16.xpose.msra.mxu0 0
        %1126 = vmatprep.subr.bf16.mxu0 0
        %1127 = vmatpush1.bf16.xpose.msra.mxu0 0
        %1128 = vmatprep.subr.bf16.mxu0 0
        %1129 = vmatpush1.bf16.xpose.msra.mxu0 0
        %1130 = vmatprep.subr.bf16.mxu0 0
        %1131 = vmatpush1.bf16.xpose.msra.mxu0 0
        %1132 = vmatprep.subr.bf16.mxu0 0
        %1133 = vmatpush1.bf16.xpose.msra.mxu0 0
        %1134 = vmatprep.subr.bf16.mxu0 0
        %1135 = vmatpush1.bf16.xpose.msra.mxu0 0
        %1136 = vmatprep.subr.bf16.mxu0 0
        %1137 = vmatpush1.bf16.xpose.msra.mxu0 0
        %1138 = vmatprep.subr.bf16.mxu0 0
        %1139 = vmatpush1.bf16.xpose.msra.mxu0 0
        %1140 = vmatprep.subr.bf16.mxu0 0
        %1141 = vmatpush1.bf16.xpose.msra.mxu0 0
        %1142 = vmatprep.subr.bf16.mxu0 0
        %1143 = vmatpush1.bf16.xpose.msra.mxu0 0
        %1144 = vmatprep.subr.bf16.mxu0 0
        %1145 = vmatpush1.bf16.xpose.msra.mxu0 0
        %1146 = vmatprep.subr.bf16.mxu0 0
        %1147 = vmatpush1.bf16.xpose.msra.mxu0 0
        %1148 = vmatprep.subr.bf16.mxu0 0
        %1149 = vmatpush1.bf16.xpose.msra.mxu0 0
        %1150 = vmatprep.mubr.bf16.mxu0 0
        %1151 = vmatmul.mubr.bf16.gmra.mrb[0].mxu0 %v1113
        %v1152 = vpop.f32.mrb[0].mxu0
        %v1153 = vadd.f32 %v460, %v1152
        %v1154 = vpop.f32.mrb[0].mxu0
        %v1155 = vpop.f32.mrb[0].mxu0
        %v1156 = vpop.f32.mrb[0].mxu0
        %1157 = vdwg.mxu0
        %v1158 = vsel %vm973, %v1015, -inf
        %1159 = vmax.xlane.f32.xlu0 %v1158
        %v1160 = vpop.xlane.xlu0 %1159
        %v1161 = vsel %vm973, %v1061, -inf
        %1162 = vmax.xlane.f32.xlu0 %v1161
        %v1163 = vpop.xlane.xlu0 %1162
        %v1164 = vsel %vm973, %v1107, -inf
        %1165 = vmax.xlane.f32.xlu0 %v1164
        %v1166 = vpop.xlane.xlu0 %1165
        %v1167 = vsel %vm973, %v1153, -inf
        %1168 = vmax.xlane.f32.xlu0 %v1167
        %v1169 = vpop.xlane.xlu0 %1168
        %v1170 = vsub.f32 %v1015, %v1160
        %v1171 = vsub.f32 %v1061, %v1163
        %v1172 = vsub.f32 %v1107, %v1166
        %v1173 = vsub.f32 %v1153, %v1169
        %v1174 = vmul.f32 %v1170, 1.442695
        %v1175 = vpow.pop %v1174
        %v1176 = vmul.f32 %v1171, 1.442695
        %v1177 = vpow.pop %v1176
        %v1178 = vmul.f32 %v1172, 1.442695
        %v1179 = vpow.pop %v1178
        %v1180 = vmul.f32 %v1173, 1.442695
        %v1181 = vpow.pop %v1180
        %v1182 = vsel %vm973, %v1175, 0.0
        %1183 = vadd.xlane.f32.xlu0 %v1182
        %v1184 = vpop.xlane.xlu0 %1183
        %v1185 = vsel %vm973, %v1177, 0.0
        %1186 = vadd.xlane.f32.xlu0 %v1185
        %v1187 = vpop.xlane.xlu0 %1186
        %v1188 = vsel %vm973, %v1179, 0.0
        %1189 = vadd.xlane.f32.xlu0 %v1188
        %v1190 = vpop.xlane.xlu0 %1189
        %v1191 = vsel %vm973, %v1181, 0.0
        %1192 = vadd.xlane.f32.xlu0 %v1191
        %v1193 = vpop.xlane.xlu0 %1192
        %v1194 = vrcp.pop %v1184
        %v1195 = vrcp.pop %v1187
        %v1196 = vrcp.pop %v1190
        %v1197 = vrcp.pop %v1193
        %v1198 = vmul.f32 %v1175, %v1194
        %v1199 = vmul.f32 %v1177, %v1195
        %v1200 = vmul.f32 %v1179, %v1196
        %v1201 = vmul.f32 %v1181, %v1197
        %v1202 = vpack.c.bf16 %v1198, %v1198
        %v1203 = vpack.c.bf16 %v1199, %v1199
        %v1204 = vpack.c.bf16 %v1200, %v1200
        %v1205 = vpack.c.bf16 %v1201, %v1201
        %v1206 = vpack.c.bf16 %v961, %v961
        %v1207 = vpack.c.bf16 %v962, %v962
        %v1208 = vpack.c.bf16 %v963, %v963
        %v1209 = vpack.c.bf16 %v964, %v964
        %v1211 = vsel %vm973, %v1202, 0
        %vm1213 = vcmask 1043456
        %v1215 = vsel %vm1213, %v1206, 0
        %1217 = vmatprep.subr.bf16.mxu0 0
        %1218 = vmatpush1.bf16.msra.mxu0 %v1215
        %1219 = vmatprep.subr.bf16.mxu0 0
        %1220 = vmatpush1.bf16.msra.mxu0 0
        %1221 = vmatprep.subr.bf16.mxu0 0
        %1222 = vmatpush1.bf16.msra.mxu0 0
        %1223 = vmatprep.subr.bf16.mxu0 0
        %1224 = vmatpush1.bf16.msra.mxu0 0
        %1225 = vmatprep.subr.bf16.mxu0 0
        %1226 = vmatpush1.bf16.msra.mxu0 0
        %1227 = vmatprep.subr.bf16.mxu0 0
        %1228 = vmatpush1.bf16.msra.mxu0 0
        %1229 = vmatprep.subr.bf16.mxu0 0
        %1230 = vmatpush1.bf16.msra.mxu0 0
        %1231 = vmatprep.subr.bf16.mxu0 0
        %1232 = vmatpush1.bf16.msra.mxu0 0
        %1233 = vmatprep.subr.bf16.mxu0 0
        %1234 = vmatpush1.bf16.msra.mxu0 0
        %1235 = vmatprep.subr.bf16.mxu0 0
        %1236 = vmatpush1.bf16.msra.mxu0 0
        %1237 = vmatprep.subr.bf16.mxu0 0
        %1238 = vmatpush1.bf16.msra.mxu0 0
        %1239 = vmatprep.subr.bf16.mxu0 0
        %1240 = vmatpush1.bf16.msra.mxu0 0
        %1241 = vmatprep.subr.bf16.mxu0 0
        %1242 = vmatpush1.bf16.msra.mxu0 0
        %1243 = vmatprep.subr.bf16.mxu0 0
        %1244 = vmatpush1.bf16.msra.mxu0 0
        %1245 = vmatprep.subr.bf16.mxu0 0
        %1246 = vmatpush1.bf16.msra.mxu0 0
        %1247 = vmatprep.subr.bf16.mxu0 0
        %1248 = vmatpush1.bf16.msra.mxu0 0
        %1249 = vmatprep.mubr.bf16.mxu0 0
        %1250 = vmatmul.mubr.bf16.gmra.mrb[0].mxu0 %v1211
        %v1251 = vpop.f32.mrb[0].mxu0
        %v1252 = vadd.f32 0.0, %v1251
        %v1253 = vpop.f32.mrb[0].mxu0
        %v1254 = vpop.f32.mrb[0].mxu0
        %v1255 = vpop.f32.mrb[0].mxu0
        %1256 = vdwg.mxu0
        %v1258 = vsel %vm973, %v1203, 0
        %v1261 = vsel %vm1213, %v1207, 0
        %1263 = vmatprep.subr.bf16.mxu0 0
        %1264 = vmatpush1.bf16.msra.mxu0 %v1261
        %1265 = vmatprep.subr.bf16.mxu0 0
        %1266 = vmatpush1.bf16.msra.mxu0 0
        %1267 = vmatprep.subr.bf16.mxu0 0
        %1268 = vmatpush1.bf16.msra.mxu0 0
        %1269 = vmatprep.subr.bf16.mxu0 0
        %1270 = vmatpush1.bf16.msra.mxu0 0
        %1271 = vmatprep.subr.bf16.mxu0 0
        %1272 = vmatpush1.bf16.msra.mxu0 0
        %1273 = vmatprep.subr.bf16.mxu0 0
        %1274 = vmatpush1.bf16.msra.mxu0 0
        %1275 = vmatprep.subr.bf16.mxu0 0
        %1276 = vmatpush1.bf16.msra.mxu0 0
        %1277 = vmatprep.subr.bf16.mxu0 0
        %1278 = vmatpush1.bf16.msra.mxu0 0
        %1279 = vmatprep.subr.bf16.mxu0 0
        %1280 = vmatpush1.bf16.msra.mxu0 0
        %1281 = vmatprep.subr.bf16.mxu0 0
        %1282 = vmatpush1.bf16.msra.mxu0 0
        %1283 = vmatprep.subr.bf16.mxu0 0
        %1284 = vmatpush1.bf16.msra.mxu0 0
        %1285 = vmatprep.subr.bf16.mxu0 0
        %1286 = vmatpush1.bf16.msra.mxu0 0
        %1287 = vmatprep.subr.bf16.mxu0 0
        %1288 = vmatpush1.bf16.msra.mxu0 0
        %1289 = vmatprep.subr.bf16.mxu0 0
        %1290 = vmatpush1.bf16.msra.mxu0 0
        %1291 = vmatprep.subr.bf16.mxu0 0
        %1292 = vmatpush1.bf16.msra.mxu0 0
        %1293 = vmatprep.subr.bf16.mxu0 0
        %1294 = vmatpush1.bf16.msra.mxu0 0
        %1295 = vmatprep.mubr.bf16.mxu0 0
        %1296 = vmatmul.mubr.bf16.gmra.mrb[0].mxu0 %v1258
        %v1297 = vpop.f32.mrb[0].mxu0
        %v1298 = vadd.f32 0.0, %v1297
        %v1299 = vpop.f32.mrb[0].mxu0
        %v1300 = vpop.f32.mrb[0].mxu0
        %v1301 = vpop.f32.mrb[0].mxu0
        %1302 = vdwg.mxu0
        %v1304 = vsel %vm973, %v1204, 0
        %v1307 = vsel %vm1213, %v1208, 0
        %1309 = vmatprep.subr.bf16.mxu0 0
        %1310 = vmatpush1.bf16.msra.mxu0 %v1307
        %1311 = vmatprep.subr.bf16.mxu0 0
        %1312 = vmatpush1.bf16.msra.mxu0 0
        %1313 = vmatprep.subr.bf16.mxu0 0
        %1314 = vmatpush1.bf16.msra.mxu0 0
        %1315 = vmatprep.subr.bf16.mxu0 0
        %1316 = vmatpush1.bf16.msra.mxu0 0
        %1317 = vmatprep.subr.bf16.mxu0 0
        %1318 = vmatpush1.bf16.msra.mxu0 0
        %1319 = vmatprep.subr.bf16.mxu0 0
        %1320 = vmatpush1.bf16.msra.mxu0 0
        %1321 = vmatprep.subr.bf16.mxu0 0
        %1322 = vmatpush1.bf16.msra.mxu0 0
        %1323 = vmatprep.subr.bf16.mxu0 0
        %1324 = vmatpush1.bf16.msra.mxu0 0
        %1325 = vmatprep.subr.bf16.mxu0 0
        %1326 = vmatpush1.bf16.msra.mxu0 0
        %1327 = vmatprep.subr.bf16.mxu0 0
        %1328 = vmatpush1.bf16.msra.mxu0 0
        %1329 = vmatprep.subr.bf16.mxu0 0
        %1330 = vmatpush1.bf16.msra.mxu0 0
        %1331 = vmatprep.subr.bf16.mxu0 0
        %1332 = vmatpush1.bf16.msra.mxu0 0
        %1333 = vmatprep.subr.bf16.mxu0 0
        %1334 = vmatpush1.bf16.msra.mxu0 0
        %1335 = vmatprep.subr.bf16.mxu0 0
        %1336 = vmatpush1.bf16.msra.mxu0 0
        %1337 = vmatprep.subr.bf16.mxu0 0
        %1338 = vmatpush1.bf16.msra.mxu0 0
        %1339 = vmatprep.subr.bf16.mxu0 0
        %1340 = vmatpush1.bf16.msra.mxu0 0
        %1341 = vmatprep.mubr.bf16.mxu0 0
        %1342 = vmatmul.mubr.bf16.gmra.mrb[0].mxu0 %v1304
        %v1343 = vpop.f32.mrb[0].mxu0
        %v1344 = vadd.f32 0.0, %v1343
        %v1345 = vpop.f32.mrb[0].mxu0
        %v1346 = vpop.f32.mrb[0].mxu0
        %v1347 = vpop.f32.mrb[0].mxu0
        %1348 = vdwg.mxu0
        %v1350 = vsel %vm973, %v1205, 0
        %v1353 = vsel %vm1213, %v1209, 0
        %1355 = vmatprep.subr.bf16.mxu0 0
        %1356 = vmatpush1.bf16.msra.mxu0 %v1353
        %1357 = vmatprep.subr.bf16.mxu0 0
        %1358 = vmatpush1.bf16.msra.mxu0 0
        %1359 = vmatprep.subr.bf16.mxu0 0
        %1360 = vmatpush1.bf16.msra.mxu0 0
        %1361 = vmatprep.subr.bf16.mxu0 0
        %1362 = vmatpush1.bf16.msra.mxu0 0
        %1363 = vmatprep.subr.bf16.mxu0 0
        %1364 = vmatpush1.bf16.msra.mxu0 0
        %1365 = vmatprep.subr.bf16.mxu0 0
        %1366 = vmatpush1.bf16.msra.mxu0 0
        %1367 = vmatprep.subr.bf16.mxu0 0
        %1368 = vmatpush1.bf16.msra.mxu0 0
        %1369 = vmatprep.subr.bf16.mxu0 0
        %1370 = vmatpush1.bf16.msra.mxu0 0
        %1371 = vmatprep.subr.bf16.mxu0 0
        %1372 = vmatpush1.bf16.msra.mxu0 0
        %1373 = vmatprep.subr.bf16.mxu0 0
        %1374 = vmatpush1.bf16.msra.mxu0 0
        %1375 = vmatprep.subr.bf16.mxu0 0
        %1376 = vmatpush1.bf16.msra.mxu0 0
        %1377 = vmatprep.subr.bf16.mxu0 0
        %1378 = vmatpush1.bf16.msra.mxu0 0
        %1379 = vmatprep.subr.bf16.mxu0 0
        %1380 = vmatpush1.bf16.msra.mxu0 0
        %1381 = vmatprep.subr.bf16.mxu0 0
        %1382 = vmatpush1.bf16.msra.mxu0 0
        %1383 = vmatprep.subr.bf16.mxu0 0
        %1384 = vmatpush1.bf16.msra.mxu0 0
        %1385 = vmatprep.subr.bf16.mxu0 0
        %1386 = vmatpush1.bf16.msra.mxu0 0
        %1387 = vmatprep.mubr.bf16.mxu0 0
        %1388 = vmatmul.mubr.bf16.gmra.mrb[0].mxu0 %v1350
        %v1389 = vpop.f32.mrb[0].mxu0
        %v1390 = vadd.f32 0.0, %v1389
        %v1391 = vpop.f32.mrb[0].mxu0
        %v1392 = vpop.f32.mrb[0].mxu0
        %v1393 = vpop.f32.mrb[0].mxu0
        %1394 = vdwg.mxu0
        %v1395 = vpack.c.bf16 %v1252, %v1252
        %v1396 = vpack.c.bf16 %v1298, %v1298
        %v1397 = vpack.c.bf16 %v1344, %v1344
        %v1398 = vpack.c.bf16 %v1390, %v1390
        %v1399 = vld [vmem:[%s4] sm:$0xf]
        %v1400 = vld [vmem:[%s4 + $0x4] sm:$0xf]
        %v1401 = vld [vmem:[%s4 + $0x8] sm:$0xf]
        %v1402 = vld [vmem:[%s4 + $0xc] sm:$0xf]
        %v1404 = vsel %vm973, %v1395, 0
        %v1407 = vsel %vm1213, %v1399, 0
        %1409 = vmatprep.subr.bf16.mxu0 0
        %1410 = vmatpush1.bf16.msra.mxu0 %v1407
        %1411 = vmatprep.subr.bf16.mxu0 0
        %1412 = vmatpush1.bf16.msra.mxu0 0
        %1413 = vmatprep.subr.bf16.mxu0 0
        %1414 = vmatpush1.bf16.msra.mxu0 0
        %1415 = vmatprep.subr.bf16.mxu0 0
        %1416 = vmatpush1.bf16.msra.mxu0 0
        %1417 = vmatprep.subr.bf16.mxu0 0
        %1418 = vmatpush1.bf16.msra.mxu0 0
        %1419 = vmatprep.subr.bf16.mxu0 0
        %1420 = vmatpush1.bf16.msra.mxu0 0
        %1421 = vmatprep.subr.bf16.mxu0 0
        %1422 = vmatpush1.bf16.msra.mxu0 0
        %1423 = vmatprep.subr.bf16.mxu0 0
        %1424 = vmatpush1.bf16.msra.mxu0 0
        %1425 = vmatprep.subr.bf16.mxu0 0
        %1426 = vmatpush1.bf16.msra.mxu0 0
        %1427 = vmatprep.subr.bf16.mxu0 0
        %1428 = vmatpush1.bf16.msra.mxu0 0
        %1429 = vmatprep.subr.bf16.mxu0 0
        %1430 = vmatpush1.bf16.msra.mxu0 0
        %1431 = vmatprep.subr.bf16.mxu0 0
        %1432 = vmatpush1.bf16.msra.mxu0 0
        %1433 = vmatprep.subr.bf16.mxu0 0
        %1434 = vmatpush1.bf16.msra.mxu0 0
        %1435 = vmatprep.subr.bf16.mxu0 0
        %1436 = vmatpush1.bf16.msra.mxu0 0
        %1437 = vmatprep.subr.bf16.mxu0 0
        %1438 = vmatpush1.bf16.msra.mxu0 0
        %1439 = vmatprep.subr.bf16.mxu0 0
        %1440 = vmatpush1.bf16.msra.mxu0 0
        %1441 = vmatprep.mubr.bf16.mxu0 0
        %1442 = vmatmul.mubr.bf16.gmra.mrb[0].mxu0 %v1404
        %v1443 = vpop.f32.mrb[0].mxu0
        %v1444 = vadd.f32 0.0, %v1443
        %v1445 = vpop.f32.mrb[0].mxu0
        %v1446 = vpop.f32.mrb[0].mxu0
        %v1447 = vpop.f32.mrb[0].mxu0
        %1448 = vdwg.mxu0
        %v1450 = vsel %vm973, %v1396, 0
        %v1453 = vsel %vm1213, %v1400, 0
        %1455 = vmatprep.subr.bf16.mxu0 0
        %1456 = vmatpush1.bf16.msra.mxu0 %v1453
        %1457 = vmatprep.subr.bf16.mxu0 0
        %1458 = vmatpush1.bf16.msra.mxu0 0
        %1459 = vmatprep.subr.bf16.mxu0 0
        %1460 = vmatpush1.bf16.msra.mxu0 0
        %1461 = vmatprep.subr.bf16.mxu0 0
        %1462 = vmatpush1.bf16.msra.mxu0 0
        %1463 = vmatprep.subr.bf16.mxu0 0
        %1464 = vmatpush1.bf16.msra.mxu0 0
        %1465 = vmatprep.subr.bf16.mxu0 0
        %1466 = vmatpush1.bf16.msra.mxu0 0
        %1467 = vmatprep.subr.bf16.mxu0 0
        %1468 = vmatpush1.bf16.msra.mxu0 0
        %1469 = vmatprep.subr.bf16.mxu0 0
        %1470 = vmatpush1.bf16.msra.mxu0 0
        %1471 = vmatprep.subr.bf16.mxu0 0
        %1472 = vmatpush1.bf16.msra.mxu0 0
        %1473 = vmatprep.subr.bf16.mxu0 0
        %1474 = vmatpush1.bf16.msra.mxu0 0
        %1475 = vmatprep.subr.bf16.mxu0 0
        %1476 = vmatpush1.bf16.msra.mxu0 0
        %1477 = vmatprep.subr.bf16.mxu0 0
        %1478 = vmatpush1.bf16.msra.mxu0 0
        %1479 = vmatprep.subr.bf16.mxu0 0
        %1480 = vmatpush1.bf16.msra.mxu0 0
        %1481 = vmatprep.subr.bf16.mxu0 0
        %1482 = vmatpush1.bf16.msra.mxu0 0
        %1483 = vmatprep.subr.bf16.mxu0 0
        %1484 = vmatpush1.bf16.msra.mxu0 0
        %1485 = vmatprep.subr.bf16.mxu0 0
        %1486 = vmatpush1.bf16.msra.mxu0 0
        %1487 = vmatprep.mubr.bf16.mxu0 0
        %1488 = vmatmul.mubr.bf16.gmra.mrb[0].mxu0 %v1450
        %v1489 = vpop.f32.mrb[0].mxu0
        %v1490 = vadd.f32 0.0, %v1489
        %v1491 = vpop.f32.mrb[0].mxu0
        %v1492 = vpop.f32.mrb[0].mxu0
        %v1493 = vpop.f32.mrb[0].mxu0
        %1494 = vdwg.mxu0
        %v1496 = vsel %vm973, %v1397, 0
        %v1499 = vsel %vm1213, %v1401, 0
        %1501 = vmatprep.subr.bf16.mxu0 0
        %1502 = vmatpush1.bf16.msra.mxu0 %v1499
        %1503 = vmatprep.subr.bf16.mxu0 0
        %1504 = vmatpush1.bf16.msra.mxu0 0
        %1505 = vmatprep.subr.bf16.mxu0 0
        %1506 = vmatpush1.bf16.msra.mxu0 0
        %1507 = vmatprep.subr.bf16.mxu0 0
        %1508 = vmatpush1.bf16.msra.mxu0 0
        %1509 = vmatprep.subr.bf16.mxu0 0
        %1510 = vmatpush1.bf16.msra.mxu0 0
        %1511 = vmatprep.subr.bf16.mxu0 0
        %1512 = vmatpush1.bf16.msra.mxu0 0
        %1513 = vmatprep.subr.bf16.mxu0 0
        %1514 = vmatpush1.bf16.msra.mxu0 0
        %1515 = vmatprep.subr.bf16.mxu0 0
        %1516 = vmatpush1.bf16.msra.mxu0 0
        %1517 = vmatprep.subr.bf16.mxu0 0
        %1518 = vmatpush1.bf16.msra.mxu0 0
        %1519 = vmatprep.subr.bf16.mxu0 0
        %1520 = vmatpush1.bf16.msra.mxu0 0
        %1521 = vmatprep.subr.bf16.mxu0 0
        %1522 = vmatpush1.bf16.msra.mxu0 0
        %1523 = vmatprep.subr.bf16.mxu0 0
        %1524 = vmatpush1.bf16.msra.mxu0 0
        %1525 = vmatprep.subr.bf16.mxu0 0
        %1526 = vmatpush1.bf16.msra.mxu0 0
        %1527 = vmatprep.subr.bf16.mxu0 0
        %1528 = vmatpush1.bf16.msra.mxu0 0
        %1529 = vmatprep.subr.bf16.mxu0 0
        %1530 = vmatpush1.bf16.msra.mxu0 0
        %1531 = vmatprep.subr.bf16.mxu0 0
        %1532 = vmatpush1.bf16.msra.mxu0 0
        %1533 = vmatprep.mubr.bf16.mxu0 0
        %1534 = vmatmul.mubr.bf16.gmra.mrb[0].mxu0 %v1496
        %v1535 = vpop.f32.mrb[0].mxu0
        %v1536 = vadd.f32 0.0, %v1535
        %v1537 = vpop.f32.mrb[0].mxu0
        %v1538 = vpop.f32.mrb[0].mxu0
        %v1539 = vpop.f32.mrb[0].mxu0
        %1540 = vdwg.mxu0
        %v1542 = vsel %vm973, %v1398, 0
        %v1545 = vsel %vm1213, %v1402, 0
        %1547 = vmatprep.subr.bf16.mxu0 0
        %1548 = vmatpush1.bf16.msra.mxu0 %v1545
        %1549 = vmatprep.subr.bf16.mxu0 0
        %1550 = vmatpush1.bf16.msra.mxu0 0
        %1551 = vmatprep.subr.bf16.mxu0 0
        %1552 = vmatpush1.bf16.msra.mxu0 0
        %1553 = vmatprep.subr.bf16.mxu0 0
        %1554 = vmatpush1.bf16.msra.mxu0 0
        %1555 = vmatprep.subr.bf16.mxu0 0
        %1556 = vmatpush1.bf16.msra.mxu0 0
        %1557 = vmatprep.subr.bf16.mxu0 0
        %1558 = vmatpush1.bf16.msra.mxu0 0
        %1559 = vmatprep.subr.bf16.mxu0 0
        %1560 = vmatpush1.bf16.msra.mxu0 0
        %1561 = vmatprep.subr.bf16.mxu0 0
        %1562 = vmatpush1.bf16.msra.mxu0 0
        %1563 = vmatprep.subr.bf16.mxu0 0
        %1564 = vmatpush1.bf16.msra.mxu0 0
        %1565 = vmatprep.subr.bf16.mxu0 0
        %1566 = vmatpush1.bf16.msra.mxu0 0
        %1567 = vmatprep.subr.bf16.mxu0 0
        %1568 = vmatpush1.bf16.msra.mxu0 0
        %1569 = vmatprep.subr.bf16.mxu0 0
        %1570 = vmatpush1.bf16.msra.mxu0 0
        %1571 = vmatprep.subr.bf16.mxu0 0
        %1572 = vmatpush1.bf16.msra.mxu0 0
        %1573 = vmatprep.subr.bf16.mxu0 0
        %1574 = vmatpush1.bf16.msra.mxu0 0
        %1575 = vmatprep.subr.bf16.mxu0 0
        %1576 = vmatpush1.bf16.msra.mxu0 0
        %1577 = vmatprep.subr.bf16.mxu0 0
        %1578 = vmatpush1.bf16.msra.mxu0 0
        %1579 = vmatprep.mubr.bf16.mxu0 0
        %1580 = vmatmul.mubr.bf16.gmra.mrb[0].mxu0 %v1542
        %v1581 = vpop.f32.mrb[0].mxu0
        %v1582 = vadd.f32 0.0, %v1581
        %v1583 = vpop.f32.mrb[0].mxu0
        %v1584 = vpop.f32.mrb[0].mxu0
        %v1585 = vpop.f32.mrb[0].mxu0
        %1586 = vdwg.mxu0
        %v1587 = vsel %vm479, %v1444, 0.0
        %v1588 = vsel %vm479, %v1490, 0.0
        %v1589 = vadd.f32 %v1587, %v1588
        %v1590 = vsel %vm479, %v1536, 0.0
        %v1591 = vadd.f32 %v1589, %v1590
        %v1592 = vsel %vm479, %v1582, 0.0
        %v1593 = vadd.f32 %v1591, %v1592
        %v1594 = vlaneseq
        %v1595 = vshrl.u32 %v1594, 7
        %v1596 = vsub.s32 0, %v1595
        %v1597 = vrot.slane %v461, %v1596
        %v1598 = vadd.f32 %v1593, %v1597
        %v1599 = vsel %vm479, %v1598, 0.0
        %1600 = vadd.xlane.f32.xlu0 %v1599
        %v1601 = vpop.xlane.xlu0 %1600
        %v1602 = vrcp.pop 32.0
        %v1603 = vmul.f32 %v1601, %v1602
        %v1604 = vsub.f32 %v1598, %v1603
        %v1605 = vmul.f32 %v1604, %v1604
        %v1606 = vsel %vm479, %v1605, 0.0
        %1607 = vadd.xlane.f32.xlu0 %v1606
        %v1608 = vpop.xlane.xlu0 %1607
        %v1609 = vmul.f32 %v1608, %v1602
        %v1610 = vadd.f32 %v1609, 1e-05
        %v1611 = vrsqrt.pop %v1610
        %v1612 = vmul.f32 %v1604, %v1611
        %v1613 = vlaneseq
        %v1614 = vshrl.u32 %v1613, 7
        %v1615 = vsub.s32 1, %v1614
        %v1616 = vrot.slane %v461, %v1615
        %v1617 = vmul.f32 %v1612, %v1616
        %v1618 = vlaneseq
        %v1619 = vshrl.u32 %v1618, 7
        %v1620 = vsub.s32 2, %v1619
        %v1621 = vrot.slane %v461, %v1620
        %v1622 = vadd.f32 %v1617, %v1621
        %v1623 = vadd.f32 %v454, %v1622
        %v1624 = vpack.c.bf16 %v1623, %v1623
        %v1625 = vld [vmem:[%s6] sm:$0xf]
        %v1626 = vld [vmem:[%s6 + $0x4] sm:$0xf]
        %v1627 = vld [vmem:[%s6 + $0x8] sm:$0xf]
        %v1628 = vld [vmem:[%s6 + $0xc] sm:$0xf]
        %v1629 = vlaneseq
        %v1630 = vshrl.u32 %v1629, 7
        %v1631 = vsub.s32 6, %v1630
        %v1632 = vrot.slane %v461, %v1631
        %v1637 = vunpack.c.l.b16 %v1625
        %v1638 = vunpack.c.l.b16 %v1626
        %v1639 = vunpack.c.l.b16 %v1627
        %v1640 = vunpack.c.l.b16 %v1628
        %v1641 = vpack.c.b16 %v1638, %v1637
        %v1642 = vpack.c.b16 %v1640, %v1639
        %v1646 = vsel %vm479, %v1624, 0
        %1648 = vmatprep.subr.bf16.mxu0 0
        %1649 = vmatpush1.bf16.msra.mxu0 %v1641
        %1650 = vmatprep.subr.bf16.mxu0 0
        %1651 = vmatpush1.bf16.msra.mxu0 %v1642
        %1652 = vmatprep.subr.bf16.mxu0 0
        %1653 = vmatpush1.bf16.msra.mxu0 0
        %1654 = vmatprep.subr.bf16.mxu0 0
        %1655 = vmatpush1.bf16.msra.mxu0 0
        %1656 = vmatprep.subr.bf16.mxu0 0
        %1657 = vmatpush1.bf16.msra.mxu0 0
        %1658 = vmatprep.subr.bf16.mxu0 0
        %1659 = vmatpush1.bf16.msra.mxu0 0
        %1660 = vmatprep.subr.bf16.mxu0 0
        %1661 = vmatpush1.bf16.msra.mxu0 0
        %1662 = vmatprep.subr.bf16.mxu0 0
        %1663 = vmatpush1.bf16.msra.mxu0 0
        %1664 = vmatprep.subr.bf16.mxu0 0
        %1665 = vmatpush1.bf16.msra.mxu0 0
        %1666 = vmatprep.subr.bf16.mxu0 0
        %1667 = vmatpush1.bf16.msra.mxu0 0
        %1668 = vmatprep.subr.bf16.mxu0 0
        %1669 = vmatpush1.bf16.msra.mxu0 0
        %1670 = vmatprep.subr.bf16.mxu0 0
        %1671 = vmatpush1.bf16.msra.mxu0 0
        %1672 = vmatprep.subr.bf16.mxu0 0
        %1673 = vmatpush1.bf16.msra.mxu0 0
        %1674 = vmatprep.subr.bf16.mxu0 0
        %1675 = vmatpush1.bf16.msra.mxu0 0
        %1676 = vmatprep.subr.bf16.mxu0 0
        %1677 = vmatpush1.bf16.msra.mxu0 0
        %1678 = vmatprep.subr.bf16.mxu0 0
        %1679 = vmatpush1.bf16.msra.mxu0 0
        %1680 = vmatprep.mubr.bf16.mxu0 0
        %1681 = vmatmul.mubr.bf16.gmra.mrb[0].mxu0 %v1646
        %v1682 = vpop.f32.mrb[0].mxu0
        %v1683 = vadd.f32 %v1632, %v1682
        %v1684 = vpop.f32.mrb[0].mxu0
        %v1685 = vpop.f32.mrb[0].mxu0
        %v1686 = vpop.f32.mrb[0].mxu0
        %1687 = vdwg.mxu0
        %v1688 = vmax.f32 %v1683, 0.0
        %v1689 = vpack.c.bf16 %v1688, %v1688
        %v1690 = vld [vmem:[%s7] sm:$0xf]
        %v1691 = vld [vmem:[%s7 + $0x4] sm:$0xf]
        %v1692 = vld [vmem:[%s7 + $0x8] sm:$0xf]
        %v1693 = vld [vmem:[%s7 + $0xc] sm:$0xf]
        %v1694 = vld [vmem:[%s7 + $0x10] sm:$0xf]
        %v1695 = vld [vmem:[%s7 + $0x14] sm:$0xf]
        %v1696 = vld [vmem:[%s7 + $0x18] sm:$0xf]
        %v1697 = vld [vmem:[%s7 + $0x1c] sm:$0xf]
        %v1698 = vlaneseq
        %v1699 = vshrl.u32 %v1698, 7
        %v1700 = vsub.s32 5, %v1699
        %v1701 = vrot.slane %v461, %v1700
        %v1710 = vunpack.c.l.b16 %v1690
        %v1711 = vunpack.c.l.b16 %v1691
        %v1712 = vunpack.c.l.b16 %v1692
        %v1713 = vunpack.c.l.b16 %v1693
        %v1714 = vunpack.c.l.b16 %v1694
        %v1715 = vunpack.c.l.b16 %v1695
        %v1716 = vunpack.c.l.b16 %v1696
        %v1717 = vunpack.c.l.b16 %v1697
        %v1718 = vpack.c.b16 %v1711, %v1710
        %v1719 = vpack.c.b16 %v1713, %v1712
        %v1720 = vpack.c.b16 %v1715, %v1714
        %v1721 = vpack.c.b16 %v1717, %v1716
        %vm1726 = vcmask 523264
        %v1728 = vsel %vm1726, %v1689, 0
        %1730 = vmatprep.subr.bf16.mxu0 0
        %1731 = vmatpush1.bf16.msra.mxu0 %v1718
        %1732 = vmatprep.subr.bf16.mxu0 0
        %1733 = vmatpush1.bf16.msra.mxu0 %v1719
        %1734 = vmatprep.subr.bf16.mxu0 0
        %1735 = vmatpush1.bf16.msra.mxu0 %v1720
        %1736 = vmatprep.subr.bf16.mxu0 0
        %1737 = vmatpush1.bf16.msra.mxu0 %v1721
        %1738 = vmatprep.subr.bf16.mxu0 0
        %1739 = vmatpush1.bf16.msra.mxu0 0
        %1740 = vmatprep.subr.bf16.mxu0 0
        %1741 = vmatpush1.bf16.msra.mxu0 0
        %1742 = vmatprep.subr.bf16.mxu0 0
        %1743 = vmatpush1.bf16.msra.mxu0 0
        %1744 = vmatprep.subr.bf16.mxu0 0
        %1745 = vmatpush1.bf16.msra.mxu0 0
        %1746 = vmatprep.subr.bf16.mxu0 0
        %1747 = vmatpush1.bf16.msra.mxu0 0
        %1748 = vmatprep.subr.bf16.mxu0 0
        %1749 = vmatpush1.bf16.msra.mxu0 0
        %1750 = vmatprep.subr.bf16.mxu0 0
        %1751 = vmatpush1.bf16.msra.mxu0 0
        %1752 = vmatprep.subr.bf16.mxu0 0
        %1753 = vmatpush1.bf16.msra.mxu0 0
        %1754 = vmatprep.subr.bf16.mxu0 0
        %1755 = vmatpush1.bf16.msra.mxu0 0
        %1756 = vmatprep.subr.bf16.mxu0 0
        %1757 = vmatpush1.bf16.msra.mxu0 0
        %1758 = vmatprep.subr.bf16.mxu0 0
        %1759 = vmatpush1.bf16.msra.mxu0 0
        %1760 = vmatprep.subr.bf16.mxu0 0
        %1761 = vmatpush1.bf16.msra.mxu0 0
        %1762 = vmatprep.mubr.bf16.mxu0 0
        %1763 = vmatmul.mubr.bf16.gmra.mrb[0].mxu0 %v1728
        %v1764 = vpop.f32.mrb[0].mxu0
        %v1765 = vadd.f32 %v1701, %v1764
        %v1766 = vpop.f32.mrb[0].mxu0
        %v1767 = vpop.f32.mrb[0].mxu0
        %v1768 = vpop.f32.mrb[0].mxu0
        %1769 = vdwg.mxu0
        %v1770 = vsel %vm479, %v1765, 0.0
        %1771 = vadd.xlane.f32.xlu0 %v1770
        %v1772 = vpop.xlane.xlu0 %1771
        %v1773 = vmul.f32 %v1772, %v1602
        %v1774 = vsub.f32 %v1765, %v1773
        %v1775 = vmul.f32 %v1774, %v1774
        %v1776 = vsel %vm479, %v1775, 0.0
        %1777 = vadd.xlane.f32.xlu0 %v1776
        %v1778 = vpop.xlane.xlu0 %1777
        %v1779 = vmul.f32 %v1778, %v1602
        %v1780 = vadd.f32 %v1779, 1e-05
        %v1781 = vrsqrt.pop %v1780
        %v1782 = vmul.f32 %v1774, %v1781
        %v1783 = vlaneseq
        %v1784 = vshrl.u32 %v1783, 7
        %v1785 = vsub.s32 3, %v1784
        %v1786 = vrot.slane %v461, %v1785
        %v1787 = vmul.f32 %v1782, %v1786
        %v1788 = vlaneseq
        %v1789 = vshrl.u32 %v1788, 7
        %v1790 = vsub.s32 4, %v1789
        %v1791 = vrot.slane %v461, %v1790
        %v1792 = vadd.f32 %v1787, %v1791
        %v1793 = vadd.f32 %v1623, %v1792
        %s1794 = scalar_lea.vmem %s5, 8
        %v1795 = vld [vmem:[%s1794] sm:$0x7f]
        %v1796 = vpack.c.bf16 %v1793, %v1793
        %s1797 = scalar_lea.vmem %s3, 16
        %v1798 = vld [vmem:[%s1797] sm:$0xf]
        %v1799 = vld [vmem:[%s1797 + $0x4] sm:$0xf]
        %v1800 = vld [vmem:[%s1797 + $0x8] sm:$0xf]
        %v1801 = vld [vmem:[%s1797 + $0xc] sm:$0xf]
        %v1806 = vunpack.c.l.b16 %v1798
        %v1807 = vunpack.c.l.b16 %v1799
        %v1808 = vunpack.c.l.b16 %v1800
        %v1809 = vunpack.c.l.b16 %v1801
        %v1810 = vpack.c.b16 %v1807, %v1806
        %v1811 = vpack.c.b16 %v1809, %v1808
        %v1815 = vsel %vm479, %v1796, 0
        %1817 = vmatprep.subr.bf16.mxu0 0
        %1818 = vmatpush1.bf16.msra.mxu0 %v1810
        %1819 = vmatprep.subr.bf16.mxu0 0
        %1820 = vmatpush1.bf16.msra.mxu0 %v1811
        %1821 = vmatprep.subr.bf16.mxu0 0
        %1822 = vmatpush1.bf16.msra.mxu0 0
        %1823 = vmatprep.subr.bf16.mxu0 0
        %1824 = vmatpush1.bf16.msra.mxu0 0
        %1825 = vmatprep.subr.bf16.mxu0 0
        %1826 = vmatpush1.bf16.msra.mxu0 0
        %1827 = vmatprep.subr.bf16.mxu0 0
        %1828 = vmatpush1.bf16.msra.mxu0 0
        %1829 = vmatprep.subr.bf16.mxu0 0
        %1830 = vmatpush1.bf16.msra.mxu0 0
        %1831 = vmatprep.subr.bf16.mxu0 0
        %1832 = vmatpush1.bf16.msra.mxu0 0
        %1833 = vmatprep.subr.bf16.mxu0 0
        %1834 = vmatpush1.bf16.msra.mxu0 0
        %1835 = vmatprep.subr.bf16.mxu0 0
        %1836 = vmatpush1.bf16.msra.mxu0 0
        %1837 = vmatprep.subr.bf16.mxu0 0
        %1838 = vmatpush1.bf16.msra.mxu0 0
        %1839 = vmatprep.subr.bf16.mxu0 0
        %1840 = vmatpush1.bf16.msra.mxu0 0
        %1841 = vmatprep.subr.bf16.mxu0 0
        %1842 = vmatpush1.bf16.msra.mxu0 0
        %1843 = vmatprep.subr.bf16.mxu0 0
        %1844 = vmatpush1.bf16.msra.mxu0 0
        %1845 = vmatprep.subr.bf16.mxu0 0
        %1846 = vmatpush1.bf16.msra.mxu0 0
        %1847 = vmatprep.subr.bf16.mxu0 0
        %1848 = vmatpush1.bf16.msra.mxu0 0
        %1849 = vmatprep.mubr.bf16.mxu0 0
        %1850 = vmatmul.mubr.bf16.gmra.mrb[0].mxu0 %v1815
        %v1851 = vpop.f32.mrb[0].mxu0
        %v1852 = vadd.f32 0.0, %v1851
        %v1853 = vpop.f32.mrb[0].mxu0
        %v1854 = vpop.f32.mrb[0].mxu0
        %v1855 = vpop.f32.mrb[0].mxu0
        %1856 = vdwg.mxu0
        %1858 = vrot.lane.b32.xlu0 %v1852, 120
        %v1859 = vpop.permute.xlu0 %1858
        %1861 = vrot.lane.b32.xlu0 %v1852, 112
        %v1862 = vpop.permute.xlu0 %1861
        %1864 = vrot.lane.b32.xlu0 %v1852, 104
        %v1865 = vpop.permute.xlu0 %1864
        %1867 = vrot.lane.b32.xlu0 %v1852, 96
        %v1868 = vpop.permute.xlu0 %1867
        %1870 = vrot.lane.b32.xlu0 %v1852, 88
        %v1871 = vpop.permute.xlu0 %1870
        %1873 = vrot.lane.b32.xlu0 %v1852, 80
        %v1874 = vpop.permute.xlu0 %1873
        %1876 = vrot.lane.b32.xlu0 %v1852, 72
        %v1877 = vpop.permute.xlu0 %1876
        %1879 = vrot.lane.b32.xlu0 %v1852, 64
        %v1880 = vpop.permute.xlu0 %1879
        %1882 = vrot.lane.b32.xlu0 %v1852, 56
        %v1883 = vpop.permute.xlu0 %1882
        %1885 = vrot.lane.b32.xlu0 %v1852, 48
        %v1886 = vpop.permute.xlu0 %1885
        %1888 = vrot.lane.b32.xlu0 %v1852, 40
        %v1889 = vpop.permute.xlu0 %1888
        %v1891 = vcombine.low %v1852, %v1862
        %v1892 = vcombine.high %v1852, %v1862
        %v1894 = vunpack.c.l.s4 1983009808
        %v1895 = vunpack.c.0.s8 %v1894
        %v1896 = vlaneseq
        %v1897 = vshrl.u32 %v1896, 7
        %v1898 = vsub.s32 %v1895, %v1897
        %v1899 = vrot.slane %v1891, %v1898
        %v1901 = vunpack.c.l.s4 1983009808
        %v1902 = vunpack.c.0.s8 %v1901
        %v1903 = vlaneseq
        %v1904 = vshrl.u32 %v1903, 7
        %v1905 = vsub.s32 %v1902, %v1904
        %v1906 = vrot.slane %v1892, %v1905
        %v1907 = vcombine.low %v1859, %v1865
        %v1908 = vcombine.high %v1859, %v1865
        %v1910 = vunpack.c.l.s4 1983009808
        %v1911 = vunpack.c.0.s8 %v1910
        %v1912 = vlaneseq
        %v1913 = vshrl.u32 %v1912, 7
        %v1914 = vsub.s32 %v1911, %v1913
        %v1915 = vrot.slane %v1907, %v1914
        %v1917 = vunpack.c.l.s4 1983009808
        %v1918 = vunpack.c.0.s8 %v1917
        %v1919 = vlaneseq
        %v1920 = vshrl.u32 %v1919, 7
        %v1921 = vsub.s32 %v1918, %v1920
        %v1922 = vrot.slane %v1908, %v1921
        %v1923 = vcombine.low %v1868, %v1874
        %v1924 = vcombine.high %v1868, %v1874
        %v1926 = vunpack.c.l.s4 1983009808
        %v1927 = vunpack.c.0.s8 %v1926
        %v1928 = vlaneseq
        %v1929 = vshrl.u32 %v1928, 7
        %v1930 = vsub.s32 %v1927, %v1929
        %v1931 = vrot.slane %v1923, %v1930
        %v1933 = vunpack.c.l.s4 1983009808
        %v1934 = vunpack.c.0.s8 %v1933
        %v1935 = vlaneseq
        %v1936 = vshrl.u32 %v1935, 7
        %v1937 = vsub.s32 %v1934, %v1936
        %v1938 = vrot.slane %v1924, %v1937
        %v1939 = vcombine.low %v1871, %v1877
        %v1940 = vcombine.high %v1871, %v1877
        %v1942 = vunpack.c.l.s4 1983009808
        %v1943 = vunpack.c.0.s8 %v1942
        %v1944 = vlaneseq
        %v1945 = vshrl.u32 %v1944, 7
        %v1946 = vsub.s32 %v1943, %v1945
        %v1947 = vrot.slane %v1939, %v1946
        %v1949 = vunpack.c.l.s4 1983009808
        %v1950 = vunpack.c.0.s8 %v1949
        %v1951 = vlaneseq
        %v1952 = vshrl.u32 %v1951, 7
        %v1953 = vsub.s32 %v1950, %v1952
        %v1954 = vrot.slane %v1940, %v1953
        %v1955 = vcombine.low %v1899, %v1915
        %v1956 = vcombine.high %v1899, %v1915
        %v1958 = vunpack.c.l.s4 1934713408
        %v1959 = vunpack.c.0.s8 %v1958
        %v1960 = vlaneseq
        %v1961 = vshrl.u32 %v1960, 7
        %v1962 = vsub.s32 %v1959, %v1961
        %v1963 = vrot.slane %v1955, %v1962
        %v1965 = vunpack.c.l.s4 1934713408
        %v1966 = vunpack.c.0.s8 %v1965
        %v1967 = vlaneseq
        %v1968 = vshrl.u32 %v1967, 7
        %v1969 = vsub.s32 %v1966, %v1968
        %v1970 = vrot.slane %v1956, %v1969
        %v1971 = vcombine.low %v1906, %v1922
        %v1972 = vcombine.high %v1906, %v1922
        %v1974 = vunpack.c.l.s4 1934713408
        %v1975 = vunpack.c.0.s8 %v1974
        %v1976 = vlaneseq
        %v1977 = vshrl.u32 %v1976, 7
        %v1978 = vsub.s32 %v1975, %v1977
        %v1979 = vrot.slane %v1971, %v1978
        %v1981 = vunpack.c.l.s4 1934713408
        %v1982 = vunpack.c.0.s8 %v1981
        %v1983 = vlaneseq
        %v1984 = vshrl.u32 %v1983, 7
        %v1985 = vsub.s32 %v1982, %v1984
        %v1986 = vrot.slane %v1972, %v1985
        %v1987 = vcombine.low %v1931, %v1947
        %v1988 = vcombine.high %v1931, %v1947
        %v1990 = vunpack.c.l.s4 1934713408
        %v1991 = vunpack.c.0.s8 %v1990
        %v1992 = vlaneseq
        %v1993 = vshrl.u32 %v1992, 7
        %v1994 = vsub.s32 %v1991, %v1993
        %v1995 = vrot.slane %v1987, %v1994
        %v1997 = vunpack.c.l.s4 1934713408
        %v1998 = vunpack.c.0.s8 %v1997
        %v1999 = vlaneseq
        %v2000 = vshrl.u32 %v1999, 7
        %v2001 = vsub.s32 %v1998, %v2000
        %v2002 = vrot.slane %v1988, %v2001
        %v2003 = vcombine.low %v1938, %v1954
        %v2004 = vcombine.high %v1938, %v1954
        %v2006 = vunpack.c.l.s4 1934713408
        %v2007 = vunpack.c.0.s8 %v2006
        %v2008 = vlaneseq
        %v2009 = vshrl.u32 %v2008, 7
        %v2010 = vsub.s32 %v2007, %v2009
        %v2011 = vrot.slane %v2003, %v2010
        %v2013 = vunpack.c.l.s4 1934713408
        %v2014 = vunpack.c.0.s8 %v2013
        %v2015 = vlaneseq
        %v2016 = vshrl.u32 %v2015, 7
        %v2017 = vsub.s32 %v2014, %v2016
        %v2018 = vrot.slane %v2004, %v2017
        %v2019 = vcombine.low %v1963, %v1995
        %v2020 = vcombine.high %v1963, %v1995
        %v2021 = vcombine.low %v1970, %v2002
        %v2022 = vcombine.high %v1970, %v2002
        %v2023 = vcombine.low %v1979, %v2011
        %v2024 = vcombine.high %v1979, %v2011
        %v2025 = vcombine.low %v1986, %v2018
        %v2026 = vcombine.high %v1986, %v2018
        %v2027 = vcombine.low %v1880, %v1886
        %v2028 = vcombine.high %v1880, %v1886
        %v2030 = vunpack.c.l.s4 1983009808
        %v2031 = vunpack.c.0.s8 %v2030
        %v2032 = vlaneseq
        %v2033 = vshrl.u32 %v2032, 7
        %v2034 = vsub.s32 %v2031, %v2033
        %v2035 = vrot.slane %v2027, %v2034
        %v2037 = vunpack.c.l.s4 1983009808
        %v2038 = vunpack.c.0.s8 %v2037
        %v2039 = vlaneseq
        %v2040 = vshrl.u32 %v2039, 7
        %v2041 = vsub.s32 %v2038, %v2040
        %v2042 = vrot.slane %v2028, %v2041
        %v2043 = vcombine.low %v1883, %v1889
        %v2044 = vcombine.high %v1883, %v1889
        %v2046 = vunpack.c.l.s4 1983009808
        %v2047 = vunpack.c.0.s8 %v2046
        %v2048 = vlaneseq
        %v2049 = vshrl.u32 %v2048, 7
        %v2050 = vsub.s32 %v2047, %v2049
        %v2051 = vrot.slane %v2043, %v2050
        %v2053 = vunpack.c.l.s4 1983009808
        %v2054 = vunpack.c.0.s8 %v2053
        %v2055 = vlaneseq
        %v2056 = vshrl.u32 %v2055, 7
        %v2057 = vsub.s32 %v2054, %v2056
        %v2058 = vrot.slane %v2044, %v2057
        %v2059 = vcombine.low %v2035, %v2051
        %v2060 = vcombine.high %v2035, %v2051
        %v2062 = vunpack.c.l.s4 1934713408
        %v2063 = vunpack.c.0.s8 %v2062
        %v2064 = vlaneseq
        %v2065 = vshrl.u32 %v2064, 7
        %v2066 = vsub.s32 %v2063, %v2065
        %v2067 = vrot.slane %v2059, %v2066
        %v2069 = vunpack.c.l.s4 1934713408
        %v2070 = vunpack.c.0.s8 %v2069
        %v2071 = vlaneseq
        %v2072 = vshrl.u32 %v2071, 7
        %v2073 = vsub.s32 %v2070, %v2072
        %v2074 = vrot.slane %v2060, %v2073
        %v2075 = vcombine.low %v2042, %v2058
        %v2076 = vcombine.high %v2042, %v2058
        %v2078 = vunpack.c.l.s4 1934713408
        %v2079 = vunpack.c.0.s8 %v2078
        %v2080 = vlaneseq
        %v2081 = vshrl.u32 %v2080, 7
        %v2082 = vsub.s32 %v2079, %v2081
        %v2083 = vrot.slane %v2075, %v2082
        %v2085 = vunpack.c.l.s4 1934713408
        %v2086 = vunpack.c.0.s8 %v2085
        %v2087 = vlaneseq
        %v2088 = vshrl.u32 %v2087, 7
        %v2089 = vsub.s32 %v2086, %v2088
        %v2090 = vrot.slane %v2076, %v2089
        %v2091 = vcombine.high %v2067, 0.0
        %v2092 = vcombine.high %v2074, 0.0
        %v2093 = vcombine.high %v2083, 0.0
        %v2094 = vcombine.high %v2090, 0.0
        %v2095 = vcombine.low %v2019, %v2021
        %v2096 = vcombine.high %v2019, %v2021
        %v2098 = vunpack.c.l.s4 1983009808
        %v2099 = vunpack.c.0.s8 %v2098
        %v2100 = vlaneseq
        %v2101 = vshrl.u32 %v2100, 7
        %v2102 = vsub.s32 %v2099, %v2101
        %v2103 = vrot.slane %v2095, %v2102
        %v2105 = vunpack.c.l.s4 1983009808
        %v2106 = vunpack.c.0.s8 %v2105
        %v2107 = vlaneseq
        %v2108 = vshrl.u32 %v2107, 7
        %v2109 = vsub.s32 %v2106, %v2108
        %v2110 = vrot.slane %v2096, %v2109
        %v2111 = vcombine.low %v2020, %v2022
        %v2112 = vcombine.high %v2020, %v2022
        %v2114 = vunpack.c.l.s4 1983009808
        %v2115 = vunpack.c.0.s8 %v2114
        %v2116 = vlaneseq
        %v2117 = vshrl.u32 %v2116, 7
        %v2118 = vsub.s32 %v2115, %v2117
        %v2119 = vrot.slane %v2111, %v2118
        %v2121 = vunpack.c.l.s4 1983009808
        %v2122 = vunpack.c.0.s8 %v2121
        %v2123 = vlaneseq
        %v2124 = vshrl.u32 %v2123, 7
        %v2125 = vsub.s32 %v2122, %v2124
        %v2126 = vrot.slane %v2112, %v2125
        %v2127 = vcombine.low %v2023, %v2025
        %v2128 = vcombine.high %v2023, %v2025
        %v2130 = vunpack.c.l.s4 1983009808
        %v2131 = vunpack.c.0.s8 %v2130
        %v2132 = vlaneseq
        %v2133 = vshrl.u32 %v2132, 7
        %v2134 = vsub.s32 %v2131, %v2133
        %v2135 = vrot.slane %v2127, %v2134
        %v2137 = vunpack.c.l.s4 1983009808
        %v2138 = vunpack.c.0.s8 %v2137
        %v2139 = vlaneseq
        %v2140 = vshrl.u32 %v2139, 7
        %v2141 = vsub.s32 %v2138, %v2140
        %v2142 = vrot.slane %v2128, %v2141
        %v2143 = vcombine.low %v2024, %v2026
        %v2144 = vcombine.high %v2024, %v2026
        %v2146 = vunpack.c.l.s4 1983009808
        %v2147 = vunpack.c.0.s8 %v2146
        %v2148 = vlaneseq
        %v2149 = vshrl.u32 %v2148, 7
        %v2150 = vsub.s32 %v2147, %v2149
        %v2151 = vrot.slane %v2143, %v2150
        %v2153 = vunpack.c.l.s4 1983009808
        %v2154 = vunpack.c.0.s8 %v2153
        %v2155 = vlaneseq
        %v2156 = vshrl.u32 %v2155, 7
        %v2157 = vsub.s32 %v2154, %v2156
        %v2158 = vrot.slane %v2144, %v2157
        %v2159 = vcombine.low %v2103, %v2119
        %v2160 = vcombine.high %v2103, %v2119
        %v2162 = vunpack.c.l.s4 1934713408
        %v2163 = vunpack.c.0.s8 %v2162
        %v2164 = vlaneseq
        %v2165 = vshrl.u32 %v2164, 7
        %v2166 = vsub.s32 %v2163, %v2165
        %v2167 = vrot.slane %v2159, %v2166
        %v2169 = vunpack.c.l.s4 1934713408
        %v2170 = vunpack.c.0.s8 %v2169
        %v2171 = vlaneseq
        %v2172 = vshrl.u32 %v2171, 7
        %v2173 = vsub.s32 %v2170, %v2172
        %v2174 = vrot.slane %v2160, %v2173
        %v2175 = vcombine.low %v2110, %v2126
        %v2176 = vcombine.high %v2110, %v2126
        %v2178 = vunpack.c.l.s4 1934713408
        %v2179 = vunpack.c.0.s8 %v2178
        %v2180 = vlaneseq
        %v2181 = vshrl.u32 %v2180, 7
        %v2182 = vsub.s32 %v2179, %v2181
        %v2183 = vrot.slane %v2175, %v2182
        %v2185 = vunpack.c.l.s4 1934713408
        %v2186 = vunpack.c.0.s8 %v2185
        %v2187 = vlaneseq
        %v2188 = vshrl.u32 %v2187, 7
        %v2189 = vsub.s32 %v2186, %v2188
        %v2190 = vrot.slane %v2176, %v2189
        %v2191 = vcombine.low %v2135, %v2151
        %v2192 = vcombine.high %v2135, %v2151
        %v2194 = vunpack.c.l.s4 1934713408
        %v2195 = vunpack.c.0.s8 %v2194
        %v2196 = vlaneseq
        %v2197 = vshrl.u32 %v2196, 7
        %v2198 = vsub.s32 %v2195, %v2197
        %v2199 = vrot.slane %v2191, %v2198
        %v2201 = vunpack.c.l.s4 1934713408
        %v2202 = vunpack.c.0.s8 %v2201
        %v2203 = vlaneseq
        %v2204 = vshrl.u32 %v2203, 7
        %v2205 = vsub.s32 %v2202, %v2204
        %v2206 = vrot.slane %v2192, %v2205
        %v2207 = vcombine.low %v2142, %v2158
        %v2208 = vcombine.high %v2142, %v2158
        %v2210 = vunpack.c.l.s4 1934713408
        %v2211 = vunpack.c.0.s8 %v2210
        %v2212 = vlaneseq
        %v2213 = vshrl.u32 %v2212, 7
        %v2214 = vsub.s32 %v2211, %v2213
        %v2215 = vrot.slane %v2207, %v2214
        %v2217 = vunpack.c.l.s4 1934713408
        %v2218 = vunpack.c.0.s8 %v2217
        %v2219 = vlaneseq
        %v2220 = vshrl.u32 %v2219, 7
        %v2221 = vsub.s32 %v2218, %v2220
        %v2222 = vrot.slane %v2208, %v2221
        %v2223 = vcombine.low %v2167, %v2199
        %v2224 = vcombine.high %v2167, %v2199
        %v2225 = vcombine.low %v2174, %v2206
        %v2226 = vcombine.high %v2174, %v2206
        %v2227 = vcombine.low %v2183, %v2215
        %v2228 = vcombine.high %v2183, %v2215
        %v2229 = vcombine.low %v2190, %v2222
        %v2230 = vcombine.high %v2190, %v2222
        %v2231 = vcombine.low %v2067, %v2074
        %v2233 = vunpack.c.l.s4 1983009808
        %v2234 = vunpack.c.0.s8 %v2233
        %v2235 = vlaneseq
        %v2236 = vshrl.u32 %v2235, 7
        %v2237 = vsub.s32 %v2234, %v2236
        %v2238 = vrot.slane %v2231, %v2237
        %v2239 = vcombine.low %v2091, %v2092
        %v2241 = vunpack.c.l.s4 1983009808
        %v2242 = vunpack.c.0.s8 %v2241
        %v2243 = vlaneseq
        %v2244 = vshrl.u32 %v2243, 7
        %v2245 = vsub.s32 %v2242, %v2244
        %v2246 = vrot.slane %v2239, %v2245
        %v2247 = vcombine.low %v2083, %v2090
        %v2249 = vunpack.c.l.s4 1983009808
        %v2250 = vunpack.c.0.s8 %v2249
        %v2251 = vlaneseq
        %v2252 = vshrl.u32 %v2251, 7
        %v2253 = vsub.s32 %v2250, %v2252
        %v2254 = vrot.slane %v2247, %v2253
        %v2255 = vcombine.low %v2093, %v2094
        %v2257 = vunpack.c.l.s4 1983009808
        %v2258 = vunpack.c.0.s8 %v2257
        %v2259 = vlaneseq
        %v2260 = vshrl.u32 %v2259, 7
        %v2261 = vsub.s32 %v2258, %v2260
        %v2262 = vrot.slane %v2255, %v2261
        %v2263 = vcombine.low %v2238, %v2246
        %v2264 = vcombine.high %v2238, %v2246
        %v2266 = vunpack.c.l.s4 1934713408
        %v2267 = vunpack.c.0.s8 %v2266
        %v2268 = vlaneseq
        %v2269 = vshrl.u32 %v2268, 7
        %v2270 = vsub.s32 %v2267, %v2269
        %v2271 = vrot.slane %v2263, %v2270
        %v2273 = vunpack.c.l.s4 1934713408
        %v2274 = vunpack.c.0.s8 %v2273
        %v2275 = vlaneseq
        %v2276 = vshrl.u32 %v2275, 7
        %v2277 = vsub.s32 %v2274, %v2276
        %v2278 = vrot.slane %v2264, %v2277
        %v2279 = vcombine.low %v2254, %v2262
        %v2280 = vcombine.high %v2254, %v2262
        %v2282 = vunpack.c.l.s4 1934713408
        %v2283 = vunpack.c.0.s8 %v2282
        %v2284 = vlaneseq
        %v2285 = vshrl.u32 %v2284, 7
        %v2286 = vsub.s32 %v2283, %v2285
        %v2287 = vrot.slane %v2279, %v2286
        %v2289 = vunpack.c.l.s4 1934713408
        %v2290 = vunpack.c.0.s8 %v2289
        %v2291 = vlaneseq
        %v2292 = vshrl.u32 %v2291, 7
        %v2293 = vsub.s32 %v2290, %v2292
        %v2294 = vrot.slane %v2280, %v2293
        %v2295 = vcombine.low %v2271, %v2287
        %v2296 = vcombine.high %v2271, %v2287
        %v2297 = vcombine.low %v2278, %v2294
        %v2298 = vcombine.high %v2278, %v2294
        %v2299 = vpack.c.bf16 %v2227, %v2227
        %v2300 = vpack.c.bf16 %v2228, %v2228
        %v2301 = vpack.c.bf16 %v2229, %v2229
        %v2302 = vpack.c.bf16 %v2230, %v2230
        %v2303 = vpack.c.bf16 %v2223, %v2223
        %v2304 = vpack.c.bf16 %v2224, %v2224
        %v2305 = vpack.c.bf16 %v2225, %v2225
        %v2306 = vpack.c.bf16 %v2226, %v2226
        %v2308 = vsel %vm973, %v2299, 0
        %v2311 = vsel %vm973, %v2303, 0
        %2313 = vmatprep.subr.bf16.mxu0 0
        %2314 = vmatpush1.bf16.xpose.msra.mxu0 %v2311
        %2315 = vmatprep.subr.bf16.mxu0 0
        %2316 = vmatpush1.bf16.xpose.msra.mxu0 0
        %2317 = vmatprep.subr.bf16.mxu0 0
        %2318 = vmatpush1.bf16.xpose.msra.mxu0 0
        %2319 = vmatprep.subr.bf16.mxu0 0
        %2320 = vmatpush1.bf16.xpose.msra.mxu0 0
        %2321 = vmatprep.subr.bf16.mxu0 0
        %2322 = vmatpush1.bf16.xpose.msra.mxu0 0
        %2323 = vmatprep.subr.bf16.mxu0 0
        %2324 = vmatpush1.bf16.xpose.msra.mxu0 0
        %2325 = vmatprep.subr.bf16.mxu0 0
        %2326 = vmatpush1.bf16.xpose.msra.mxu0 0
        %2327 = vmatprep.subr.bf16.mxu0 0
        %2328 = vmatpush1.bf16.xpose.msra.mxu0 0
        %2329 = vmatprep.subr.bf16.mxu0 0
        %2330 = vmatpush1.bf16.xpose.msra.mxu0 0
        %2331 = vmatprep.subr.bf16.mxu0 0
        %2332 = vmatpush1.bf16.xpose.msra.mxu0 0
        %2333 = vmatprep.subr.bf16.mxu0 0
        %2334 = vmatpush1.bf16.xpose.msra.mxu0 0
        %2335 = vmatprep.subr.bf16.mxu0 0
        %2336 = vmatpush1.bf16.xpose.msra.mxu0 0
        %2337 = vmatprep.subr.bf16.mxu0 0
        %2338 = vmatpush1.bf16.xpose.msra.mxu0 0
        %2339 = vmatprep.subr.bf16.mxu0 0
        %2340 = vmatpush1.bf16.xpose.msra.mxu0 0
        %2341 = vmatprep.subr.bf16.mxu0 0
        %2342 = vmatpush1.bf16.xpose.msra.mxu0 0
        %2343 = vmatprep.subr.bf16.mxu0 0
        %2344 = vmatpush1.bf16.xpose.msra.mxu0 0
        %2345 = vmatprep.mubr.bf16.mxu0 0
        %2346 = vmatmul.mubr.bf16.gmra.mrb[0].mxu0 %v2308
        %v2347 = vpop.f32.mrb[0].mxu0
        %v2348 = vadd.f32 %v460, %v2347
        %v2349 = vpop.f32.mrb[0].mxu0
        %v2350 = vpop.f32.mrb[0].mxu0
        %v2351 = vpop.f32.mrb[0].mxu0
        %2352 = vdwg.mxu0
        %v2354 = vsel %vm973, %v2300, 0
        %v2357 = vsel %vm973, %v2304, 0
        %2359 = vmatprep.subr.bf16.mxu0 0
        %2360 = vmatpush1.bf16.xpose.msra.mxu0 %v2357
        %2361 = vmatprep.subr.bf16.mxu0 0
        %2362 = vmatpush1.bf16.xpose.msra.mxu0 0
        %2363 = vmatprep.subr.bf16.mxu0 0
        %2364 = vmatpush1.bf16.xpose.msra.mxu0 0
        %2365 = vmatprep.subr.bf16.mxu0 0
        %2366 = vmatpush1.bf16.xpose.msra.mxu0 0
        %2367 = vmatprep.subr.bf16.mxu0 0
        %2368 = vmatpush1.bf16.xpose.msra.mxu0 0
        %2369 = vmatprep.subr.bf16.mxu0 0
        %2370 = vmatpush1.bf16.xpose.msra.mxu0 0
        %2371 = vmatprep.subr.bf16.mxu0 0
        %2372 = vmatpush1.bf16.xpose.msra.mxu0 0
        %2373 = vmatprep.subr.bf16.mxu0 0
        %2374 = vmatpush1.bf16.xpose.msra.mxu0 0
        %2375 = vmatprep.subr.bf16.mxu0 0
        %2376 = vmatpush1.bf16.xpose.msra.mxu0 0
        %2377 = vmatprep.subr.bf16.mxu0 0
        %2378 = vmatpush1.bf16.xpose.msra.mxu0 0
        %2379 = vmatprep.subr.bf16.mxu0 0
        %2380 = vmatpush1.bf16.xpose.msra.mxu0 0
        %2381 = vmatprep.subr.bf16.mxu0 0
        %2382 = vmatpush1.bf16.xpose.msra.mxu0 0
        %2383 = vmatprep.subr.bf16.mxu0 0
        %2384 = vmatpush1.bf16.xpose.msra.mxu0 0
        %2385 = vmatprep.subr.bf16.mxu0 0
        %2386 = vmatpush1.bf16.xpose.msra.mxu0 0
        %2387 = vmatprep.subr.bf16.mxu0 0
        %2388 = vmatpush1.bf16.xpose.msra.mxu0 0
        %2389 = vmatprep.subr.bf16.mxu0 0
        %2390 = vmatpush1.bf16.xpose.msra.mxu0 0
        %2391 = vmatprep.mubr.bf16.mxu0 0
        %2392 = vmatmul.mubr.bf16.gmra.mrb[0].mxu0 %v2354
        %v2393 = vpop.f32.mrb[0].mxu0
        %v2394 = vadd.f32 %v460, %v2393
        %v2395 = vpop.f32.mrb[0].mxu0
        %v2396 = vpop.f32.mrb[0].mxu0
        %v2397 = vpop.f32.mrb[0].mxu0
        %2398 = vdwg.mxu0
        %v2400 = vsel %vm973, %v2301, 0
        %v2403 = vsel %vm973, %v2305, 0
        %2405 = vmatprep.subr.bf16.mxu0 0
        %2406 = vmatpush1.bf16.xpose.msra.mxu0 %v2403
        %2407 = vmatprep.subr.bf16.mxu0 0
        %2408 = vmatpush1.bf16.xpose.msra.mxu0 0
        %2409 = vmatprep.subr.bf16.mxu0 0
        %2410 = vmatpush1.bf16.xpose.msra.mxu0 0
        %2411 = vmatprep.subr.bf16.mxu0 0
        %2412 = vmatpush1.bf16.xpose.msra.mxu0 0
        %2413 = vmatprep.subr.bf16.mxu0 0
        %2414 = vmatpush1.bf16.xpose.msra.mxu0 0
        %2415 = vmatprep.subr.bf16.mxu0 0
        %2416 = vmatpush1.bf16.xpose.msra.mxu0 0
        %2417 = vmatprep.subr.bf16.mxu0 0
        %2418 = vmatpush1.bf16.xpose.msra.mxu0 0
        %2419 = vmatprep.subr.bf16.mxu0 0
        %2420 = vmatpush1.bf16.xpose.msra.mxu0 0
        %2421 = vmatprep.subr.bf16.mxu0 0
        %2422 = vmatpush1.bf16.xpose.msra.mxu0 0
        %2423 = vmatprep.subr.bf16.mxu0 0
        %2424 = vmatpush1.bf16.xpose.msra.mxu0 0
        %2425 = vmatprep.subr.bf16.mxu0 0
        %2426 = vmatpush1.bf16.xpose.msra.mxu0 0
        %2427 = vmatprep.subr.bf16.mxu0 0
        %2428 = vmatpush1.bf16.xpose.msra.mxu0 0
        %2429 = vmatprep.subr.bf16.mxu0 0
        %2430 = vmatpush1.bf16.xpose.msra.mxu0 0
        %2431 = vmatprep.subr.bf16.mxu0 0
        %2432 = vmatpush1.bf16.xpose.msra.mxu0 0
        %2433 = vmatprep.subr.bf16.mxu0 0
        %2434 = vmatpush1.bf16.xpose.msra.mxu0 0
        %2435 = vmatprep.subr.bf16.mxu0 0
        %2436 = vmatpush1.bf16.xpose.msra.mxu0 0
        %2437 = vmatprep.mubr.bf16.mxu0 0
        %2438 = vmatmul.mubr.bf16.gmra.mrb[0].mxu0 %v2400
        %v2439 = vpop.f32.mrb[0].mxu0
        %v2440 = vadd.f32 %v460, %v2439
        %v2441 = vpop.f32.mrb[0].mxu0
        %v2442 = vpop.f32.mrb[0].mxu0
        %v2443 = vpop.f32.mrb[0].mxu0
        %2444 = vdwg.mxu0
        %v2446 = vsel %vm973, %v2302, 0
        %v2449 = vsel %vm973, %v2306, 0
        %2451 = vmatprep.subr.bf16.mxu0 0
        %2452 = vmatpush1.bf16.xpose.msra.mxu0 %v2449
        %2453 = vmatprep.subr.bf16.mxu0 0
        %2454 = vmatpush1.bf16.xpose.msra.mxu0 0
        %2455 = vmatprep.subr.bf16.mxu0 0
        %2456 = vmatpush1.bf16.xpose.msra.mxu0 0
        %2457 = vmatprep.subr.bf16.mxu0 0
        %2458 = vmatpush1.bf16.xpose.msra.mxu0 0
        %2459 = vmatprep.subr.bf16.mxu0 0
        %2460 = vmatpush1.bf16.xpose.msra.mxu0 0
        %2461 = vmatprep.subr.bf16.mxu0 0
        %2462 = vmatpush1.bf16.xpose.msra.mxu0 0
        %2463 = vmatprep.subr.bf16.mxu0 0
        %2464 = vmatpush1.bf16.xpose.msra.mxu0 0
        %2465 = vmatprep.subr.bf16.mxu0 0
        %2466 = vmatpush1.bf16.xpose.msra.mxu0 0
        %2467 = vmatprep.subr.bf16.mxu0 0
        %2468 = vmatpush1.bf16.xpose.msra.mxu0 0
        %2469 = vmatprep.subr.bf16.mxu0 0
        %2470 = vmatpush1.bf16.xpose.msra.mxu0 0
        %2471 = vmatprep.subr.bf16.mxu0 0
        %2472 = vmatpush1.bf16.xpose.msra.mxu0 0
        %2473 = vmatprep.subr.bf16.mxu0 0
        %2474 = vmatpush1.bf16.xpose.msra.mxu0 0
        %2475 = vmatprep.subr.bf16.mxu0 0
        %2476 = vmatpush1.bf16.xpose.msra.mxu0 0
        %2477 = vmatprep.subr.bf16.mxu0 0
        %2478 = vmatpush1.bf16.xpose.msra.mxu0 0
        %2479 = vmatprep.subr.bf16.mxu0 0
        %2480 = vmatpush1.bf16.xpose.msra.mxu0 0
        %2481 = vmatprep.subr.bf16.mxu0 0
        %2482 = vmatpush1.bf16.xpose.msra.mxu0 0
        %2483 = vmatprep.mubr.bf16.mxu0 0
        %2484 = vmatmul.mubr.bf16.gmra.mrb[0].mxu0 %v2446
        %v2485 = vpop.f32.mrb[0].mxu0
        %v2486 = vadd.f32 %v460, %v2485
        %v2487 = vpop.f32.mrb[0].mxu0
        %v2488 = vpop.f32.mrb[0].mxu0
        %v2489 = vpop.f32.mrb[0].mxu0
        %2490 = vdwg.mxu0
        %v2491 = vsel %vm973, %v2348, -inf
        %2492 = vmax.xlane.f32.xlu0 %v2491
        %v2493 = vpop.xlane.xlu0 %2492
        %v2494 = vsel %vm973, %v2394, -inf
        %2495 = vmax.xlane.f32.xlu0 %v2494
        %v2496 = vpop.xlane.xlu0 %2495
        %v2497 = vsel %vm973, %v2440, -inf
        %2498 = vmax.xlane.f32.xlu0 %v2497
        %v2499 = vpop.xlane.xlu0 %2498
        %v2500 = vsel %vm973, %v2486, -inf
        %2501 = vmax.xlane.f32.xlu0 %v2500
        %v2502 = vpop.xlane.xlu0 %2501
        %v2503 = vsub.f32 %v2348, %v2493
        %v2504 = vsub.f32 %v2394, %v2496
        %v2505 = vsub.f32 %v2440, %v2499
        %v2506 = vsub.f32 %v2486, %v2502
        %v2507 = vmul.f32 %v2503, 1.442695
        %v2508 = vpow.pop %v2507
        %v2509 = vmul.f32 %v2504, 1.442695
        %v2510 = vpow.pop %v2509
        %v2511 = vmul.f32 %v2505, 1.442695
        %v2512 = vpow.pop %v2511
        %v2513 = vmul.f32 %v2506, 1.442695
        %v2514 = vpow.pop %v2513
        %v2515 = vsel %vm973, %v2508, 0.0
        %2516 = vadd.xlane.f32.xlu0 %v2515
        %v2517 = vpop.xlane.xlu0 %2516
        %v2518 = vsel %vm973, %v2510, 0.0
        %2519 = vadd.xlane.f32.xlu0 %v2518
        %v2520 = vpop.xlane.xlu0 %2519
        %v2521 = vsel %vm973, %v2512, 0.0
        %2522 = vadd.xlane.f32.xlu0 %v2521
        %v2523 = vpop.xlane.xlu0 %2522
        %v2524 = vsel %vm973, %v2514, 0.0
        %2525 = vadd.xlane.f32.xlu0 %v2524
        %v2526 = vpop.xlane.xlu0 %2525
        %v2527 = vrcp.pop %v2517
        %v2528 = vrcp.pop %v2520
        %v2529 = vrcp.pop %v2523
        %v2530 = vrcp.pop %v2526
        %v2531 = vmul.f32 %v2508, %v2527
        %v2532 = vmul.f32 %v2510, %v2528
        %v2533 = vmul.f32 %v2512, %v2529
        %v2534 = vmul.f32 %v2514, %v2530
        %v2535 = vpack.c.bf16 %v2531, %v2531
        %v2536 = vpack.c.bf16 %v2532, %v2532
        %v2537 = vpack.c.bf16 %v2533, %v2533
        %v2538 = vpack.c.bf16 %v2534, %v2534
        %v2539 = vpack.c.bf16 %v2295, %v2295
        %v2540 = vpack.c.bf16 %v2296, %v2296
        %v2541 = vpack.c.bf16 %v2297, %v2297
        %v2542 = vpack.c.bf16 %v2298, %v2298
        %v2544 = vsel %vm973, %v2535, 0
        %v2547 = vsel %vm1213, %v2539, 0
        %2549 = vmatprep.subr.bf16.mxu0 0
        %2550 = vmatpush1.bf16.msra.mxu0 %v2547
        %2551 = vmatprep.subr.bf16.mxu0 0
        %2552 = vmatpush1.bf16.msra.mxu0 0
        %2553 = vmatprep.subr.bf16.mxu0 0
        %2554 = vmatpush1.bf16.msra.mxu0 0
        %2555 = vmatprep.subr.bf16.mxu0 0
        %2556 = vmatpush1.bf16.msra.mxu0 0
        %2557 = vmatprep.subr.bf16.mxu0 0
        %2558 = vmatpush1.bf16.msra.mxu0 0
        %2559 = vmatprep.subr.bf16.mxu0 0
        %2560 = vmatpush1.bf16.msra.mxu0 0
        %2561 = vmatprep.subr.bf16.mxu0 0
        %2562 = vmatpush1.bf16.msra.mxu0 0
        %2563 = vmatprep.subr.bf16.mxu0 0
        %2564 = vmatpush1.bf16.msra.mxu0 0
        %2565 = vmatprep.subr.bf16.mxu0 0
        %2566 = vmatpush1.bf16.msra.mxu0 0
        %2567 = vmatprep.subr.bf16.mxu0 0
        %2568 = vmatpush1.bf16.msra.mxu0 0
        %2569 = vmatprep.subr.bf16.mxu0 0
        %2570 = vmatpush1.bf16.msra.mxu0 0
        %2571 = vmatprep.subr.bf16.mxu0 0
        %2572 = vmatpush1.bf16.msra.mxu0 0
        %2573 = vmatprep.subr.bf16.mxu0 0
        %2574 = vmatpush1.bf16.msra.mxu0 0
        %2575 = vmatprep.subr.bf16.mxu0 0
        %2576 = vmatpush1.bf16.msra.mxu0 0
        %2577 = vmatprep.subr.bf16.mxu0 0
        %2578 = vmatpush1.bf16.msra.mxu0 0
        %2579 = vmatprep.subr.bf16.mxu0 0
        %2580 = vmatpush1.bf16.msra.mxu0 0
        %2581 = vmatprep.mubr.bf16.mxu0 0
        %2582 = vmatmul.mubr.bf16.gmra.mrb[0].mxu0 %v2544
        %v2583 = vpop.f32.mrb[0].mxu0
        %v2584 = vadd.f32 0.0, %v2583
        %v2585 = vpop.f32.mrb[0].mxu0
        %v2586 = vpop.f32.mrb[0].mxu0
        %v2587 = vpop.f32.mrb[0].mxu0
        %2588 = vdwg.mxu0
        %v2590 = vsel %vm973, %v2536, 0
        %v2593 = vsel %vm1213, %v2540, 0
        %2595 = vmatprep.subr.bf16.mxu0 0
        %2596 = vmatpush1.bf16.msra.mxu0 %v2593
        %2597 = vmatprep.subr.bf16.mxu0 0
        %2598 = vmatpush1.bf16.msra.mxu0 0
        %2599 = vmatprep.subr.bf16.mxu0 0
        %2600 = vmatpush1.bf16.msra.mxu0 0
        %2601 = vmatprep.subr.bf16.mxu0 0
        %2602 = vmatpush1.bf16.msra.mxu0 0
        %2603 = vmatprep.subr.bf16.mxu0 0
        %2604 = vmatpush1.bf16.msra.mxu0 0
        %2605 = vmatprep.subr.bf16.mxu0 0
        %2606 = vmatpush1.bf16.msra.mxu0 0
        %2607 = vmatprep.subr.bf16.mxu0 0
        %2608 = vmatpush1.bf16.msra.mxu0 0
        %2609 = vmatprep.subr.bf16.mxu0 0
        %2610 = vmatpush1.bf16.msra.mxu0 0
        %2611 = vmatprep.subr.bf16.mxu0 0
        %2612 = vmatpush1.bf16.msra.mxu0 0
        %2613 = vmatprep.subr.bf16.mxu0 0
        %2614 = vmatpush1.bf16.msra.mxu0 0
        %2615 = vmatprep.subr.bf16.mxu0 0
        %2616 = vmatpush1.bf16.msra.mxu0 0
        %2617 = vmatprep.subr.bf16.mxu0 0
        %2618 = vmatpush1.bf16.msra.mxu0 0
        %2619 = vmatprep.subr.bf16.mxu0 0
        %2620 = vmatpush1.bf16.msra.mxu0 0
        %2621 = vmatprep.subr.bf16.mxu0 0
        %2622 = vmatpush1.bf16.msra.mxu0 0
        %2623 = vmatprep.subr.bf16.mxu0 0
        %2624 = vmatpush1.bf16.msra.mxu0 0
        %2625 = vmatprep.subr.bf16.mxu0 0
        %2626 = vmatpush1.bf16.msra.mxu0 0
        %2627 = vmatprep.mubr.bf16.mxu0 0
        %2628 = vmatmul.mubr.bf16.gmra.mrb[0].mxu0 %v2590
        %v2629 = vpop.f32.mrb[0].mxu0
        %v2630 = vadd.f32 0.0, %v2629
        %v2631 = vpop.f32.mrb[0].mxu0
        %v2632 = vpop.f32.mrb[0].mxu0
        %v2633 = vpop.f32.mrb[0].mxu0
        %2634 = vdwg.mxu0
        %v2636 = vsel %vm973, %v2537, 0
        %v2639 = vsel %vm1213, %v2541, 0
        %2641 = vmatprep.subr.bf16.mxu0 0
        %2642 = vmatpush1.bf16.msra.mxu0 %v2639
        %2643 = vmatprep.subr.bf16.mxu0 0
        %2644 = vmatpush1.bf16.msra.mxu0 0
        %2645 = vmatprep.subr.bf16.mxu0 0
        %2646 = vmatpush1.bf16.msra.mxu0 0
        %2647 = vmatprep.subr.bf16.mxu0 0
        %2648 = vmatpush1.bf16.msra.mxu0 0
        %2649 = vmatprep.subr.bf16.mxu0 0
        %2650 = vmatpush1.bf16.msra.mxu0 0
        %2651 = vmatprep.subr.bf16.mxu0 0
        %2652 = vmatpush1.bf16.msra.mxu0 0
        %2653 = vmatprep.subr.bf16.mxu0 0
        %2654 = vmatpush1.bf16.msra.mxu0 0
        %2655 = vmatprep.subr.bf16.mxu0 0
        %2656 = vmatpush1.bf16.msra.mxu0 0
        %2657 = vmatprep.subr.bf16.mxu0 0
        %2658 = vmatpush1.bf16.msra.mxu0 0
        %2659 = vmatprep.subr.bf16.mxu0 0
        %2660 = vmatpush1.bf16.msra.mxu0 0
        %2661 = vmatprep.subr.bf16.mxu0 0
        %2662 = vmatpush1.bf16.msra.mxu0 0
        %2663 = vmatprep.subr.bf16.mxu0 0
        %2664 = vmatpush1.bf16.msra.mxu0 0
        %2665 = vmatprep.subr.bf16.mxu0 0
        %2666 = vmatpush1.bf16.msra.mxu0 0
        %2667 = vmatprep.subr.bf16.mxu0 0
        %2668 = vmatpush1.bf16.msra.mxu0 0
        %2669 = vmatprep.subr.bf16.mxu0 0
        %2670 = vmatpush1.bf16.msra.mxu0 0
        %2671 = vmatprep.subr.bf16.mxu0 0
        %2672 = vmatpush1.bf16.msra.mxu0 0
        %2673 = vmatprep.mubr.bf16.mxu0 0
        %2674 = vmatmul.mubr.bf16.gmra.mrb[0].mxu0 %v2636
        %v2675 = vpop.f32.mrb[0].mxu0
        %v2676 = vadd.f32 0.0, %v2675
        %v2677 = vpop.f32.mrb[0].mxu0
        %v2678 = vpop.f32.mrb[0].mxu0
        %v2679 = vpop.f32.mrb[0].mxu0
        %2680 = vdwg.mxu0
        %v2682 = vsel %vm973, %v2538, 0
        %v2685 = vsel %vm1213, %v2542, 0
        %2687 = vmatprep.subr.bf16.mxu0 0
        %2688 = vmatpush1.bf16.msra.mxu0 %v2685
        %2689 = vmatprep.subr.bf16.mxu0 0
        %2690 = vmatpush1.bf16.msra.mxu0 0
        %2691 = vmatprep.subr.bf16.mxu0 0
        %2692 = vmatpush1.bf16.msra.mxu0 0
        %2693 = vmatprep.subr.bf16.mxu0 0
        %2694 = vmatpush1.bf16.msra.mxu0 0
        %2695 = vmatprep.subr.bf16.mxu0 0
        %2696 = vmatpush1.bf16.msra.mxu0 0
        %2697 = vmatprep.subr.bf16.mxu0 0
        %2698 = vmatpush1.bf16.msra.mxu0 0
        %2699 = vmatprep.subr.bf16.mxu0 0
        %2700 = vmatpush1.bf16.msra.mxu0 0
        %2701 = vmatprep.subr.bf16.mxu0 0
        %2702 = vmatpush1.bf16.msra.mxu0 0
        %2703 = vmatprep.subr.bf16.mxu0 0
        %2704 = vmatpush1.bf16.msra.mxu0 0
        %2705 = vmatprep.subr.bf16.mxu0 0
        %2706 = vmatpush1.bf16.msra.mxu0 0
        %2707 = vmatprep.subr.bf16.mxu0 0
        %2708 = vmatpush1.bf16.msra.mxu0 0
        %2709 = vmatprep.subr.bf16.mxu0 0
        %2710 = vmatpush1.bf16.msra.mxu0 0
        %2711 = vmatprep.subr.bf16.mxu0 0
        %2712 = vmatpush1.bf16.msra.mxu0 0
        %2713 = vmatprep.subr.bf16.mxu0 0
        %2714 = vmatpush1.bf16.msra.mxu0 0
        %2715 = vmatprep.subr.bf16.mxu0 0
        %2716 = vmatpush1.bf16.msra.mxu0 0
        %2717 = vmatprep.subr.bf16.mxu0 0
        %2718 = vmatpush1.bf16.msra.mxu0 0
        %2719 = vmatprep.mubr.bf16.mxu0 0
        %2720 = vmatmul.mubr.bf16.gmra.mrb[0].mxu0 %v2682
        %v2721 = vpop.f32.mrb[0].mxu0
        %v2722 = vadd.f32 0.0, %v2721
        %v2723 = vpop.f32.mrb[0].mxu0
        %v2724 = vpop.f32.mrb[0].mxu0
        %v2725 = vpop.f32.mrb[0].mxu0
        %2726 = vdwg.mxu0
        %v2727 = vpack.c.bf16 %v2584, %v2584
        %v2728 = vpack.c.bf16 %v2630, %v2630
        %v2729 = vpack.c.bf16 %v2676, %v2676
        %v2730 = vpack.c.bf16 %v2722, %v2722
        %s2731 = scalar_lea.vmem %s4, 16
        %v2732 = vld [vmem:[%s2731] sm:$0xf]
        %v2733 = vld [vmem:[%s2731 + $0x4] sm:$0xf]
        %v2734 = vld [vmem:[%s2731 + $0x8] sm:$0xf]
        %v2735 = vld [vmem:[%s2731 + $0xc] sm:$0xf]
        %v2737 = vsel %vm973, %v2727, 0
        %v2740 = vsel %vm1213, %v2732, 0
        %2742 = vmatprep.subr.bf16.mxu0 0
        %2743 = vmatpush1.bf16.msra.mxu0 %v2740
        %2744 = vmatprep.subr.bf16.mxu0 0
        %2745 = vmatpush1.bf16.msra.mxu0 0
        %2746 = vmatprep.subr.bf16.mxu0 0
        %2747 = vmatpush1.bf16.msra.mxu0 0
        %2748 = vmatprep.subr.bf16.mxu0 0
        %2749 = vmatpush1.bf16.msra.mxu0 0
        %2750 = vmatprep.subr.bf16.mxu0 0
        %2751 = vmatpush1.bf16.msra.mxu0 0
        %2752 = vmatprep.subr.bf16.mxu0 0
        %2753 = vmatpush1.bf16.msra.mxu0 0
        %2754 = vmatprep.subr.bf16.mxu0 0
        %2755 = vmatpush1.bf16.msra.mxu0 0
        %2756 = vmatprep.subr.bf16.mxu0 0
        %2757 = vmatpush1.bf16.msra.mxu0 0
        %2758 = vmatprep.subr.bf16.mxu0 0
        %2759 = vmatpush1.bf16.msra.mxu0 0
        %2760 = vmatprep.subr.bf16.mxu0 0
        %2761 = vmatpush1.bf16.msra.mxu0 0
        %2762 = vmatprep.subr.bf16.mxu0 0
        %2763 = vmatpush1.bf16.msra.mxu0 0
        %2764 = vmatprep.subr.bf16.mxu0 0
        %2765 = vmatpush1.bf16.msra.mxu0 0
        %2766 = vmatprep.subr.bf16.mxu0 0
        %2767 = vmatpush1.bf16.msra.mxu0 0
        %2768 = vmatprep.subr.bf16.mxu0 0
        %2769 = vmatpush1.bf16.msra.mxu0 0
        %2770 = vmatprep.subr.bf16.mxu0 0
        %2771 = vmatpush1.bf16.msra.mxu0 0
        %2772 = vmatprep.subr.bf16.mxu0 0
        %2773 = vmatpush1.bf16.msra.mxu0 0
        %2774 = vmatprep.mubr.bf16.mxu0 0
        %2775 = vmatmul.mubr.bf16.gmra.mrb[0].mxu0 %v2737
        %v2776 = vpop.f32.mrb[0].mxu0
        %v2777 = vadd.f32 0.0, %v2776
        %v2778 = vpop.f32.mrb[0].mxu0
        %v2779 = vpop.f32.mrb[0].mxu0
        %v2780 = vpop.f32.mrb[0].mxu0
        %2781 = vdwg.mxu0
        %v2783 = vsel %vm973, %v2728, 0
        %v2786 = vsel %vm1213, %v2733, 0
        %2788 = vmatprep.subr.bf16.mxu0 0
        %2789 = vmatpush1.bf16.msra.mxu0 %v2786
        %2790 = vmatprep.subr.bf16.mxu0 0
        %2791 = vmatpush1.bf16.msra.mxu0 0
        %2792 = vmatprep.subr.bf16.mxu0 0
        %2793 = vmatpush1.bf16.msra.mxu0 0
        %2794 = vmatprep.subr.bf16.mxu0 0
        %2795 = vmatpush1.bf16.msra.mxu0 0
        %2796 = vmatprep.subr.bf16.mxu0 0
        %2797 = vmatpush1.bf16.msra.mxu0 0
        %2798 = vmatprep.subr.bf16.mxu0 0
        %2799 = vmatpush1.bf16.msra.mxu0 0
        %2800 = vmatprep.subr.bf16.mxu0 0
        %2801 = vmatpush1.bf16.msra.mxu0 0
        %2802 = vmatprep.subr.bf16.mxu0 0
        %2803 = vmatpush1.bf16.msra.mxu0 0
        %2804 = vmatprep.subr.bf16.mxu0 0
        %2805 = vmatpush1.bf16.msra.mxu0 0
        %2806 = vmatprep.subr.bf16.mxu0 0
        %2807 = vmatpush1.bf16.msra.mxu0 0
        %2808 = vmatprep.subr.bf16.mxu0 0
        %2809 = vmatpush1.bf16.msra.mxu0 0
        %2810 = vmatprep.subr.bf16.mxu0 0
        %2811 = vmatpush1.bf16.msra.mxu0 0
        %2812 = vmatprep.subr.bf16.mxu0 0
        %2813 = vmatpush1.bf16.msra.mxu0 0
        %2814 = vmatprep.subr.bf16.mxu0 0
        %2815 = vmatpush1.bf16.msra.mxu0 0
        %2816 = vmatprep.subr.bf16.mxu0 0
        %2817 = vmatpush1.bf16.msra.mxu0 0
        %2818 = vmatprep.subr.bf16.mxu0 0
        %2819 = vmatpush1.bf16.msra.mxu0 0
        %2820 = vmatprep.mubr.bf16.mxu0 0
        %2821 = vmatmul.mubr.bf16.gmra.mrb[0].mxu0 %v2783
        %v2822 = vpop.f32.mrb[0].mxu0
        %v2823 = vadd.f32 0.0, %v2822
        %v2824 = vpop.f32.mrb[0].mxu0
        %v2825 = vpop.f32.mrb[0].mxu0
        %v2826 = vpop.f32.mrb[0].mxu0
        %2827 = vdwg.mxu0
        %v2829 = vsel %vm973, %v2729, 0
        %v2832 = vsel %vm1213, %v2734, 0
        %2834 = vmatprep.subr.bf16.mxu0 0
        %2835 = vmatpush1.bf16.msra.mxu0 %v2832
        %2836 = vmatprep.subr.bf16.mxu0 0
        %2837 = vmatpush1.bf16.msra.mxu0 0
        %2838 = vmatprep.subr.bf16.mxu0 0
        %2839 = vmatpush1.bf16.msra.mxu0 0
        %2840 = vmatprep.subr.bf16.mxu0 0
        %2841 = vmatpush1.bf16.msra.mxu0 0
        %2842 = vmatprep.subr.bf16.mxu0 0
        %2843 = vmatpush1.bf16.msra.mxu0 0
        %2844 = vmatprep.subr.bf16.mxu0 0
        %2845 = vmatpush1.bf16.msra.mxu0 0
        %2846 = vmatprep.subr.bf16.mxu0 0
        %2847 = vmatpush1.bf16.msra.mxu0 0
        %2848 = vmatprep.subr.bf16.mxu0 0
        %2849 = vmatpush1.bf16.msra.mxu0 0
        %2850 = vmatprep.subr.bf16.mxu0 0
        %2851 = vmatpush1.bf16.msra.mxu0 0
        %2852 = vmatprep.subr.bf16.mxu0 0
        %2853 = vmatpush1.bf16.msra.mxu0 0
        %2854 = vmatprep.subr.bf16.mxu0 0
        %2855 = vmatpush1.bf16.msra.mxu0 0
        %2856 = vmatprep.subr.bf16.mxu0 0
        %2857 = vmatpush1.bf16.msra.mxu0 0
        %2858 = vmatprep.subr.bf16.mxu0 0
        %2859 = vmatpush1.bf16.msra.mxu0 0
        %2860 = vmatprep.subr.bf16.mxu0 0
        %2861 = vmatpush1.bf16.msra.mxu0 0
        %2862 = vmatprep.subr.bf16.mxu0 0
        %2863 = vmatpush1.bf16.msra.mxu0 0
        %2864 = vmatprep.subr.bf16.mxu0 0
        %2865 = vmatpush1.bf16.msra.mxu0 0
        %2866 = vmatprep.mubr.bf16.mxu0 0
        %2867 = vmatmul.mubr.bf16.gmra.mrb[0].mxu0 %v2829
        %v2868 = vpop.f32.mrb[0].mxu0
        %v2869 = vadd.f32 0.0, %v2868
        %v2870 = vpop.f32.mrb[0].mxu0
        %v2871 = vpop.f32.mrb[0].mxu0
        %v2872 = vpop.f32.mrb[0].mxu0
        %2873 = vdwg.mxu0
        %v2875 = vsel %vm973, %v2730, 0
        %v2878 = vsel %vm1213, %v2735, 0
        %2880 = vmatprep.subr.bf16.mxu0 0
        %2881 = vmatpush1.bf16.msra.mxu0 %v2878
        %2882 = vmatprep.subr.bf16.mxu0 0
        %2883 = vmatpush1.bf16.msra.mxu0 0
        %2884 = vmatprep.subr.bf16.mxu0 0
        %2885 = vmatpush1.bf16.msra.mxu0 0
        %2886 = vmatprep.subr.bf16.mxu0 0
        %2887 = vmatpush1.bf16.msra.mxu0 0
        %2888 = vmatprep.subr.bf16.mxu0 0
        %2889 = vmatpush1.bf16.msra.mxu0 0
        %2890 = vmatprep.subr.bf16.mxu0 0
        %2891 = vmatpush1.bf16.msra.mxu0 0
        %2892 = vmatprep.subr.bf16.mxu0 0
        %2893 = vmatpush1.bf16.msra.mxu0 0
        %2894 = vmatprep.subr.bf16.mxu0 0
        %2895 = vmatpush1.bf16.msra.mxu0 0
        %2896 = vmatprep.subr.bf16.mxu0 0
        %2897 = vmatpush1.bf16.msra.mxu0 0
        %2898 = vmatprep.subr.bf16.mxu0 0
        %2899 = vmatpush1.bf16.msra.mxu0 0
        %2900 = vmatprep.subr.bf16.mxu0 0
        %2901 = vmatpush1.bf16.msra.mxu0 0
        %2902 = vmatprep.subr.bf16.mxu0 0
        %2903 = vmatpush1.bf16.msra.mxu0 0
        %2904 = vmatprep.subr.bf16.mxu0 0
        %2905 = vmatpush1.bf16.msra.mxu0 0
        %2906 = vmatprep.subr.bf16.mxu0 0
        %2907 = vmatpush1.bf16.msra.mxu0 0
        %2908 = vmatprep.subr.bf16.mxu0 0
        %2909 = vmatpush1.bf16.msra.mxu0 0
        %2910 = vmatprep.subr.bf16.mxu0 0
        %2911 = vmatpush1.bf16.msra.mxu0 0
        %2912 = vmatprep.mubr.bf16.mxu0 0
        %2913 = vmatmul.mubr.bf16.gmra.mrb[0].mxu0 %v2875
        %v2914 = vpop.f32.mrb[0].mxu0
        %v2915 = vadd.f32 0.0, %v2914
        %v2916 = vpop.f32.mrb[0].mxu0
        %v2917 = vpop.f32.mrb[0].mxu0
        %v2918 = vpop.f32.mrb[0].mxu0
        %2919 = vdwg.mxu0
        %v2920 = vsel %vm479, %v2777, 0.0
        %v2921 = vsel %vm479, %v2823, 0.0
        %v2922 = vadd.f32 %v2920, %v2921
        %v2923 = vsel %vm479, %v2869, 0.0
        %v2924 = vadd.f32 %v2922, %v2923
        %v2925 = vsel %vm479, %v2915, 0.0
        %v2926 = vadd.f32 %v2924, %v2925
        %v2927 = vlaneseq
        %v2928 = vshrl.u32 %v2927, 7
        %v2929 = vsub.s32 0, %v2928
        %v2930 = vrot.slane %v1795, %v2929
        %v2931 = vadd.f32 %v2926, %v2930
        %v2932 = vsel %vm479, %v2931, 0.0
        %2933 = vadd.xlane.f32.xlu0 %v2932
        %v2934 = vpop.xlane.xlu0 %2933
        %v2935 = vmul.f32 %v2934, %v1602
        %v2936 = vsub.f32 %v2931, %v2935
        %v2937 = vmul.f32 %v2936, %v2936
        %v2938 = vsel %vm479, %v2937, 0.0
        %2939 = vadd.xlane.f32.xlu0 %v2938
        %v2940 = vpop.xlane.xlu0 %2939
        %v2941 = vmul.f32 %v2940, %v1602
        %v2942 = vadd.f32 %v2941, 1e-05
        %v2943 = vrsqrt.pop %v2942
        %v2944 = vmul.f32 %v2936, %v2943
        %v2945 = vlaneseq
        %v2946 = vshrl.u32 %v2945, 7
        %v2947 = vsub.s32 1, %v2946
        %v2948 = vrot.slane %v1795, %v2947
        %v2949 = vmul.f32 %v2944, %v2948
        %v2950 = vlaneseq
        %v2951 = vshrl.u32 %v2950, 7
        %v2952 = vsub.s32 2, %v2951
        %v2953 = vrot.slane %v1795, %v2952
        %v2954 = vadd.f32 %v2949, %v2953
        %v2955 = vadd.f32 %v1793, %v2954
        %v2956 = vpack.c.bf16 %v2955, %v2955
        %s2957 = scalar_lea.vmem %s6, 16
        %v2958 = vld [vmem:[%s2957] sm:$0xf]
        %v2959 = vld [vmem:[%s2957 + $0x4] sm:$0xf]
        %v2960 = vld [vmem:[%s2957 + $0x8] sm:$0xf]
        %v2961 = vld [vmem:[%s2957 + $0xc] sm:$0xf]
        %v2962 = vlaneseq
        %v2963 = vshrl.u32 %v2962, 7
        %v2964 = vsub.s32 6, %v2963
        %v2965 = vrot.slane %v1795, %v2964
        %v2970 = vunpack.c.l.b16 %v2958
        %v2971 = vunpack.c.l.b16 %v2959
        %v2972 = vunpack.c.l.b16 %v2960
        %v2973 = vunpack.c.l.b16 %v2961
        %v2974 = vpack.c.b16 %v2971, %v2970
        %v2975 = vpack.c.b16 %v2973, %v2972
        %v2979 = vsel %vm479, %v2956, 0
        %2981 = vmatprep.subr.bf16.mxu0 0
        %2982 = vmatpush1.bf16.msra.mxu0 %v2974
        %2983 = vmatprep.subr.bf16.mxu0 0
        %2984 = vmatpush1.bf16.msra.mxu0 %v2975
        %2985 = vmatprep.subr.bf16.mxu0 0
        %2986 = vmatpush1.bf16.msra.mxu0 0
        %2987 = vmatprep.subr.bf16.mxu0 0
        %2988 = vmatpush1.bf16.msra.mxu0 0
        %2989 = vmatprep.subr.bf16.mxu0 0
        %2990 = vmatpush1.bf16.msra.mxu0 0
        %2991 = vmatprep.subr.bf16.mxu0 0
        %2992 = vmatpush1.bf16.msra.mxu0 0
        %2993 = vmatprep.subr.bf16.mxu0 0
        %2994 = vmatpush1.bf16.msra.mxu0 0
        %2995 = vmatprep.subr.bf16.mxu0 0
        %2996 = vmatpush1.bf16.msra.mxu0 0
        %2997 = vmatprep.subr.bf16.mxu0 0
        %2998 = vmatpush1.bf16.msra.mxu0 0
        %2999 = vmatprep.subr.bf16.mxu0 0
        %3000 = vmatpush1.bf16.msra.mxu0 0
        %3001 = vmatprep.subr.bf16.mxu0 0
        %3002 = vmatpush1.bf16.msra.mxu0 0
        %3003 = vmatprep.subr.bf16.mxu0 0
        %3004 = vmatpush1.bf16.msra.mxu0 0
        %3005 = vmatprep.subr.bf16.mxu0 0
        %3006 = vmatpush1.bf16.msra.mxu0 0
        %3007 = vmatprep.subr.bf16.mxu0 0
        %3008 = vmatpush1.bf16.msra.mxu0 0
        %3009 = vmatprep.subr.bf16.mxu0 0
        %3010 = vmatpush1.bf16.msra.mxu0 0
        %3011 = vmatprep.subr.bf16.mxu0 0
        %3012 = vmatpush1.bf16.msra.mxu0 0
        %3013 = vmatprep.mubr.bf16.mxu0 0
        %3014 = vmatmul.mubr.bf16.gmra.mrb[0].mxu0 %v2979
        %v3015 = vpop.f32.mrb[0].mxu0
        %v3016 = vadd.f32 %v2965, %v3015
        %v3017 = vpop.f32.mrb[0].mxu0
        %v3018 = vpop.f32.mrb[0].mxu0
        %v3019 = vpop.f32.mrb[0].mxu0
        %3020 = vdwg.mxu0
        %v3021 = vmax.f32 %v3016, 0.0
        %v3022 = vpack.c.bf16 %v3021, %v3021
        %s3023 = scalar_lea.vmem %s7, 32
        %v3024 = vld [vmem:[%s3023] sm:$0xf]
        %v3025 = vld [vmem:[%s3023 + $0x4] sm:$0xf]
        %v3026 = vld [vmem:[%s3023 + $0x8] sm:$0xf]
        %v3027 = vld [vmem:[%s3023 + $0xc] sm:$0xf]
        %v3028 = vld [vmem:[%s3023 + $0x10] sm:$0xf]
        %v3029 = vld [vmem:[%s3023 + $0x14] sm:$0xf]
        %v3030 = vld [vmem:[%s3023 + $0x18] sm:$0xf]
        %v3031 = vld [vmem:[%s3023 + $0x1c] sm:$0xf]
        %v3032 = vlaneseq
        %v3033 = vshrl.u32 %v3032, 7
        %v3034 = vsub.s32 5, %v3033
        %v3035 = vrot.slane %v1795, %v3034
        %v3044 = vunpack.c.l.b16 %v3024
        %v3045 = vunpack.c.l.b16 %v3025
        %v3046 = vunpack.c.l.b16 %v3026
        %v3047 = vunpack.c.l.b16 %v3027
        %v3048 = vunpack.c.l.b16 %v3028
        %v3049 = vunpack.c.l.b16 %v3029
        %v3050 = vunpack.c.l.b16 %v3030
        %v3051 = vunpack.c.l.b16 %v3031
        %v3052 = vpack.c.b16 %v3045, %v3044
        %v3053 = vpack.c.b16 %v3047, %v3046
        %v3054 = vpack.c.b16 %v3049, %v3048
        %v3055 = vpack.c.b16 %v3051, %v3050
        %v3061 = vsel %vm1726, %v3022, 0
        %3063 = vmatprep.subr.bf16.mxu0 0
        %3064 = vmatpush1.bf16.msra.mxu0 %v3052
        %3065 = vmatprep.subr.bf16.mxu0 0
        %3066 = vmatpush1.bf16.msra.mxu0 %v3053
        %3067 = vmatprep.subr.bf16.mxu0 0
        %3068 = vmatpush1.bf16.msra.mxu0 %v3054
        %3069 = vmatprep.subr.bf16.mxu0 0
        %3070 = vmatpush1.bf16.msra.mxu0 %v3055
        %3071 = vmatprep.subr.bf16.mxu0 0
        %3072 = vmatpush1.bf16.msra.mxu0 0
        %3073 = vmatprep.subr.bf16.mxu0 0
        %3074 = vmatpush1.bf16.msra.mxu0 0
        %3075 = vmatprep.subr.bf16.mxu0 0
        %3076 = vmatpush1.bf16.msra.mxu0 0
        %3077 = vmatprep.subr.bf16.mxu0 0
        %3078 = vmatpush1.bf16.msra.mxu0 0
        %3079 = vmatprep.subr.bf16.mxu0 0
        %3080 = vmatpush1.bf16.msra.mxu0 0
        %3081 = vmatprep.subr.bf16.mxu0 0
        %3082 = vmatpush1.bf16.msra.mxu0 0
        %3083 = vmatprep.subr.bf16.mxu0 0
        %3084 = vmatpush1.bf16.msra.mxu0 0
        %3085 = vmatprep.subr.bf16.mxu0 0
        %3086 = vmatpush1.bf16.msra.mxu0 0
        %3087 = vmatprep.subr.bf16.mxu0 0
        %3088 = vmatpush1.bf16.msra.mxu0 0
        %3089 = vmatprep.subr.bf16.mxu0 0
        %3090 = vmatpush1.bf16.msra.mxu0 0
        %3091 = vmatprep.subr.bf16.mxu0 0
        %3092 = vmatpush1.bf16.msra.mxu0 0
        %3093 = vmatprep.subr.bf16.mxu0 0
        %3094 = vmatpush1.bf16.msra.mxu0 0
        %3095 = vmatprep.mubr.bf16.mxu0 0
        %3096 = vmatmul.mubr.bf16.gmra.mrb[0].mxu0 %v3061
        %v3097 = vpop.f32.mrb[0].mxu0
        %v3098 = vadd.f32 %v3035, %v3097
        %v3099 = vpop.f32.mrb[0].mxu0
        %v3100 = vpop.f32.mrb[0].mxu0
        %v3101 = vpop.f32.mrb[0].mxu0
        %3102 = vdwg.mxu0
        %v3103 = vsel %vm479, %v3098, 0.0
        %3104 = vadd.xlane.f32.xlu0 %v3103
        %v3105 = vpop.xlane.xlu0 %3104
        %v3106 = vmul.f32 %v3105, %v1602
        %v3107 = vsub.f32 %v3098, %v3106
        %v3108 = vmul.f32 %v3107, %v3107
        %v3109 = vsel %vm479, %v3108, 0.0
        %3110 = vadd.xlane.f32.xlu0 %v3109
        %v3111 = vpop.xlane.xlu0 %3110
        %v3112 = vmul.f32 %v3111, %v1602
        %v3113 = vadd.f32 %v3112, 1e-05
        %v3114 = vrsqrt.pop %v3113
        %v3115 = vmul.f32 %v3107, %v3114
        %v3116 = vlaneseq
        %v3117 = vshrl.u32 %v3116, 7
        %v3118 = vsub.s32 3, %v3117
        %v3119 = vrot.slane %v1795, %v3118
        %v3120 = vmul.f32 %v3115, %v3119
        %v3121 = vlaneseq
        %v3122 = vshrl.u32 %v3121, 7
        %v3123 = vsub.s32 4, %v3122
        %v3124 = vrot.slane %v1795, %v3123
        %v3125 = vadd.f32 %v3120, %v3124
        %v3126 = vadd.f32 %v2955, %v3125
        %v3127 = vpack.c.bf16 %v3126, %v3126
        %v3128 = vld [vmem:[%s8] sm:$0xf]
        %v3129 = vld [vmem:[%s8 + $0x4] sm:$0xf]
        %v3130 = vld [vmem:[%s8 + $0x8] sm:$0xf]
        %v3131 = vld [vmem:[%s8 + $0xc] sm:$0xf]
        %v3132 = vld [vmem:[%s9] sm:$0x1]
        %v3134 = vlaneseq
        %v3135 = vshrl.u32 %v3134, 7
        %v3136 = vsub.s32 0, %v3135
        %v3137 = vrot.slane %v3132, %v3136
        %v3143 = vunpack.c.l.b16 %v3128
        %v3144 = vunpack.c.l.b16 %v3129
        %v3145 = vunpack.c.l.b16 %v3130
        %v3146 = vunpack.c.l.b16 %v3131
        %v3147 = vpack.c.b16 %v3144, %v3143
        %v3148 = vpack.c.b16 %v3146, %v3145
        %v3152 = vsel %vm479, %v3127, 0
        %3154 = vmatprep.subr.bf16.mxu0 0
        %3155 = vmatpush1.bf16.msra.mxu0 %v3147
        %3156 = vmatprep.subr.bf16.mxu0 0
        %3157 = vmatpush1.bf16.msra.mxu0 %v3148
        %3158 = vmatprep.subr.bf16.mxu0 0
        %3159 = vmatpush1.bf16.msra.mxu0 0
        %3160 = vmatprep.subr.bf16.mxu0 0
        %3161 = vmatpush1.bf16.msra.mxu0 0
        %3162 = vmatprep.subr.bf16.mxu0 0
        %3163 = vmatpush1.bf16.msra.mxu0 0
        %3164 = vmatprep.subr.bf16.mxu0 0
        %3165 = vmatpush1.bf16.msra.mxu0 0
        %3166 = vmatprep.subr.bf16.mxu0 0
        %3167 = vmatpush1.bf16.msra.mxu0 0
        %3168 = vmatprep.subr.bf16.mxu0 0
        %3169 = vmatpush1.bf16.msra.mxu0 0
        %3170 = vmatprep.subr.bf16.mxu0 0
        %3171 = vmatpush1.bf16.msra.mxu0 0
        %3172 = vmatprep.subr.bf16.mxu0 0
        %3173 = vmatpush1.bf16.msra.mxu0 0
        %3174 = vmatprep.subr.bf16.mxu0 0
        %3175 = vmatpush1.bf16.msra.mxu0 0
        %3176 = vmatprep.subr.bf16.mxu0 0
        %3177 = vmatpush1.bf16.msra.mxu0 0
        %3178 = vmatprep.subr.bf16.mxu0 0
        %3179 = vmatpush1.bf16.msra.mxu0 0
        %3180 = vmatprep.subr.bf16.mxu0 0
        %3181 = vmatpush1.bf16.msra.mxu0 0
        %3182 = vmatprep.subr.bf16.mxu0 0
        %3183 = vmatpush1.bf16.msra.mxu0 0
        %3184 = vmatprep.subr.bf16.mxu0 0
        %3185 = vmatpush1.bf16.msra.mxu0 0
        %3186 = vmatprep.mubr.bf16.mxu0 0
        %3187 = vmatmul.mubr.bf16.gmra.mrb[0].mxu0 %v3152
        %v3188 = vpop.f32.mrb[0].mxu0
        %v3189 = vadd.f32 %v3137, %v3188
        %v3190 = vpop.f32.mrb[0].mxu0
        %v3191 = vpop.f32.mrb[0].mxu0
        %v3192 = vpop.f32.mrb[0].mxu0
        %3193 = vdwg.mxu0
        %3194 = vst [vmem:[%s365] sm:$0xff] %v3189
        %s3195 = sand.u32 %s248, 1
        %s3196 = scalar_lea.sflag [#allocation4], %s3195
        %s3197 = sand.u32 %s248, 1
        %s3198 = smul.addr %s3197, 8
        %s3199 = scalar_lea.vmem [#allocation5], %s3198
        // Predicated region
        $region65: #{transformer_forward.1} parent=59 // pred_check
          %p3200 = pneg %p258
        $region66: #{transformer_forward.1} parent=59 // pred_check_branch
          %3202 = sbr.rel (%p3200) target = $region68
        $region67: #{transformer_forward.1} parent=59 // pred_region
          %s3204 = ssub.s32 128, 128
          %3205 = vsyncadd %s3196, %s3204
          %s3206 = smul.addr %s25, 128
          %s3207 = scalar_lea.hbm %s10, %s3206
          %s3209 = sshll.u32 %s3199, 4
          %s3210 = int_to_ptr.vmem [resolvable:$true] %s3209
          %3212 = dma.vmem_to_hbm [thread:$0]  %s3210, 128, %s3207, %s3196
        $region68: #{transformer_forward.1} parent=59 // pred_fallthru
          _
      $region60: #{transformer_forward.1} parent=5 // pred_fallthru
        _
      %p3213 = scmp.le.s32.totalorder 2, %s20
      // Predicated region
      $region69: #{transformer_forward.1} parent=5 // pred_check
        %p3214 = pneg %p3213
      $region70: #{transformer_forward.1} parent=5 // pred_check_branch
        %3216 = sbr.rel (%p3214) target = $region72
      $region71: #{transformer_forward.1} parent=5 // pred_region
        %s3217 = ssub.s32 %s20, 2
        // Predicated region
        $region73: #{transformer_forward.1} parent=71 // pred_check
          %p3218 = pneg %p264
        $region74: #{transformer_forward.1} parent=71 // pred_check_branch
          %3220 = sbr.rel (%p3218) target = $region76
        $region75: #{transformer_forward.1} parent=71 // pred_region
          %s3221 = sand.u32 %s249, 1
          %s3222 = scalar_lea.sflag [#allocation4], %s3221
          %s3223 = sand.u32 %s249, 1
          %s3224 = smul.addr %s3223, 8
          %s3225 = scalar_lea.vmem [#allocation5], %s3224
          %3226 = dma.done %s3222, 128
        $region76: #{transformer_forward.1} parent=71 // pred_fallthru
          _
      $region72: #{transformer_forward.1} parent=5 // pred_fallthru
        _
    $region6: #{transformer_forward.1} parent=1 // loop_footer
      %s24 = sadd.s32 1, %s20
    $region7: #{transformer_forward.1} parent=1 // loop_footer_branch
      %19 = sbr.rel target = $region3
    $region8: #{transformer_forward.1} parent=1 // loop_exit
      _
    %3227 = vsyncpa [#allocation3], 1
    %s3228 = scalar_lea.sflag [#allocation3], 1
    %3229 = vsyncpa %s3228, 1
    %3230 = vsyncpa [#allocation4], 1
    %s3231 = scalar_lea.sflag [#allocation4], 1
    %3232 = vsyncpa %s3231, 1

</llo_original>
